<compile_context>
chip_gen: v6e
topology: v6e:2x2x1
jax: 0.10.0
libtpu: 0.0.40
codegen_flags: <defaults>
</compile_context>

<pallas_src>
import numpy as np
import jax
import jax.numpy as jnp
from jax.experimental import pallas as pl
from jax.experimental.pallas import tpu as pltpu


# ---------------------------------------------------------------------------
# Fused Pallas kernel (one grid step == one batch sample)
# ---------------------------------------------------------------------------

def _phase_init_fused_kernel(x0_ref, xr_ref,
                             w1_ref, b1_ref, w2_ref, b2_ref,
                             w7_ref, b7_ref, wf_ref, bf_ref,
                             o_ref, a1_ref, a2_ref, s_ref):
    f32 = jnp.float32
    qh = xr_ref.shape[0]            # base-grid rows    (H/4)
    qw = xr_ref.shape[1] // 16      # base-grid columns (W/4)
    c1 = 64                         # per-cell channels of x1 / x7 (2 parts * 2*2 * 8ch)
    c2 = 32                         # per-cell channels of x2      (2 parts * 16ch)

    # Padded activation scratches: only the borders need to be zero, but they are tiny.
    a1_ref[...] = jnp.zeros(a1_ref.shape, f32)
    a2_ref[...] = jnp.zeros(a2_ref.shape, f32)
    s_ref[...] = jnp.zeros(s_ref.shape, f32)

    def folded_conv(row, w_ref, b_ref):
        # Sum over the folded window row-offsets; each term is one dense MXU matmul of a
        # padded activation row-slab against a banded (row -> row) weight matrix.
        acc = jnp.dot(row(0), w_ref[0], preferred_element_type=f32)
        for oi in range(1, w_ref.shape[0]):
            acc = acc + jnp.dot(row(oi), w_ref[oi], preferred_element_type=f32)
        return acc + b_ref[...]

    # encoder1: ComplexConv2d(1->8, k3 s2 p1) + complex ReLU     (fold-4 in -> fold-2 out)
    y1 = folded_conv(lambda oi: x0_ref[oi:oi + qh, :], w1_ref, b1_ref)
    a1_ref[1:qh + 1, c1:(qw + 1) * c1] = jnp.maximum(y1, 0.0)

    # encoder2: ComplexConv2d(8->16, k3 s2 p1) + complex ReLU    (fold-2 -> base grid)
    y2 = folded_conv(lambda oi: a1_ref[oi:oi + qh, :], w2_ref, b2_ref)
    a2_ref[1:qh + 1, c2:(qw + 1) * c2] = jnp.maximum(y2, 0.0)

    # decoder1: ComplexConvTranspose2d(16->8, k4 s2 p1) + complex ReLU, fused skip add.
    y7 = folded_conv(lambda oi: a2_ref[oi:oi + qh, :], w7_ref, b7_ref)
    s_ref[1:qh + 1, c1:(qw + 1) * c1] = (
        jnp.maximum(y7, 0.0) + a1_ref[1:qh + 1, c1:(qw + 1) * c1])

    # final_up: ComplexConvTranspose2d(8->1, k4 s2 p1) + complex ELU, fused phase step.
    yf = folded_conv(lambda oi: s_ref[oi:oi + qh, :], wf_ref, bf_ref)
    # complex ELU (alpha=1); exp(x)-1 kept instead of expm1 for guaranteed Mosaic lowering
    yf = jnp.where(yf > 0.0, yf, jnp.exp(yf) - 1.0)

    # phase = atan2(re, im);  init = x.real * (cos(phase) + i sin(phase))
    #       = x.real * (im + i re) / |z|   (atan2(0,0) = 0 -> cos=1, sin=0)
    half = qw * 16
    out_re = yf[:, :half]
    out_im = yf[:, half:]
    mag2 = out_re * out_re + out_im * out_im
    inv = jax.lax.rsqrt(mag2)
    cosp = jnp.where(mag2 > 0.0, out_im * inv, 1.0)
    sinp = jnp.where(mag2 > 0.0, out_re * inv, 0.0)
    xr = xr_ref[...]
    o_ref[:, :half] = xr * cosp           # real plane   (write halves directly, no concat)
    o_ref[:, half:] = xr * sinp           # imag plane


# ---------------------------------------------------------------------------
# Weight packing (numpy, runs once at init, outside jit)
#
# Per-cell channel layout of every folded activation:  (part, fold_r, fold_c, ch)
# with part = 0:real, 1:imag.  Complex combine: rows [re_in; im_in] x cols [re_out|im_out]
# use [[Wr, Wi], [-Wi, Wr]];  bias = (br - bi | br + bi)  (conv_r/conv_i both biased).
# ---------------------------------------------------------------------------

def _fold_down_weight(wr, wi, fold_in):
    """Conv2d(k=3, s=2, p=1).  wr/wi: (Cout, Cin, 3, 3).  Folded window offsets {-1, 0}."""
    cout, cin = wr.shape[0], wr.shape[1]
    fo = fold_in // 2
    ci_cell = 2 * fold_in * fold_in * cin
    co_cell = 2 * fo * fo * cout
    wf = np.zeros((2, 2, ci_cell, co_cell), np.float32)

    def cidx(part, fr, fc):
        return ((part * fold_in + fr) * fold_in + fc) * cin

    def oidx(part, rr, cc):
        return ((part * fo + rr) * fo + cc) * cout

    for rr in range(fo):
        for cc in range(fo):
            for a in range(3):
                for b in range(3):
                    tr = 2 * rr + a - 1            # input fold-phase row (may be -1)
                    tc = 2 * cc + b - 1
                    di, dj = tr // fold_in, tc // fold_in          # -1 or 0
                    fr, fc = tr - di * fold_in, tc - dj * fold_in
                    blk_r = wr[:, :, a, b].T       # (cin, cout)
                    blk_i = wi[:, :, a, b].T
                    i_re, i_im = cidx(0, fr, fc), cidx(1, fr, fc)
                    o_re, o_im = oidx(0, rr, cc), oidx(1, rr, cc)
                    wf[di + 1, dj + 1, i_re:i_re + cin, o_re:o_re + cout] += blk_r
                    wf[di + 1, dj + 1, i_im:i_im + cin, o_re:o_re + cout] += -blk_i
                    wf[di + 1, dj + 1, i_re:i_re + cin, o_im:o_im + cout] += blk_i
                    wf[di + 1, dj + 1, i_im:i_im + cin, o_im:o_im + cout] += blk_r
    return wf


def _fold_up_weight(wtr, wti, fold_in):
    """ConvTranspose2d(k=4, s=2, p=1).  wtr/wti: (Cin, Cout, 4, 4).  Offsets {-1, 0, +1}.

    Sub-pixel decomposition: output u = 2m + r gets contributions from inputs i = m-1+a
    (a in 0..2) with kernel row kh = 3 - (2a - r) when 0 <= 2a - r <= 3.
    """
    cin, cout = wtr.shape[0], wtr.shape[1]
    fo = 2 * fold_in
    ci_cell = 2 * fold_in * fold_in * cin
    co_cell = 2 * fo * fo * cout
    wf = np.zeros((3, 3, ci_cell, co_cell), np.float32)

    def cidx(part, fr, fc):
        return ((part * fold_in + fr) * fold_in + fc) * cin

    def oidx(part, rr, cc):
        return ((part * fo + rr) * fo + cc) * cout

    for fr_o in range(fo):
        for fc_o in range(fo):
            mr, r = fr_o // 2, fr_o % 2
            mc, c = fc_o // 2, fc_o % 2
            for a in range(3):
                keq_r = 2 * a - r
                if not (0 <= keq_r <= 3):
                    continue
                kh = 3 - keq_r
                tr = mr + a - 1
                di = tr // fold_in
                fr_i = tr - di * fold_in
                for b in range(3):
                    keq_c = 2 * b - c
                    if not (0 <= keq_c <= 3):
                        continue
                    kw = 3 - keq_c
                    tc = mc + b - 1
                    dj = tc // fold_in
                    fc_i = tc - dj * fold_in
                    blk_r = wtr[:, :, kh, kw]       # (cin, cout)
                    blk_i = wti[:, :, kh, kw]
                    i_re, i_im = cidx(0, fr_i, fc_i), cidx(1, fr_i, fc_i)
                    o_re, o_im = oidx(0, fr_o, fc_o), oidx(1, fr_o, fc_o)
                    wf[di + 1, dj + 1, i_re:i_re + cin, o_re:o_re + cout] += blk_r
                    wf[di + 1, dj + 1, i_im:i_im + cin, o_re:o_re + cout] += -blk_i
                    wf[di + 1, dj + 1, i_re:i_re + cin, o_im:o_im + cout] += blk_i
                    wf[di + 1, dj + 1, i_im:i_im + cin, o_im:o_im + cout] += blk_r
    return wf


def _banded(wf, qw):
    """Folded tap weights (n_off, n_off, Ci, Co) -> row-banded (n_off, (qw+n_off-1)*Ci, qw*Co)."""
    n_off, _, ci, co = wf.shape
    b = np.zeros((n_off, (qw + n_off - 1) * ci, qw * co), np.float32)
    for oi in range(n_off):
        for oj in range(n_off):
            for q in range(qw):
                r0 = (q + oj) * ci
                c0 = q * co
                b[oi, r0:r0 + ci, c0:c0 + co] = wf[oi, oj]
    return b


def _bias_cell(br, bi, fold_out, cout):
    b = np.zeros(2 * fold_out * fold_out * cout, np.float32)
    for part, vec in ((0, br - bi), (1, br + bi)):
        for f in range(fold_out * fold_out):
            s = (part * fold_out * fold_out + f) * cout
            b[s:s + cout] = vec
    return b


def _bias_row(b_cell, qw):
    return np.tile(b_cell, qw)[None, :].astype(np.float32)


def _final_perm(qw):
    """Reorder final-layer output columns from (q, part, f) to part-major (part, q, f)."""
    perm = []
    for part in range(2):
        for q in range(qw):
            for f in range(16):
                perm.append(q * 32 + part * 16 + f)
    return np.array(perm)


def init_params(key, h, w):
    qw = w // 4
    keys = jax.random.split(key, 16)

    def rnd(k, shape, fan_in):
        return np.asarray(jax.random.normal(k, shape, jnp.float32)) / np.sqrt(fan_in)

    # encoder1: ComplexConv2d(1 -> 8, k3)
    w1r, w1i = rnd(keys[0], (8, 1, 3, 3), 9.0), rnd(keys[1], (8, 1, 3, 3), 9.0)
    b1r, b1i = rnd(keys[2], (8,), 9.0), rnd(keys[3], (8,), 9.0)
    # encoder2: ComplexConv2d(8 -> 16, k3)
    w2r, w2i = rnd(keys[4], (16, 8, 3, 3), 72.0), rnd(keys[5], (16, 8, 3, 3), 72.0)
    b2r, b2i = rnd(keys[6], (16,), 72.0), rnd(keys[7], (16,), 72.0)
    # decoder1: ComplexConvTranspose2d(16 -> 8, k4)
    w7r, w7i = rnd(keys[8], (16, 8, 4, 4), 256.0), rnd(keys[9], (16, 8, 4, 4), 256.0)
    b7r, b7i = rnd(keys[10], (8,), 256.0), rnd(keys[11], (8,), 256.0)
    # final_up: ComplexConvTranspose2d(8 -> 1, k4)
    wfr, wfi = rnd(keys[12], (8, 1, 4, 4), 128.0), rnd(keys[13], (8, 1, 4, 4), 128.0)
    bfr, bfi = rnd(keys[14], (1,), 128.0), rnd(keys[15], (1,), 128.0)

    p = {
        "w1": jnp.asarray(_banded(_fold_down_weight(w1r, w1i, fold_in=4), qw)),
        "b1": jnp.asarray(_bias_row(_bias_cell(b1r, b1i, 2, 8), qw)),
        "w2": jnp.asarray(_banded(_fold_down_weight(w2r, w2i, fold_in=2), qw)),
        "b2": jnp.asarray(_bias_row(_bias_cell(b2r, b2i, 1, 16), qw)),
        "w7": jnp.asarray(_banded(_fold_up_weight(w7r, w7i, fold_in=1), qw)),
        "b7": jnp.asarray(_bias_row(_bias_cell(b7r, b7i, 2, 8), qw)),
    }
    wf_banded = _banded(_fold_up_weight(wfr, wfi, fold_in=2), qw)
    bf_row = _bias_row(_bias_cell(bfr, bfi, 4, 1), qw)
    perm = _final_perm(qw)
    p["wf"] = jnp.asarray(wf_banded[:, :, perm])
    p["bf"] = jnp.asarray(bf_row[:, perm])
    return p
    # NOTE: encoder3 / encoder4 / decoder3 / decoder2 parameters are never used by the
    # reference forward's output (dead branches) and are intentionally not created.


# ---------------------------------------------------------------------------
# Forward wrapper (input fold + single pallas_call + output unfold)
# ---------------------------------------------------------------------------

def _round_up(x, m):
    return (x + m - 1) // m * m


def _vmem_bytes(shape):
    s = list(shape)
    s[-1] = _round_up(s[-1], 128)
    if len(s) >= 2:
        s[-2] = _round_up(s[-2], 8)
    n = 1
    for d in s:
        n *= d
    return n * 4


def phase_init_network(x, params):
    """x: complex64 (N, 1, H, W), NCHW like the PyTorch reference.  H, W multiples of 4."""
    n, _, h, w = x.shape
    qh, qw = h // 4, w // 4

    xr = jnp.real(x)[:, 0].astype(jnp.float32)
    xi = jnp.imag(x)[:, 0].astype(jnp.float32)
    # fold by 4 onto the base grid; per-cell channel layout (part, fr4, fc4)
    xrf = xr.reshape(n, qh, 4, qw, 4).transpose(0, 1, 3, 2, 4)
    xif = xi.reshape(n, qh, 4, qw, 4).transpose(0, 1, 3, 2, 4)
    x0f = jnp.stack([xrf, xif], axis=3).reshape(n, qh, qw, 32)
    # padded 2-D "row layout" consumed by the kernel
    x0p = jnp.pad(x0f, ((0, 0), (1, 0), (1, 0), (0, 0))).reshape(n, qh + 1, (qw + 1) * 32)
    xr4 = xrf.reshape(n, qh, qw * 16)          # x.real, folded, for the phase epilogue

    w1, b1 = params["w1"], params["b1"]
    w2, b2 = params["w2"], params["b2"]
    w7, b7 = params["w7"], params["b7"]
    wf, bf = params["wf"], params["bf"]

    def resident_spec(arr):
        zeros = (0,) * arr.ndim
        return pl.BlockSpec(arr.shape, lambda i, zeros=zeros: zeros)

    in_specs = [
        pl.BlockSpec((None, qh + 1, (qw + 1) * 32), lambda i: (i, 0, 0)),
        pl.BlockSpec((None, qh, qw * 16), lambda i: (i, 0, 0)),
        resident_spec(w1), resident_spec(b1),
        resident_spec(w2), resident_spec(b2),
        resident_spec(w7), resident_spec(b7),
        resident_spec(wf), resident_spec(bf),
    ]
    out_specs = pl.BlockSpec((None, qh, qw * 32), lambda i: (i, 0, 0))
    scratch_shapes = [
        pltpu.VMEM((qh + 1, (qw + 1) * 64), jnp.float32),   # x1 (padded, folded)
        pltpu.VMEM((qh + 2, (qw + 2) * 32), jnp.float32),   # x2 (padded)
        pltpu.VMEM((qh + 2, (qw + 2) * 64), jnp.float32),   # x7 + x1 (padded, folded)
    ]

    # VMEM budget from (8,128)-padded block shapes: streamed blocks double-buffered,
    # resident weights counted twice (conservative), scratches once, plus headroom;
    # clamped under v7x's 64 MiB physical VMEM.
    stream = (_vmem_bytes((qh + 1, (qw + 1) * 32)) + _vmem_bytes((qh, qw * 16))
              + _vmem_bytes((qh, qw * 32)))
    resid = sum(_vmem_bytes(a.shape) for a in (w1, b1, w2, b2, w7, b7, wf, bf))
    scratch = (_vmem_bytes((qh + 1, (qw + 1) * 64)) + _vmem_bytes((qh + 2, (qw + 2) * 32))
               + _vmem_bytes((qh + 2, (qw + 2) * 64)))
    vmem_limit = int(min(64 * 2**20, 2 * stream + 2 * resid + scratch + (4 << 20)))

    out = pl.pallas_call(
        _phase_init_fused_kernel,
        out_shape=jax.ShapeDtypeStruct((n, qh, qw * 32), jnp.float32),
        grid=(n,),
        in_specs=in_specs,
        out_specs=out_specs,
        scratch_shapes=scratch_shapes,
        compiler_params=pltpu.CompilerParams(
            dimension_semantics=("parallel",),     # >=2 grid steps -> both v7x TCs busy
            vmem_limit_bytes=vmem_limit),
    )(x0p, xr4, w1, b1, w2, b2, w7, b7, wf, bf)

    # un-fold: output columns are (part, q, fr4, fc4)
    o = out.reshape(n, qh, 2, qw, 4, 4).transpose(0, 2, 1, 4, 3, 5).reshape(n, 2, h, w)
    return jax.lax.complex(o[:, 0:1], o[:, 1:2])   # (N, 1, H, W) complex64


# ---------------------------------------------------------------------------

if __name__ == "__main__":
    key = jax.random.PRNGKey(0)
    kx, kxi, kp = jax.random.split(key, 3)

    N, H, W = 2, 16, 16
    x = jax.lax.complex(jax.random.normal(kx, (N, 1, H, W), jnp.float32),
                        jax.random.normal(kxi, (N, 1, H, W), jnp.float32))
    params = init_params(kp, H, W)

    fwd = jax.jit(phase_init_network)
    out = jax.block_until_ready(fwd(x, params))

    assert out.shape == (N, 1, H, W), out.shape
    assert out.dtype == jnp.complex64, out.dtype
    assert bool(jnp.all(jnp.isfinite(jnp.real(out))))
    assert bool(jnp.all(jnp.isfinite(jnp.imag(out))))
    print("KERNEL_OK")
</pallas_src>

<mosaic_0001>
module attributes {stable_mosaic.version = 11 : i64} {
  func.func @_phase_init_fused_kernel(%arg0: i32, %arg1: memref<1x5x160xf32, #tpu.memory_space<vmem>>, %arg2: memref<1x4x64xf32, #tpu.memory_space<vmem>>, %arg3: memref<2x160x256xf32, #tpu.memory_space<vmem>>, %arg4: memref<1x256xf32, #tpu.memory_space<vmem>>, %arg5: memref<2x320x128xf32, #tpu.memory_space<vmem>>, %arg6: memref<1x128xf32, #tpu.memory_space<vmem>>, %arg7: memref<3x192x256xf32, #tpu.memory_space<vmem>>, %arg8: memref<1x256xf32, #tpu.memory_space<vmem>>, %arg9: memref<3x384x128xf32, #tpu.memory_space<vmem>>, %arg10: memref<1x128xf32, #tpu.memory_space<vmem>>, %arg11: memref<1x4x128xf32, #tpu.memory_space<vmem>>, %arg12: memref<5x320xf32, #tpu.memory_space<vmem>>, %arg13: memref<6x192xf32, #tpu.memory_space<vmem>>, %arg14: memref<6x384xf32, #tpu.memory_space<vmem>>) attributes {dimension_semantics = [#tpu.dimension_semantics<parallel>], iteration_bounds = array<i64: 2>, scalar_prefetch = 0 : i64, scratch_operands = 3 : i64, tpu.core_type = #tpu.core_type<tc>, window_params = [{transform_indices = @transform_0, window_bounds = array<i64: 1, 5, 160>}, {transform_indices = @transform_1, window_bounds = array<i64: 1, 4, 64>}, {pipeline_mode = #tpu.pipeline_mode<synchronous>, transform_indices = @transform_2, window_bounds = array<i64: 2, 160, 256>}, {pipeline_mode = #tpu.pipeline_mode<synchronous>, transform_indices = @transform_3, window_bounds = array<i64: 1, 256>}, {pipeline_mode = #tpu.pipeline_mode<synchronous>, transform_indices = @transform_4, window_bounds = array<i64: 2, 320, 128>}, {pipeline_mode = #tpu.pipeline_mode<synchronous>, transform_indices = @transform_5, window_bounds = array<i64: 1, 128>}, {pipeline_mode = #tpu.pipeline_mode<synchronous>, transform_indices = @transform_6, window_bounds = array<i64: 3, 192, 256>}, {pipeline_mode = #tpu.pipeline_mode<synchronous>, transform_indices = @transform_7, window_bounds = array<i64: 1, 256>}, {pipeline_mode = #tpu.pipeline_mode<synchronous>, transform_indices = @transform_8, window_bounds = array<i64: 3, 384, 128>}, {pipeline_mode = #tpu.pipeline_mode<synchronous>, transform_indices = @transform_9, window_bounds = array<i64: 1, 128>}, {transform_indices = @transform_10, window_bounds = array<i64: 1, 4, 128>}]} {
    %cst = arith.constant 0.000000e+00 : f32
    %0 = vector.broadcast %cst : f32 to vector<5x320xf32>
    %c0 = arith.constant 0 : index
    %c0_0 = arith.constant 0 : index
    %1 = vector.load %arg12[%c0, %c0_0] : memref<5x320xf32, #tpu.memory_space<vmem>>, vector<5x320xf32>
    tpu.vector_store %arg12[%c0, %c0_0], %0 {strides = array<i32>} : memref<5x320xf32, #tpu.memory_space<vmem>>, vector<5x320xf32>,
    %cst_1 = arith.constant 0.000000e+00 : f32
    %2 = vector.broadcast %cst_1 : f32 to vector<6x192xf32>
    %c0_2 = arith.constant 0 : index
    %c0_3 = arith.constant 0 : index
    %3 = vector.load %arg13[%c0_2, %c0_3] : memref<6x192xf32, #tpu.memory_space<vmem>>, vector<6x192xf32>
    tpu.vector_store %arg13[%c0_2, %c0_3], %2 {strides = array<i32>} : memref<6x192xf32, #tpu.memory_space<vmem>>, vector<6x192xf32>,
    %cst_4 = arith.constant 0.000000e+00 : f32
    %4 = vector.broadcast %cst_4 : f32 to vector<6x384xf32>
    %c0_5 = arith.constant 0 : index
    %c0_6 = arith.constant 0 : index
    %5 = vector.load %arg14[%c0_5, %c0_6] : memref<6x384xf32, #tpu.memory_space<vmem>>, vector<6x384xf32>
    tpu.vector_store %arg14[%c0_5, %c0_6], %4 {strides = array<i32>} : memref<6x384xf32, #tpu.memory_space<vmem>>, vector<6x384xf32>,
    %c0_7 = arith.constant 0 : index
    %c0_8 = arith.constant 0 : index
    %c0_9 = arith.constant 0 : index
    %6 = vector.load %arg1[%c0_7, %c0_8, %c0_9] : memref<1x5x160xf32, #tpu.memory_space<vmem>>, vector<1x4x160xf32>
    %7 = vector.shape_cast %6 : vector<1x4x160xf32> to vector<4x160xf32>
    %c0_10 = arith.constant 0 : index
    %c0_11 = arith.constant 0 : index
    %c0_12 = arith.constant 0 : index
    %8 = vector.load %arg3[%c0_10, %c0_11, %c0_12] : memref<2x160x256xf32, #tpu.memory_space<vmem>>, vector<1x160x256xf32>
    %9 = vector.shape_cast %8 : vector<1x160x256xf32> to vector<160x256xf32>
    %cst_13 = arith.constant dense<0.000000e+00> : vector<4x256xf32>
    %10 = tpu.matmul %7, %9, %cst_13 {dimension_numbers = #tpu.dot_dimension_numbers<[1], [0], [0], [1], [0, 0, 1, 1], [], []>} : vector<4x160xf32>, vector<160x256xf32>, vector<4x256xf32> -> vector<4x256xf32>
    %c0_14 = arith.constant 0 : index
    %c1 = arith.constant 1 : index
    %c0_15 = arith.constant 0 : index
    %11 = vector.load %arg1[%c0_14, %c1, %c0_15] : memref<1x5x160xf32, #tpu.memory_space<vmem>>, vector<1x4x160xf32>
    %12 = vector.shape_cast %11 : vector<1x4x160xf32> to vector<4x160xf32>
    %c1_16 = arith.constant 1 : index
    %c0_17 = arith.constant 0 : index
    %c0_18 = arith.constant 0 : index
    %13 = vector.load %arg3[%c1_16, %c0_17, %c0_18] : memref<2x160x256xf32, #tpu.memory_space<vmem>>, vector<1x160x256xf32>
    %14 = vector.shape_cast %13 : vector<1x160x256xf32> to vector<160x256xf32>
    %cst_19 = arith.constant dense<0.000000e+00> : vector<4x256xf32>
    %15 = tpu.matmul %12, %14, %cst_19 {dimension_numbers = #tpu.dot_dimension_numbers<[1], [0], [0], [1], [0, 0, 1, 1], [], []>} : vector<4x160xf32>, vector<160x256xf32>, vector<4x256xf32> -> vector<4x256xf32>
    %16 = arith.addf %10, %15 : vector<4x256xf32>
    %c0_20 = arith.constant 0 : index
    %c0_21 = arith.constant 0 : index
    %17 = vector.load %arg4[%c0_20, %c0_21] : memref<1x256xf32, #tpu.memory_space<vmem>>, vector<1x256xf32>
    %18 = vector.broadcast %17 : vector<1x256xf32> to vector<4x256xf32>
    %19 = arith.addf %16, %18 : vector<4x256xf32>
    %cst_22 = arith.constant 0.000000e+00 : f32
    %20 = vector.broadcast %cst_22 : f32 to vector<4x256xf32>
    %21 = arith.maximumf %19, %20 : vector<4x256xf32>
    %c1_23 = arith.constant 1 : index
    %c64 = arith.constant 64 : index
    %22 = vector.load %arg12[%c1_23, %c64] : memref<5x320xf32, #tpu.memory_space<vmem>>, vector<4x256xf32>
    tpu.vector_store %arg12[%c1_23, %c64], %21 {strides = array<i32>} : memref<5x320xf32, #tpu.memory_space<vmem>>, vector<4x256xf32>,
    %c0_24 = arith.constant 0 : index
    %c0_25 = arith.constant 0 : index
    %23 = vector.load %arg12[%c0_24, %c0_25] : memref<5x320xf32, #tpu.memory_space<vmem>>, vector<4x320xf32>
    %c0_26 = arith.constant 0 : index
    %c0_27 = arith.constant 0 : index
    %c0_28 = arith.constant 0 : index
    %24 = vector.load %arg5[%c0_26, %c0_27, %c0_28] : memref<2x320x128xf32, #tpu.memory_space<vmem>>, vector<1x320x128xf32>
    %25 = vector.shape_cast %24 : vector<1x320x128xf32> to vector<320x128xf32>
    %cst_29 = arith.constant dense<0.000000e+00> : vector<4x128xf32>
    %26 = tpu.matmul %23, %25, %cst_29 {dimension_numbers = #tpu.dot_dimension_numbers<[1], [0], [0], [1], [0, 0, 1, 1], [], []>} : vector<4x320xf32>, vector<320x128xf32>, vector<4x128xf32> -> vector<4x128xf32>
    %c1_30 = arith.constant 1 : index
    %c0_31 = arith.constant 0 : index
    %27 = vector.load %arg12[%c1_30, %c0_31] : memref<5x320xf32, #tpu.memory_space<vmem>>, vector<4x320xf32>
    %c1_32 = arith.constant 1 : index
    %c0_33 = arith.constant 0 : index
    %c0_34 = arith.constant 0 : index
    %28 = vector.load %arg5[%c1_32, %c0_33, %c0_34] : memref<2x320x128xf32, #tpu.memory_space<vmem>>, vector<1x320x128xf32>
    %29 = vector.shape_cast %28 : vector<1x320x128xf32> to vector<320x128xf32>
    %cst_35 = arith.constant dense<0.000000e+00> : vector<4x128xf32>
    %30 = tpu.matmul %27, %29, %cst_35 {dimension_numbers = #tpu.dot_dimension_numbers<[1], [0], [0], [1], [0, 0, 1, 1], [], []>} : vector<4x320xf32>, vector<320x128xf32>, vector<4x128xf32> -> vector<4x128xf32>
    %31 = arith.addf %26, %30 : vector<4x128xf32>
    %c0_36 = arith.constant 0 : index
    %c0_37 = arith.constant 0 : index
    %32 = vector.load %arg6[%c0_36, %c0_37] : memref<1x128xf32, #tpu.memory_space<vmem>>, vector<1x128xf32>
    %33 = vector.broadcast %32 : vector<1x128xf32> to vector<4x128xf32>
    %34 = arith.addf %31, %33 : vector<4x128xf32>
    %cst_38 = arith.constant 0.000000e+00 : f32
    %35 = vector.broadcast %cst_38 : f32 to vector<4x128xf32>
    %36 = arith.maximumf %34, %35 : vector<4x128xf32>
    %c1_39 = arith.constant 1 : index
    %c32 = arith.constant 32 : index
    %37 = vector.load %arg13[%c1_39, %c32] : memref<6x192xf32, #tpu.memory_space<vmem>>, vector<4x128xf32>
    tpu.vector_store %arg13[%c1_39, %c32], %36 {strides = array<i32>} : memref<6x192xf32, #tpu.memory_space<vmem>>, vector<4x128xf32>,
    %c0_40 = arith.constant 0 : index
    %c0_41 = arith.constant 0 : index
    %38 = vector.load %arg13[%c0_40, %c0_41] : memref<6x192xf32, #tpu.memory_space<vmem>>, vector<4x192xf32>
    %c0_42 = arith.constant 0 : index
    %c0_43 = arith.constant 0 : index
    %c0_44 = arith.constant 0 : index
    %39 = vector.load %arg7[%c0_42, %c0_43, %c0_44] : memref<3x192x256xf32, #tpu.memory_space<vmem>>, vector<1x192x256xf32>
    %40 = vector.shape_cast %39 : vector<1x192x256xf32> to vector<192x256xf32>
    %cst_45 = arith.constant dense<0.000000e+00> : vector<4x256xf32>
    %41 = tpu.matmul %38, %40, %cst_45 {dimension_numbers = #tpu.dot_dimension_numbers<[1], [0], [0], [1], [0, 0, 1, 1], [], []>} : vector<4x192xf32>, vector<192x256xf32>, vector<4x256xf32> -> vector<4x256xf32>
    %c1_46 = arith.constant 1 : index
    %c0_47 = arith.constant 0 : index
    %42 = vector.load %arg13[%c1_46, %c0_47] : memref<6x192xf32, #tpu.memory_space<vmem>>, vector<4x192xf32>
    %c1_48 = arith.constant 1 : index
    %c0_49 = arith.constant 0 : index
    %c0_50 = arith.constant 0 : index
    %43 = vector.load %arg7[%c1_48, %c0_49, %c0_50] : memref<3x192x256xf32, #tpu.memory_space<vmem>>, vector<1x192x256xf32>
    %44 = vector.shape_cast %43 : vector<1x192x256xf32> to vector<192x256xf32>
    %cst_51 = arith.constant dense<0.000000e+00> : vector<4x256xf32>
    %45 = tpu.matmul %42, %44, %cst_51 {dimension_numbers = #tpu.dot_dimension_numbers<[1], [0], [0], [1], [0, 0, 1, 1], [], []>} : vector<4x192xf32>, vector<192x256xf32>, vector<4x256xf32> -> vector<4x256xf32>
    %46 = arith.addf %41, %45 : vector<4x256xf32>
    %c2 = arith.constant 2 : index
    %c0_52 = arith.constant 0 : index
    %47 = vector.load %arg13[%c2, %c0_52] : memref<6x192xf32, #tpu.memory_space<vmem>>, vector<4x192xf32>
    %c2_53 = arith.constant 2 : index
    %c0_54 = arith.constant 0 : index
    %c0_55 = arith.constant 0 : index
    %48 = vector.load %arg7[%c2_53, %c0_54, %c0_55] : memref<3x192x256xf32, #tpu.memory_space<vmem>>, vector<1x192x256xf32>
    %49 = vector.shape_cast %48 : vector<1x192x256xf32> to vector<192x256xf32>
    %cst_56 = arith.constant dense<0.000000e+00> : vector<4x256xf32>
    %50 = tpu.matmul %47, %49, %cst_56 {dimension_numbers = #tpu.dot_dimension_numbers<[1], [0], [0], [1], [0, 0, 1, 1], [], []>} : vector<4x192xf32>, vector<192x256xf32>, vector<4x256xf32> -> vector<4x256xf32>
    %51 = arith.addf %46, %50 : vector<4x256xf32>
    %c0_57 = arith.constant 0 : index
    %c0_58 = arith.constant 0 : index
    %52 = vector.load %arg8[%c0_57, %c0_58] : memref<1x256xf32, #tpu.memory_space<vmem>>, vector<1x256xf32>
    %53 = vector.broadcast %52 : vector<1x256xf32> to vector<4x256xf32>
    %54 = arith.addf %51, %53 : vector<4x256xf32>
    %cst_59 = arith.constant 0.000000e+00 : f32
    %55 = vector.broadcast %cst_59 : f32 to vector<4x256xf32>
    %56 = arith.maximumf %54, %55 : vector<4x256xf32>
    %c1_60 = arith.constant 1 : index
    %c64_61 = arith.constant 64 : index
    %57 = vector.load %arg12[%c1_60, %c64_61] : memref<5x320xf32, #tpu.memory_space<vmem>>, vector<4x256xf32>
    %58 = arith.addf %56, %57 : vector<4x256xf32>
    %c1_62 = arith.constant 1 : index
    %c64_63 = arith.constant 64 : index
    %59 = vector.load %arg14[%c1_62, %c64_63] : memref<6x384xf32, #tpu.memory_space<vmem>>, vector<4x256xf32>
    tpu.vector_store %arg14[%c1_62, %c64_63], %58 {strides = array<i32>} : memref<6x384xf32, #tpu.memory_space<vmem>>, vector<4x256xf32>,
    %c0_64 = arith.constant 0 : index
    %c0_65 = arith.constant 0 : index
    %60 = vector.load %arg14[%c0_64, %c0_65] : memref<6x384xf32, #tpu.memory_space<vmem>>, vector<4x384xf32>
    %c0_66 = arith.constant 0 : index
    %c0_67 = arith.constant 0 : index
    %c0_68 = arith.constant 0 : index
    %61 = vector.load %arg9[%c0_66, %c0_67, %c0_68] : memref<3x384x128xf32, #tpu.memory_space<vmem>>, vector<1x384x128xf32>
    %62 = vector.shape_cast %61 : vector<1x384x128xf32> to vector<384x128xf32>
    %cst_69 = arith.constant dense<0.000000e+00> : vector<4x128xf32>
    %63 = tpu.matmul %60, %62, %cst_69 {dimension_numbers = #tpu.dot_dimension_numbers<[1], [0], [0], [1], [0, 0, 1, 1], [], []>} : vector<4x384xf32>, vector<384x128xf32>, vector<4x128xf32> -> vector<4x128xf32>
    %c1_70 = arith.constant 1 : index
    %c0_71 = arith.constant 0 : index
    %64 = vector.load %arg14[%c1_70, %c0_71] : memref<6x384xf32, #tpu.memory_space<vmem>>, vector<4x384xf32>
    %c1_72 = arith.constant 1 : index
    %c0_73 = arith.constant 0 : index
    %c0_74 = arith.constant 0 : index
    %65 = vector.load %arg9[%c1_72, %c0_73, %c0_74] : memref<3x384x128xf32, #tpu.memory_space<vmem>>, vector<1x384x128xf32>
    %66 = vector.shape_cast %65 : vector<1x384x128xf32> to vector<384x128xf32>
    %cst_75 = arith.constant dense<0.000000e+00> : vector<4x128xf32>
    %67 = tpu.matmul %64, %66, %cst_75 {dimension_numbers = #tpu.dot_dimension_numbers<[1], [0], [0], [1], [0, 0, 1, 1], [], []>} : vector<4x384xf32>, vector<384x128xf32>, vector<4x128xf32> -> vector<4x128xf32>
    %68 = arith.addf %63, %67 : vector<4x128xf32>
    %c2_76 = arith.constant 2 : index
    %c0_77 = arith.constant 0 : index
    %69 = vector.load %arg14[%c2_76, %c0_77] : memref<6x384xf32, #tpu.memory_space<vmem>>, vector<4x384xf32>
    %c2_78 = arith.constant 2 : index
    %c0_79 = arith.constant 0 : index
    %c0_80 = arith.constant 0 : index
    %70 = vector.load %arg9[%c2_78, %c0_79, %c0_80] : memref<3x384x128xf32, #tpu.memory_space<vmem>>, vector<1x384x128xf32>
    %71 = vector.shape_cast %70 : vector<1x384x128xf32> to vector<384x128xf32>
    %cst_81 = arith.constant dense<0.000000e+00> : vector<4x128xf32>
    %72 = tpu.matmul %69, %71, %cst_81 {dimension_numbers = #tpu.dot_dimension_numbers<[1], [0], [0], [1], [0, 0, 1, 1], [], []>} : vector<4x384xf32>, vector<384x128xf32>, vector<4x128xf32> -> vector<4x128xf32>
    %73 = arith.addf %68, %72 : vector<4x128xf32>
    %c0_82 = arith.constant 0 : index
    %c0_83 = arith.constant 0 : index
    %74 = vector.load %arg10[%c0_82, %c0_83] : memref<1x128xf32, #tpu.memory_space<vmem>>, vector<1x128xf32>
    %75 = vector.broadcast %74 : vector<1x128xf32> to vector<4x128xf32>
    %76 = arith.addf %73, %75 : vector<4x128xf32>
    %cst_84 = arith.constant 0.000000e+00 : f32
    %77 = vector.broadcast %cst_84 : f32 to vector<4x128xf32>
    %78 = arith.cmpf ogt, %76, %77 : vector<4x128xf32>
    %79 = math.exp %76 : vector<4x128xf32>
    %cst_85 = arith.constant 1.000000e+00 : f32
    %80 = vector.broadcast %cst_85 : f32 to vector<4x128xf32>
    %81 = arith.subf %79, %80 : vector<4x128xf32>
    %82 = arith.select %78, %76, %81 : vector<4x128xi1>, vector<4x128xf32>
    %83 = vector.extract_strided_slice %82 {offsets = [0, 0], sizes = [4, 64], strides = [1, 1]} : vector<4x128xf32> to vector<4x64xf32>
    %84 = vector.extract_strided_slice %82 {offsets = [0, 64], sizes = [4, 64], strides = [1, 1]} : vector<4x128xf32> to vector<4x64xf32>
    %85 = arith.mulf %83, %83 : vector<4x64xf32>
    %86 = arith.mulf %84, %84 : vector<4x64xf32>
    %87 = arith.addf %85, %86 : vector<4x64xf32>
    %88 = math.rsqrt %87 : vector<4x64xf32>
    %cst_86 = arith.constant 0.000000e+00 : f32
    %89 = vector.broadcast %cst_86 : f32 to vector<4x64xf32>
    %90 = arith.cmpf ogt, %87, %89 : vector<4x64xf32>
    %91 = arith.mulf %84, %88 : vector<4x64xf32>
    %cst_87 = arith.constant 1.000000e+00 : f32
    %92 = vector.broadcast %cst_87 : f32 to vector<4x64xf32>
    %93 = arith.select %90, %91, %92 : vector<4x64xi1>, vector<4x64xf32>
    %cst_88 = arith.constant 0.000000e+00 : f32
    %94 = vector.broadcast %cst_88 : f32 to vector<4x64xf32>
    %95 = arith.cmpf ogt, %87, %94 : vector<4x64xf32>
    %96 = arith.mulf %83, %88 : vector<4x64xf32>
    %cst_89 = arith.constant 0.000000e+00 : f32
    %97 = vector.broadcast %cst_89 : f32 to vector<4x64xf32>
    %98 = arith.select %95, %96, %97 : vector<4x64xi1>, vector<4x64xf32>
    %c0_90 = arith.constant 0 : index
    %c0_91 = arith.constant 0 : index
    %c0_92 = arith.constant 0 : index
    %99 = vector.load %arg2[%c0_90, %c0_91, %c0_92] : memref<1x4x64xf32, #tpu.memory_space<vmem>>, vector<1x4x64xf32>
    %100 = vector.shape_cast %99 : vector<1x4x64xf32> to vector<4x64xf32>
    %101 = arith.mulf %100, %93 : vector<4x64xf32>
    %c0_93 = arith.constant 0 : index
    %c0_94 = arith.constant 0 : index
    %c0_95 = arith.constant 0 : index
    %102 = vector.load %arg11[%c0_93, %c0_94, %c0_95] : memref<1x4x128xf32, #tpu.memory_space<vmem>>, vector<1x4x64xf32>
    %103 = vector.shape_cast %102 : vector<1x4x64xf32> to vector<4x64xf32>
    %104 = vector.shape_cast %101 : vector<4x64xf32> to vector<1x4x64xf32>
    tpu.vector_store %arg11[%c0_93, %c0_94, %c0_95], %104 {strides = array<i32>} : memref<1x4x128xf32, #tpu.memory_space<vmem>>, vector<1x4x64xf32>,
    %105 = arith.mulf %100, %98 : vector<4x64xf32>
    %c0_96 = arith.constant 0 : index
    %c0_97 = arith.constant 0 : index
    %c64_98 = arith.constant 64 : index
    %106 = vector.load %arg11[%c0_96, %c0_97, %c64_98] : memref<1x4x128xf32, #tpu.memory_space<vmem>>, vector<1x4x64xf32>
    %107 = vector.shape_cast %106 : vector<1x4x64xf32> to vector<4x64xf32>
    %108 = vector.shape_cast %105 : vector<4x64xf32> to vector<1x4x64xf32>
    tpu.vector_store %arg11[%c0_96, %c0_97, %c64_98], %108 {strides = array<i32>} : memref<1x4x128xf32, #tpu.memory_space<vmem>>, vector<1x4x64xf32>,
    return
  }
  func.func @transform_0(%arg0: i32) -> (i32, i32, i32) {
    %c0_i32 = arith.constant 0 : i32
    %c0_i32_0 = arith.constant 0 : i32
    %c0_i32_1 = arith.constant 0 : i32
    return %arg0, %c0_i32, %c0_i32_0 : i32, i32, i32
  }
  func.func @transform_1(%arg0: i32) -> (i32, i32, i32) {
    %c0_i32 = arith.constant 0 : i32
    %c0_i32_0 = arith.constant 0 : i32
    %c0_i32_1 = arith.constant 0 : i32
    return %arg0, %c0_i32, %c0_i32_0 : i32, i32, i32
  }
  func.func @transform_2(%arg0: i32) -> (i32, i32, i32) {
    %c0_i32 = arith.constant 0 : i32
    %c0_i32_0 = arith.constant 0 : i32
    %c0_i32_1 = arith.constant 0 : i32
    %c0_i32_2 = arith.constant 0 : i32
    return %c0_i32, %c0_i32_0, %c0_i32_1 : i32, i32, i32
  }
  func.func @transform_3(%arg0: i32) -> (i32, i32) {
    %c0_i32 = arith.constant 0 : i32
    %c0_i32_0 = arith.constant 0 : i32
    %c0_i32_1 = arith.constant 0 : i32
    return %c0_i32, %c0_i32_0 : i32, i32
  }
  func.func @transform_4(%arg0: i32) -> (i32, i32, i32) {
    %c0_i32 = arith.constant 0 : i32
    %c0_i32_0 = arith.constant 0 : i32
    %c0_i32_1 = arith.constant 0 : i32
    %c0_i32_2 = arith.constant 0 : i32
    return %c0_i32, %c0_i32_0, %c0_i32_1 : i32, i32, i32
  }
  func.func @transform_5(%arg0: i32) -> (i32, i32) {
    %c0_i32 = arith.constant 0 : i32
    %c0_i32_0 = arith.constant 0 : i32
    %c0_i32_1 = arith.constant 0 : i32
    return %c0_i32, %c0_i32_0 : i32, i32
  }
  func.func @transform_6(%arg0: i32) -> (i32, i32, i32) {
    %c0_i32 = arith.constant 0 : i32
    %c0_i32_0 = arith.constant 0 : i32
    %c0_i32_1 = arith.constant 0 : i32
    %c0_i32_2 = arith.constant 0 : i32
    return %c0_i32, %c0_i32_0, %c0_i32_1 : i32, i32, i32
  }
  func.func @transform_7(%arg0: i32) -> (i32, i32) {
    %c0_i32 = arith.constant 0 : i32
    %c0_i32_0 = arith.constant 0 : i32
    %c0_i32_1 = arith.constant 0 : i32
    return %c0_i32, %c0_i32_0 : i32, i32
  }
  func.func @transform_8(%arg0: i32) -> (i32, i32, i32) {
    %c0_i32 = arith.constant 0 : i32
    %c0_i32_0 = arith.constant 0 : i32
    %c0_i32_1 = arith.constant 0 : i32
    %c0_i32_2 = arith.constant 0 : i32
    return %c0_i32, %c0_i32_0, %c0_i32_1 : i32, i32, i32
  }
  func.func @transform_9(%arg0: i32) -> (i32, i32) {
    %c0_i32 = arith.constant 0 : i32
    %c0_i32_0 = arith.constant 0 : i32
    %c0_i32_1 = arith.constant 0 : i32
    return %c0_i32, %c0_i32_0 : i32, i32
  }
  func.func @transform_10(%arg0: i32) -> (i32, i32, i32) {
    %c0_i32 = arith.constant 0 : i32
    %c0_i32_0 = arith.constant 0 : i32
    %c0_i32_1 = arith.constant 0 : i32
    return %arg0, %c0_i32, %c0_i32_0 : i32, i32, i32
  }
}

</mosaic_0001>

<llo_original>
// kernel: custom-call.1
$region0: #{custom-call.1}
  %s0 = inlined_call_operand.hbm [shape: c64[2,1,16,16], index: 0, kind: input, shape index: {}]
  %s1 = inlined_call_operand.vmem [shape: f32[2,1,16,16], index: 1, kind: output, shape index: {}]
  %s2 = scalar_lea.hbm %s0, 512
  $region1: #{custom-call.1} parent=0
    #allocation0 [shape = 's32[1]{0}', space=sflag, size = 0x4, scoped, tag = 'scoped memory for custom-call.1']
    %3 = vsyncpa [#allocation0], 0
    %s4 = sshll.u32 %s1, 4
    %s5 = int_to_ptr.vmem [resolvable:$true] %s4
    %7 = dma.hbm_to_vmem [thread:$0]  %s2, 512, %s5, [#allocation0]
    %8 = dma.done [#allocation0], 512
    %9 = vsyncpa [#allocation0], 1

// kernel: custom-call
$region0: #{custom-call}
  %s0 = inlined_call_operand.hbm [shape: c64[2,1,16,16], index: 0, kind: input, shape index: {}]
  %s1 = inlined_call_operand.vmem [shape: f32[2,1,16,16], index: 1, kind: output, shape index: {}]
  $region1: #{custom-call} parent=0
    #allocation0 [shape = 's32[1]{0}', space=sflag, size = 0x4, scoped, tag = 'scoped memory for custom-call']
    %2 = vsyncpa [#allocation0], 0
    %s3 = sshll.u32 %s1, 4
    %s4 = int_to_ptr.vmem [resolvable:$true] %s3
    %6 = dma.hbm_to_vmem [thread:$0]  %s0, 512, %s4, [#allocation0]
    %7 = dma.done [#allocation0], 512
    %8 = vsyncpa [#allocation0], 1

// kernel: squeeze.2
$region0: #{squeeze.2}
  %s0 = inlined_call_operand.vmem [shape: f32[2,1,16,16], index: 0, kind: input, shape index: {}]
  %s1 = inlined_call_operand.vmem [shape: f32[2,4,4,4,4], index: 1, kind: output, shape index: {}]
  $region1: #{squeeze.2} parent=0
    #allocation0 [shape = 'u8[131072]{0}', space=vmem, size = 0x20000, scoped, tag = 'scoped mem for output reshape']
    %v2 = vld [vmem:[%s0] sm:$0xff]
    %vm3 = vcmask 31744
    %4 = vst.msk [vmem:[#allocation0] ss:$8 sm:$0xf] %vm3, %v2
    %5 = vst.msk [vmem:[#allocation0] ss:$8 sm:$0xf0] %vm3, %v2
    %s6 = scalar_lea.vmem %s0, 8
    %v7 = vld [vmem:[%s6] sm:$0xff]
    %vm8 = vcmask 31744
    %s9 = scalar_lea.vmem [#allocation0], 64
    %10 = vst.msk [vmem:[%s9] ss:$8 sm:$0xf] %vm8, %v7
    %s11 = scalar_lea.vmem [#allocation0], 64
    %12 = vst.msk [vmem:[%s11] ss:$8 sm:$0xf0] %vm8, %v7
    %s13 = scalar_lea.vmem %s0, 16
    %v14 = vld [vmem:[%s13] sm:$0xff]
    %vm15 = vcmask 31744
    %s16 = scalar_lea.vmem [#allocation0], 128
    %17 = vst.msk [vmem:[%s16] ss:$8 sm:$0xf] %vm15, %v14
    %s18 = scalar_lea.vmem [#allocation0], 128
    %19 = vst.msk [vmem:[%s18] ss:$8 sm:$0xf0] %vm15, %v14
    %s20 = scalar_lea.vmem %s0, 24
    %v21 = vld [vmem:[%s20] sm:$0xff]
    %vm22 = vcmask 31744
    %s23 = scalar_lea.vmem [#allocation0], 192
    %24 = vst.msk [vmem:[%s23] ss:$8 sm:$0xf] %vm22, %v21
    %s25 = scalar_lea.vmem [#allocation0], 192
    %26 = vst.msk [vmem:[%s25] ss:$8 sm:$0xf0] %vm22, %v21
    %v27 = vld [vmem:[%s0] sm:$0xff]
    %28 = vrot.lane.b32.xlu0 %v27, 124
    %v29 = vpop.permute.xlu0 %28
    %vm30 = vcmask 31744
    %s31 = scalar_lea.vmem [#allocation0], 1
    %32 = vst.msk [vmem:[%s31] ss:$8 sm:$0xf] %vm30, %v29
    %s33 = scalar_lea.vmem [#allocation0], 1
    %34 = vst.msk [vmem:[%s33] ss:$8 sm:$0xf0] %vm30, %v29
    %s35 = scalar_lea.vmem %s0, 8
    %v36 = vld [vmem:[%s35] sm:$0xff]
    %37 = vrot.lane.b32.xlu0 %v36, 124
    %v38 = vpop.permute.xlu0 %37
    %vm39 = vcmask 31744
    %s40 = scalar_lea.vmem [#allocation0], 65
    %41 = vst.msk [vmem:[%s40] ss:$8 sm:$0xf] %vm39, %v38
    %s42 = scalar_lea.vmem [#allocation0], 65
    %43 = vst.msk [vmem:[%s42] ss:$8 sm:$0xf0] %vm39, %v38
    %s44 = scalar_lea.vmem %s0, 16
    %v45 = vld [vmem:[%s44] sm:$0xff]
    %46 = vrot.lane.b32.xlu0 %v45, 124
    %v47 = vpop.permute.xlu0 %46
    %vm48 = vcmask 31744
    %s49 = scalar_lea.vmem [#allocation0], 129
    %50 = vst.msk [vmem:[%s49] ss:$8 sm:$0xf] %vm48, %v47
    %s51 = scalar_lea.vmem [#allocation0], 129
    %52 = vst.msk [vmem:[%s51] ss:$8 sm:$0xf0] %vm48, %v47
    %s53 = scalar_lea.vmem %s0, 24
    %v54 = vld [vmem:[%s53] sm:$0xff]
    %55 = vrot.lane.b32.xlu0 %v54, 124
    %v56 = vpop.permute.xlu0 %55
    %vm57 = vcmask 31744
    %s58 = scalar_lea.vmem [#allocation0], 193
    %59 = vst.msk [vmem:[%s58] ss:$8 sm:$0xf] %vm57, %v56
    %s60 = scalar_lea.vmem [#allocation0], 193
    %61 = vst.msk [vmem:[%s60] ss:$8 sm:$0xf0] %vm57, %v56
    %v62 = vld [vmem:[%s0] sm:$0xff]
    %63 = vrot.lane.b32.xlu0 %v62, 120
    %v64 = vpop.permute.xlu0 %63
    %vm65 = vcmask 31744
    %s66 = scalar_lea.vmem [#allocation0], 2
    %67 = vst.msk [vmem:[%s66] ss:$8 sm:$0xf] %vm65, %v64
    %s68 = scalar_lea.vmem [#allocation0], 2
    %69 = vst.msk [vmem:[%s68] ss:$8 sm:$0xf0] %vm65, %v64
    %s70 = scalar_lea.vmem %s0, 8
    %v71 = vld [vmem:[%s70] sm:$0xff]
    %72 = vrot.lane.b32.xlu0 %v71, 120
    %v73 = vpop.permute.xlu0 %72
    %vm74 = vcmask 31744
    %s75 = scalar_lea.vmem [#allocation0], 66
    %76 = vst.msk [vmem:[%s75] ss:$8 sm:$0xf] %vm74, %v73
    %s77 = scalar_lea.vmem [#allocation0], 66
    %78 = vst.msk [vmem:[%s77] ss:$8 sm:$0xf0] %vm74, %v73
    %s79 = scalar_lea.vmem %s0, 16
    %v80 = vld [vmem:[%s79] sm:$0xff]
    %81 = vrot.lane.b32.xlu0 %v80, 120
    %v82 = vpop.permute.xlu0 %81
    %vm83 = vcmask 31744
    %s84 = scalar_lea.vmem [#allocation0], 130
    %85 = vst.msk [vmem:[%s84] ss:$8 sm:$0xf] %vm83, %v82
    %s86 = scalar_lea.vmem [#allocation0], 130
    %87 = vst.msk [vmem:[%s86] ss:$8 sm:$0xf0] %vm83, %v82
    %s88 = scalar_lea.vmem %s0, 24
    %v89 = vld [vmem:[%s88] sm:$0xff]
    %90 = vrot.lane.b32.xlu0 %v89, 120
    %v91 = vpop.permute.xlu0 %90
    %vm92 = vcmask 31744
    %s93 = scalar_lea.vmem [#allocation0], 194
    %94 = vst.msk [vmem:[%s93] ss:$8 sm:$0xf] %vm92, %v91
    %s95 = scalar_lea.vmem [#allocation0], 194
    %96 = vst.msk [vmem:[%s95] ss:$8 sm:$0xf0] %vm92, %v91
    %v97 = vld [vmem:[%s0] sm:$0xff]
    %98 = vrot.lane.b32.xlu0 %v97, 116
    %v99 = vpop.permute.xlu0 %98
    %vm100 = vcmask 31744
    %s101 = scalar_lea.vmem [#allocation0], 3
    %102 = vst.msk [vmem:[%s101] ss:$8 sm:$0xf] %vm100, %v99
    %s103 = scalar_lea.vmem [#allocation0], 3
    %104 = vst.msk [vmem:[%s103] ss:$8 sm:$0xf0] %vm100, %v99
    %s105 = scalar_lea.vmem %s0, 8
    %v106 = vld [vmem:[%s105] sm:$0xff]
    %107 = vrot.lane.b32.xlu0 %v106, 116
    %v108 = vpop.permute.xlu0 %107
    %vm109 = vcmask 31744
    %s110 = scalar_lea.vmem [#allocation0], 67
    %111 = vst.msk [vmem:[%s110] ss:$8 sm:$0xf] %vm109, %v108
    %s112 = scalar_lea.vmem [#allocation0], 67
    %113 = vst.msk [vmem:[%s112] ss:$8 sm:$0xf0] %vm109, %v108
    %s114 = scalar_lea.vmem %s0, 16
    %v115 = vld [vmem:[%s114] sm:$0xff]
    %116 = vrot.lane.b32.xlu0 %v115, 116
    %v117 = vpop.permute.xlu0 %116
    %vm118 = vcmask 31744
    %s119 = scalar_lea.vmem [#allocation0], 131
    %120 = vst.msk [vmem:[%s119] ss:$8 sm:$0xf] %vm118, %v117
    %s121 = scalar_lea.vmem [#allocation0], 131
    %122 = vst.msk [vmem:[%s121] ss:$8 sm:$0xf0] %vm118, %v117
    %s123 = scalar_lea.vmem %s0, 24
    %v124 = vld [vmem:[%s123] sm:$0xff]
    %125 = vrot.lane.b32.xlu0 %v124, 116
    %v126 = vpop.permute.xlu0 %125
    %vm127 = vcmask 31744
    %s128 = scalar_lea.vmem [#allocation0], 195
    %129 = vst.msk [vmem:[%s128] ss:$8 sm:$0xf] %vm127, %v126
    %s130 = scalar_lea.vmem [#allocation0], 195
    %131 = vst.msk [vmem:[%s130] ss:$8 sm:$0xf0] %vm127, %v126
    %s133 = sshll.u32 1, 4
    %s134 = ssub.s32 %s133, 1
    %v136 = vld [vmem:[#allocation0] sm:%s134]
    %s137 = sshll.u32 1, 4
    %s138 = ssub.s32 %s137, 1
    %139 = vst [vmem:[%s1] sm:%s138] %v136
    %s140 = scalar_lea.vmem [#allocation0], 8
    %v141 = vld [vmem:[%s140] sm:%s134]
    %s142 = sshll.u32 1, 4
    %s143 = ssub.s32 %s142, 1
    %s144 = scalar_lea.vmem %s1, 4
    %145 = vst [vmem:[%s144] sm:%s143] %v141
    %s146 = scalar_lea.vmem [#allocation0], 16
    %v147 = vld [vmem:[%s146] sm:%s134]
    %s148 = sshll.u32 1, 4
    %s149 = ssub.s32 %s148, 1
    %s150 = smul.addr 4, 2
    %s151 = scalar_lea.vmem %s1, %s150
    %152 = vst [vmem:[%s151] sm:%s149] %v147
    %s153 = scalar_lea.vmem [#allocation0], 24
    %v154 = vld [vmem:[%s153] sm:%s134]
    %s155 = sshll.u32 1, 4
    %s156 = ssub.s32 %s155, 1
    %s157 = smul.addr 4, 3
    %s158 = scalar_lea.vmem %s1, %s157
    %159 = vst [vmem:[%s158] sm:%s156] %v154
    %s160 = scalar_lea.vmem [#allocation0], 32
    %v161 = vld [vmem:[%s160] sm:%s134]
    %s162 = sshll.u32 1, 4
    %s163 = ssub.s32 %s162, 1
    %s164 = smul.addr 4, 4
    %s165 = scalar_lea.vmem %s1, %s164
    %166 = vst [vmem:[%s165] sm:%s163] %v161
    %s167 = scalar_lea.vmem [#allocation0], 40
    %v168 = vld [vmem:[%s167] sm:%s134]
    %s169 = sshll.u32 1, 4
    %s170 = ssub.s32 %s169, 1
    %s171 = smul.addr 4, 5
    %s172 = scalar_lea.vmem %s1, %s171
    %173 = vst [vmem:[%s172] sm:%s170] %v168
    %s174 = scalar_lea.vmem [#allocation0], 48
    %v175 = vld [vmem:[%s174] sm:%s134]
    %s176 = sshll.u32 1, 4
    %s177 = ssub.s32 %s176, 1
    %s178 = smul.addr 4, 6
    %s179 = scalar_lea.vmem %s1, %s178
    %180 = vst [vmem:[%s179] sm:%s177] %v175
    %s181 = scalar_lea.vmem [#allocation0], 56
    %v182 = vld [vmem:[%s181] sm:%s134]
    %s183 = sshll.u32 1, 4
    %s184 = ssub.s32 %s183, 1
    %s185 = smul.addr 4, 7
    %s186 = scalar_lea.vmem %s1, %s185
    %187 = vst [vmem:[%s186] sm:%s184] %v182
    %s188 = scalar_lea.vmem [#allocation0], 64
    %v189 = vld [vmem:[%s188] sm:%s134]
    %s190 = sshll.u32 1, 4
    %s191 = ssub.s32 %s190, 1
    %s192 = smul.addr 4, 8
    %s193 = scalar_lea.vmem %s1, %s192
    %194 = vst [vmem:[%s193] sm:%s191] %v189
    %s195 = scalar_lea.vmem [#allocation0], 72
    %v196 = vld [vmem:[%s195] sm:%s134]
    %s197 = sshll.u32 1, 4
    %s198 = ssub.s32 %s197, 1
    %s199 = smul.addr 4, 9
    %s200 = scalar_lea.vmem %s1, %s199
    %201 = vst [vmem:[%s200] sm:%s198] %v196
    %s202 = scalar_lea.vmem [#allocation0], 80
    %v203 = vld [vmem:[%s202] sm:%s134]
    %s204 = sshll.u32 1, 4
    %s205 = ssub.s32 %s204, 1
    %s206 = smul.addr 4, 10
    %s207 = scalar_lea.vmem %s1, %s206
    %208 = vst [vmem:[%s207] sm:%s205] %v203
    %s209 = scalar_lea.vmem [#allocation0], 88
    %v210 = vld [vmem:[%s209] sm:%s134]
    %s211 = sshll.u32 1, 4
    %s212 = ssub.s32 %s211, 1
    %s213 = smul.addr 4, 11
    %s214 = scalar_lea.vmem %s1, %s213
    %215 = vst [vmem:[%s214] sm:%s212] %v210
    %s216 = scalar_lea.vmem [#allocation0], 96
    %v217 = vld [vmem:[%s216] sm:%s134]
    %s218 = sshll.u32 1, 4
    %s219 = ssub.s32 %s218, 1
    %s220 = smul.addr 4, 12
    %s221 = scalar_lea.vmem %s1, %s220
    %222 = vst [vmem:[%s221] sm:%s219] %v217
    %s223 = scalar_lea.vmem [#allocation0], 104
    %v224 = vld [vmem:[%s223] sm:%s134]
    %s225 = sshll.u32 1, 4
    %s226 = ssub.s32 %s225, 1
    %s227 = smul.addr 4, 13
    %s228 = scalar_lea.vmem %s1, %s227
    %229 = vst [vmem:[%s228] sm:%s226] %v224
    %s230 = scalar_lea.vmem [#allocation0], 112
    %v231 = vld [vmem:[%s230] sm:%s134]
    %s232 = sshll.u32 1, 4
    %s233 = ssub.s32 %s232, 1
    %s234 = smul.addr 4, 14
    %s235 = scalar_lea.vmem %s1, %s234
    %236 = vst [vmem:[%s235] sm:%s233] %v231
    %s237 = scalar_lea.vmem [#allocation0], 120
    %v238 = vld [vmem:[%s237] sm:%s134]
    %s239 = sshll.u32 1, 4
    %s240 = ssub.s32 %s239, 1
    %s241 = smul.addr 4, 15
    %s242 = scalar_lea.vmem %s1, %s241
    %243 = vst [vmem:[%s242] sm:%s240] %v238
    %s244 = scalar_lea.vmem [#allocation0], 128
    %v245 = vld [vmem:[%s244] sm:%s134]
    %s246 = sshll.u32 1, 4
    %s247 = ssub.s32 %s246, 1
    %s248 = smul.addr 4, 16
    %s249 = scalar_lea.vmem %s1, %s248
    %250 = vst [vmem:[%s249] sm:%s247] %v245
    %s251 = scalar_lea.vmem [#allocation0], 136
    %v252 = vld [vmem:[%s251] sm:%s134]
    %s253 = sshll.u32 1, 4
    %s254 = ssub.s32 %s253, 1
    %s255 = smul.addr 4, 17
    %s256 = scalar_lea.vmem %s1, %s255
    %257 = vst [vmem:[%s256] sm:%s254] %v252
    %s258 = scalar_lea.vmem [#allocation0], 144
    %v259 = vld [vmem:[%s258] sm:%s134]
    %s260 = sshll.u32 1, 4
    %s261 = ssub.s32 %s260, 1
    %s262 = smul.addr 4, 18
    %s263 = scalar_lea.vmem %s1, %s262
    %264 = vst [vmem:[%s263] sm:%s261] %v259
    %s265 = scalar_lea.vmem [#allocation0], 152
    %v266 = vld [vmem:[%s265] sm:%s134]
    %s267 = sshll.u32 1, 4
    %s268 = ssub.s32 %s267, 1
    %s269 = smul.addr 4, 19
    %s270 = scalar_lea.vmem %s1, %s269
    %271 = vst [vmem:[%s270] sm:%s268] %v266
    %s272 = scalar_lea.vmem [#allocation0], 160
    %v273 = vld [vmem:[%s272] sm:%s134]
    %s274 = sshll.u32 1, 4
    %s275 = ssub.s32 %s274, 1
    %s276 = smul.addr 4, 20
    %s277 = scalar_lea.vmem %s1, %s276
    %278 = vst [vmem:[%s277] sm:%s275] %v273
    %s279 = scalar_lea.vmem [#allocation0], 168
    %v280 = vld [vmem:[%s279] sm:%s134]
    %s281 = sshll.u32 1, 4
    %s282 = ssub.s32 %s281, 1
    %s283 = smul.addr 4, 21
    %s284 = scalar_lea.vmem %s1, %s283
    %285 = vst [vmem:[%s284] sm:%s282] %v280
    %s286 = scalar_lea.vmem [#allocation0], 176
    %v287 = vld [vmem:[%s286] sm:%s134]
    %s288 = sshll.u32 1, 4
    %s289 = ssub.s32 %s288, 1
    %s290 = smul.addr 4, 22
    %s291 = scalar_lea.vmem %s1, %s290
    %292 = vst [vmem:[%s291] sm:%s289] %v287
    %s293 = scalar_lea.vmem [#allocation0], 184
    %v294 = vld [vmem:[%s293] sm:%s134]
    %s295 = sshll.u32 1, 4
    %s296 = ssub.s32 %s295, 1
    %s297 = smul.addr 4, 23
    %s298 = scalar_lea.vmem %s1, %s297
    %299 = vst [vmem:[%s298] sm:%s296] %v294
    %s300 = scalar_lea.vmem [#allocation0], 192
    %v301 = vld [vmem:[%s300] sm:%s134]
    %s302 = sshll.u32 1, 4
    %s303 = ssub.s32 %s302, 1
    %s304 = smul.addr 4, 24
    %s305 = scalar_lea.vmem %s1, %s304
    %306 = vst [vmem:[%s305] sm:%s303] %v301
    %s307 = scalar_lea.vmem [#allocation0], 200
    %v308 = vld [vmem:[%s307] sm:%s134]
    %s309 = sshll.u32 1, 4
    %s310 = ssub.s32 %s309, 1
    %s311 = smul.addr 4, 25
    %s312 = scalar_lea.vmem %s1, %s311
    %313 = vst [vmem:[%s312] sm:%s310] %v308
    %s314 = scalar_lea.vmem [#allocation0], 208
    %v315 = vld [vmem:[%s314] sm:%s134]
    %s316 = sshll.u32 1, 4
    %s317 = ssub.s32 %s316, 1
    %s318 = smul.addr 4, 26
    %s319 = scalar_lea.vmem %s1, %s318
    %320 = vst [vmem:[%s319] sm:%s317] %v315
    %s321 = scalar_lea.vmem [#allocation0], 216
    %v322 = vld [vmem:[%s321] sm:%s134]
    %s323 = sshll.u32 1, 4
    %s324 = ssub.s32 %s323, 1
    %s325 = smul.addr 4, 27
    %s326 = scalar_lea.vmem %s1, %s325
    %327 = vst [vmem:[%s326] sm:%s324] %v322
    %s328 = scalar_lea.vmem [#allocation0], 224
    %v329 = vld [vmem:[%s328] sm:%s134]
    %s330 = sshll.u32 1, 4
    %s331 = ssub.s32 %s330, 1
    %s332 = smul.addr 4, 28
    %s333 = scalar_lea.vmem %s1, %s332
    %334 = vst [vmem:[%s333] sm:%s331] %v329
    %s335 = scalar_lea.vmem [#allocation0], 232
    %v336 = vld [vmem:[%s335] sm:%s134]
    %s337 = sshll.u32 1, 4
    %s338 = ssub.s32 %s337, 1
    %s339 = smul.addr 4, 29
    %s340 = scalar_lea.vmem %s1, %s339
    %341 = vst [vmem:[%s340] sm:%s338] %v336
    %s342 = scalar_lea.vmem [#allocation0], 240
    %v343 = vld [vmem:[%s342] sm:%s134]
    %s344 = sshll.u32 1, 4
    %s345 = ssub.s32 %s344, 1
    %s346 = smul.addr 4, 30
    %s347 = scalar_lea.vmem %s1, %s346
    %348 = vst [vmem:[%s347] sm:%s345] %v343
    %s349 = scalar_lea.vmem [#allocation0], 248
    %v350 = vld [vmem:[%s349] sm:%s134]
    %s351 = sshll.u32 1, 4
    %s352 = ssub.s32 %s351, 1
    %s353 = smul.addr 4, 31
    %s354 = scalar_lea.vmem %s1, %s353
    %355 = vst [vmem:[%s354] sm:%s352] %v350

// kernel: custom-call.2
$region0: #{custom-call.2}
  %s0 = inlined_call_operand.vmem [shape: f32[2,1,16,16], index: 0, kind: input, shape index: {}]
  %s1 = inlined_call_operand.vmem [shape: f32[2,1,16,16], index: 1, kind: input, shape index: {}]
  %s2 = inlined_call_operand.hbm [shape: c64[2,1,16,16], index: 2, kind: output, shape index: {}]
  %s3 = scalar_lea.hbm %s2, 512
  $region1: #{custom-call.2} parent=0
    #allocation0 [shape = 's32[1]{0}', space=sflag, size = 0x4, scoped, tag = 'scoped memory for custom-call.2']
    %4 = vsyncpa [#allocation0], 0
    %s5 = sshll.u32 %s0, 4
    %s6 = int_to_ptr.vmem [resolvable:$true] %s5
    %8 = dma.vmem_to_hbm [thread:$0]  %s6, 512, %s2, [#allocation0]
    %9 = dma.done [#allocation0], 512
    %10 = vsyncpa [#allocation0], 1
  $region2: #{custom-call.2} parent=0
    #allocation1 [shape = 's32[1]{0}', space=sflag, size = 0x4, scoped, tag = 'scoped memory for custom-call.2']
    %11 = vsyncpa [#allocation1], 0
    %s12 = sshll.u32 %s1, 4
    %s13 = int_to_ptr.vmem [resolvable:$true] %s12
    %15 = dma.vmem_to_hbm [thread:$0]  %s13, 512, %s3, [#allocation1]
    %16 = dma.done [#allocation1], 512
    %17 = vsyncpa [#allocation1], 1

// kernel: phase_init_network.1
$region0: #{phase_init_network.1}
  #allocation0 [shape = 'u32[]', space=smem, size = 0x4, offset = 0x4, fixed_abs, tag = 'smem constant byte address 0x4 - core index']
  #allocation1 [shape = 'u32[144,128]{1,0:T(1,128)}', space=vmem, size = 0x12000, scoped, tag = 'internal scratch']
  #allocation2 [shape = 'f32[5,320]{1,0:T(8,128)}', space=vmem, size = 0x3000, scoped, tag = 'scratch operand']
  #allocation3 [shape = 'f32[6,192]{1,0:T(8,128)}', space=vmem, size = 0x2000, scoped, tag = 'scratch operand']
  #allocation4 [shape = 'f32[6,384]{1,0:T(8,128)}', space=vmem, size = 0x3000, scoped, tag = 'scratch operand']
  %s0 = inlined_call_operand.vmem [shape: f32[2,5,160], index: 0, kind: input, shape index: {}]
  %s1 = inlined_call_operand.vmem [shape: f32[2,4,64], index: 1, kind: input, shape index: {}]
  %s2 = inlined_call_operand.vmem [shape: f32[2,160,256], index: 2, kind: input, shape index: {}]
  %s3 = inlined_call_operand.vmem [shape: f32[1,256], index: 3, kind: input, shape index: {}]
  %s4 = inlined_call_operand.hbm [shape: f32[2,320,128], index: 4, kind: input, shape index: {}]
  %s5 = inlined_call_operand.vmem [shape: f32[1,128], index: 5, kind: input, shape index: {}]
  %s6 = inlined_call_operand.vmem [shape: f32[3,192,256], index: 6, kind: input, shape index: {}]
  %s7 = inlined_call_operand.vmem [shape: f32[1,256], index: 7, kind: input, shape index: {}]
  %s8 = inlined_call_operand.hbm [shape: f32[3,384,128], index: 8, kind: input, shape index: {}]
  %s9 = inlined_call_operand.vmem [shape: f32[1,128], index: 9, kind: input, shape index: {}]
  %s10 = inlined_call_operand.vmem [shape: f32[2,4,128], index: 10, kind: output, shape index: {}]
  %s11 = sld [smem:[#allocation0]]
  $region81: #{phase_init_network.1} parent=0
    _
  %s13 = ssub.s32 1, %s11
  %s14 = scalar_select 0, %s13, %s11
  $region1: #{phase_init_network.1} parent=0
    #allocation5 [shape = 'u8[327680]{0}', space=vmem, size = 0x50000, scoped, tag = 'input window, operand 4, single buffered']
    #allocation6 [shape = 's32[2]{0}', space=sflag, size = 0x8, scoped, tag = 'scoped memory for phase_init_network.1']
    #allocation7 [shape = 'u8[589824]{0}', space=vmem, size = 0x90000, scoped, tag = 'input window, operand 8, single buffered']
    #allocation8 [shape = 's32[1]{0}', space=sflag, size = 0x4, scoped, tag = 'scoped memory for phase_init_network.1']
    %15 = vsyncpa [#allocation6], 0
    %16 = vsyncpa [#allocation8], 0
    loop: start=0, step=1, limit=4
    $region2: #{phase_init_network.1} parent=1 // loop_pre_header
      _
    $region3: #{phase_init_network.1} parent=1 // loop_header
      %s18 = sphi 0, %s22
      %p19 = scmp.ge.s32.totalorder %s18, 4
      %s28 = sphi 0, %s30
      %s31 = sphi 0, %s28
      %s32 = sphi 0, %s31
      %s48 = sphi 0, %s32
      %s54 = sphi 0, %s56
      %s57 = sphi 0, %s54
      %s58 = sphi 0, %s57
      %s74 = sphi 0, %s58
      %s78 = sphi 0, %s78
      %s80 = sphi 0, %s78
      %s81 = sphi 0, %s80
      %s95 = sphi 0, %s81
      %s99 = sphi 0, %s99
      %s101 = sphi 0, %s99
      %s102 = sphi 0, %s101
      %s116 = sphi 0, %s102
      %s120 = sphi 0, %s120
      %s122 = sphi 0, %s120
      %s123 = sphi 0, %s122
      %s137 = sphi 0, %s123
      %s141 = sphi 0, %s141
      %s143 = sphi 0, %s141
      %s144 = sphi 0, %s143
      %s158 = sphi 0, %s144
      %s162 = sphi 0, %s162
      %s164 = sphi 0, %s162
      %s165 = sphi 0, %s164
      %s179 = sphi 0, %s165
      %s183 = sphi 0, %s183
      %s185 = sphi 0, %s183
      %s186 = sphi 0, %s185
      %s200 = sphi 0, %s186
      %s204 = sphi 0, %s204
      %s206 = sphi 0, %s204
      %s207 = sphi 0, %s206
      %s221 = sphi 0, %s207
      %s225 = sphi 0, %s225
      %s227 = sphi 0, %s225
      %s228 = sphi 0, %s227
      %s242 = sphi 0, %s228
      %s248 = sphi 0, %s250
      %s251 = sphi 0, %s248
      %s252 = sphi 0, %s251
      %s268 = sphi 0, %s252
    $region4: #{phase_init_network.1} parent=1 // loop_header_branch
      %21 = sbr.rel (%p19) target = $region8
    $region5: #{phase_init_network.1} parent=1 // loop_body
      %s23 = ssub.s32 %s18, 1
      %s24 = ssub.s32 %s18, 2
      %s25 = sadd.s32 %s18, 1
      %s26 = ssub.s32 %s18, %s25
      %p27 = scmp.eq.s32.totalorder %s26, 0
      %s29 = sadd.s32 %s28, 1
      %s30 = scalar_select %p27, %s28, %s29
      %p33 = pneg %p27
      %p34 = scmp.eq.s32.totalorder %s18, 1
      %p35 = por %p33, %p34
      %p36 = scmp.ne.s32.totalorder %s28, %s31
      %p37 = scmp.eq.s32.totalorder %s18, 0
      %p38 = por %p36, %p37
      %p39 = scmp.ne.s32.totalorder %s28, %s31
      %p40 = scmp.eq.s32.totalorder %s23, 1
      %p41 = por %p39, %p40
      %p42 = scmp.ne.s32.totalorder %s31, %s32
      %p43 = scmp.eq.s32.totalorder %s23, 0
      %p44 = por %p42, %p43
      %p45 = scmp.ne.s32.totalorder %s31, %s32
      %p46 = scmp.eq.s32.totalorder %s24, 1
      %p47 = por %p45, %p46
      %p49 = scmp.ne.s32.totalorder %s32, %s48
      %p50 = scmp.eq.s32.totalorder %s24, 0
      %p51 = por %p49, %p50
      %s52 = ssub.s32 %s18, %s25
      %p53 = scmp.eq.s32.totalorder %s52, 0
      %s55 = sadd.s32 %s54, 1
      %s56 = scalar_select %p53, %s54, %s55
      %p59 = pneg %p53
      %p60 = scmp.eq.s32.totalorder %s18, 1
      %p61 = por %p59, %p60
      %p62 = scmp.ne.s32.totalorder %s54, %s57
      %p63 = scmp.eq.s32.totalorder %s18, 0
      %p64 = por %p62, %p63
      %p65 = scmp.ne.s32.totalorder %s54, %s57
      %p66 = scmp.eq.s32.totalorder %s23, 1
      %p67 = por %p65, %p66
      %p68 = scmp.ne.s32.totalorder %s57, %s58
      %p69 = scmp.eq.s32.totalorder %s23, 0
      %p70 = por %p68, %p69
      %p71 = scmp.ne.s32.totalorder %s57, %s58
      %p72 = scmp.eq.s32.totalorder %s24, 1
      %p73 = por %p71, %p72
      %p75 = scmp.ne.s32.totalorder %s58, %s74
      %p76 = scmp.eq.s32.totalorder %s24, 0
      %p77 = por %p75, %p76
      %s79 = sadd.s32 %s78, 1
      %p82 = scmp.eq.s32.totalorder %s18, 1
      %p83 = scmp.ne.s32.totalorder %s78, %s80
      %p84 = scmp.eq.s32.totalorder %s18, 0
      %p85 = por %p83, %p84
      %p86 = scmp.ne.s32.totalorder %s78, %s80
      %p87 = scmp.eq.s32.totalorder %s23, 1
      %p88 = por %p86, %p87
      %p89 = scmp.ne.s32.totalorder %s80, %s81
      %p90 = scmp.eq.s32.totalorder %s23, 0
      %p91 = por %p89, %p90
      %p92 = scmp.ne.s32.totalorder %s80, %s81
      %p93 = scmp.eq.s32.totalorder %s24, 1
      %p94 = por %p92, %p93
      %p96 = scmp.ne.s32.totalorder %s81, %s95
      %p97 = scmp.eq.s32.totalorder %s24, 0
      %p98 = por %p96, %p97
      %s100 = sadd.s32 %s99, 1
      %p103 = scmp.eq.s32.totalorder %s18, 1
      %p104 = scmp.ne.s32.totalorder %s99, %s101
      %p105 = scmp.eq.s32.totalorder %s18, 0
      %p106 = por %p104, %p105
      %p107 = scmp.ne.s32.totalorder %s99, %s101
      %p108 = scmp.eq.s32.totalorder %s23, 1
      %p109 = por %p107, %p108
      %p110 = scmp.ne.s32.totalorder %s101, %s102
      %p111 = scmp.eq.s32.totalorder %s23, 0
      %p112 = por %p110, %p111
      %p113 = scmp.ne.s32.totalorder %s101, %s102
      %p114 = scmp.eq.s32.totalorder %s24, 1
      %p115 = por %p113, %p114
      %p117 = scmp.ne.s32.totalorder %s102, %s116
      %p118 = scmp.eq.s32.totalorder %s24, 0
      %p119 = por %p117, %p118
      %s121 = sadd.s32 %s120, 1
      %p124 = scmp.eq.s32.totalorder %s18, 1
      %p125 = scmp.ne.s32.totalorder %s120, %s122
      %p126 = scmp.eq.s32.totalorder %s18, 0
      %p127 = por %p125, %p126
      %p128 = scmp.ne.s32.totalorder %s120, %s122
      %p129 = scmp.eq.s32.totalorder %s23, 1
      %p130 = por %p128, %p129
      %p131 = scmp.ne.s32.totalorder %s122, %s123
      %p132 = scmp.eq.s32.totalorder %s23, 0
      %p133 = por %p131, %p132
      %p134 = scmp.ne.s32.totalorder %s122, %s123
      %p135 = scmp.eq.s32.totalorder %s24, 1
      %p136 = por %p134, %p135
      %p138 = scmp.ne.s32.totalorder %s123, %s137
      %p139 = scmp.eq.s32.totalorder %s24, 0
      %p140 = por %p138, %p139
      %s142 = sadd.s32 %s141, 1
      %p145 = scmp.eq.s32.totalorder %s18, 1
      %p146 = scmp.ne.s32.totalorder %s141, %s143
      %p147 = scmp.eq.s32.totalorder %s18, 0
      %p148 = por %p146, %p147
      %p149 = scmp.ne.s32.totalorder %s141, %s143
      %p150 = scmp.eq.s32.totalorder %s23, 1
      %p151 = por %p149, %p150
      %p152 = scmp.ne.s32.totalorder %s143, %s144
      %p153 = scmp.eq.s32.totalorder %s23, 0
      %p154 = por %p152, %p153
      %p155 = scmp.ne.s32.totalorder %s143, %s144
      %p156 = scmp.eq.s32.totalorder %s24, 1
      %p157 = por %p155, %p156
      %p159 = scmp.ne.s32.totalorder %s144, %s158
      %p160 = scmp.eq.s32.totalorder %s24, 0
      %p161 = por %p159, %p160
      %s163 = sadd.s32 %s162, 1
      %p166 = scmp.eq.s32.totalorder %s18, 1
      %p167 = scmp.ne.s32.totalorder %s162, %s164
      %p168 = scmp.eq.s32.totalorder %s18, 0
      %p169 = por %p167, %p168
      %p170 = scmp.ne.s32.totalorder %s162, %s164
      %p171 = scmp.eq.s32.totalorder %s23, 1
      %p172 = por %p170, %p171
      %p173 = scmp.ne.s32.totalorder %s164, %s165
      %p174 = scmp.eq.s32.totalorder %s23, 0
      %p175 = por %p173, %p174
      %p176 = scmp.ne.s32.totalorder %s164, %s165
      %p177 = scmp.eq.s32.totalorder %s24, 1
      %p178 = por %p176, %p177
      %p180 = scmp.ne.s32.totalorder %s165, %s179
      %p181 = scmp.eq.s32.totalorder %s24, 0
      %p182 = por %p180, %p181
      %s184 = sadd.s32 %s183, 1
      %p187 = scmp.eq.s32.totalorder %s18, 1
      %p188 = scmp.ne.s32.totalorder %s183, %s185
      %p189 = scmp.eq.s32.totalorder %s18, 0
      %p190 = por %p188, %p189
      %p191 = scmp.ne.s32.totalorder %s183, %s185
      %p192 = scmp.eq.s32.totalorder %s23, 1
      %p193 = por %p191, %p192
      %p194 = scmp.ne.s32.totalorder %s185, %s186
      %p195 = scmp.eq.s32.totalorder %s23, 0
      %p196 = por %p194, %p195
      %p197 = scmp.ne.s32.totalorder %s185, %s186
      %p198 = scmp.eq.s32.totalorder %s24, 1
      %p199 = por %p197, %p198
      %p201 = scmp.ne.s32.totalorder %s186, %s200
      %p202 = scmp.eq.s32.totalorder %s24, 0
      %p203 = por %p201, %p202
      %s205 = sadd.s32 %s204, 1
      %p208 = scmp.eq.s32.totalorder %s18, 1
      %p209 = scmp.ne.s32.totalorder %s204, %s206
      %p210 = scmp.eq.s32.totalorder %s18, 0
      %p211 = por %p209, %p210
      %p212 = scmp.ne.s32.totalorder %s204, %s206
      %p213 = scmp.eq.s32.totalorder %s23, 1
      %p214 = por %p212, %p213
      %p215 = scmp.ne.s32.totalorder %s206, %s207
      %p216 = scmp.eq.s32.totalorder %s23, 0
      %p217 = por %p215, %p216
      %p218 = scmp.ne.s32.totalorder %s206, %s207
      %p219 = scmp.eq.s32.totalorder %s24, 1
      %p220 = por %p218, %p219
      %p222 = scmp.ne.s32.totalorder %s207, %s221
      %p223 = scmp.eq.s32.totalorder %s24, 0
      %p224 = por %p222, %p223
      %s226 = sadd.s32 %s225, 1
      %p229 = scmp.eq.s32.totalorder %s18, 1
      %p230 = scmp.ne.s32.totalorder %s225, %s227
      %p231 = scmp.eq.s32.totalorder %s18, 0
      %p232 = por %p230, %p231
      %p233 = scmp.ne.s32.totalorder %s225, %s227
      %p234 = scmp.eq.s32.totalorder %s23, 1
      %p235 = por %p233, %p234
      %p236 = scmp.ne.s32.totalorder %s227, %s228
      %p237 = scmp.eq.s32.totalorder %s23, 0
      %p238 = por %p236, %p237
      %p239 = scmp.ne.s32.totalorder %s227, %s228
      %p240 = scmp.eq.s32.totalorder %s24, 1
      %p241 = por %p239, %p240
      %p243 = scmp.ne.s32.totalorder %s228, %s242
      %p244 = scmp.eq.s32.totalorder %s24, 0
      %p245 = por %p243, %p244
      %s246 = ssub.s32 %s18, %s25
      %p247 = scmp.eq.s32.totalorder %s246, 0
      %s249 = sadd.s32 %s248, 1
      %s250 = scalar_select %p247, %s248, %s249
      %p253 = pneg %p247
      %p254 = scmp.eq.s32.totalorder %s18, 1
      %p255 = por %p253, %p254
      %p256 = scmp.ne.s32.totalorder %s248, %s251
      %p257 = scmp.eq.s32.totalorder %s18, 0
      %p258 = por %p256, %p257
      %p259 = scmp.ne.s32.totalorder %s248, %s251
      %p260 = scmp.eq.s32.totalorder %s23, 1
      %p261 = por %p259, %p260
      %p262 = scmp.ne.s32.totalorder %s251, %s252
      %p263 = scmp.eq.s32.totalorder %s23, 0
      %p264 = por %p262, %p263
      %p265 = scmp.ne.s32.totalorder %s251, %s252
      %p266 = scmp.eq.s32.totalorder %s24, 1
      %p267 = por %p265, %p266
      %p269 = scmp.ne.s32.totalorder %s252, %s268
      %p270 = scmp.eq.s32.totalorder %s24, 0
      %p271 = por %p269, %p270
      %p272 = scmp.le.s32.totalorder 1, %s18
      %p273 = scmp.lt.s32.totalorder %s18, 3
      %p274 = pnand %p272, %p273
      %p275 = pneg %p274
      // Predicated region
      $region9: #{phase_init_network.1} parent=5 // pred_check
        _
      $region10: #{phase_init_network.1} parent=5 // pred_check_branch
        %277 = sbr.rel (%p274) target = $region12
      $region11: #{phase_init_network.1} parent=5 // pred_region
        %s278 = ssub.s32 %s18, 1
        // Predicated region
        $region13: #{phase_init_network.1} parent=11 // pred_check
          %p279 = pneg %p91
        $region14: #{phase_init_network.1} parent=11 // pred_check_branch
          %281 = sbr.rel (%p279) target = $region16
        $region15: #{phase_init_network.1} parent=11 // pred_region
          _
        $region16: #{phase_init_network.1} parent=11 // pred_fallthru
          _
        // Predicated region
        $region17: #{phase_init_network.1} parent=11 // pred_check
          %p282 = pneg %p112
        $region18: #{phase_init_network.1} parent=11 // pred_check_branch
          %284 = sbr.rel (%p282) target = $region20
        $region19: #{phase_init_network.1} parent=11 // pred_region
          _
        $region20: #{phase_init_network.1} parent=11 // pred_fallthru
          _
        // Predicated region
        $region21: #{phase_init_network.1} parent=11 // pred_check
          %p285 = pneg %p133
        $region22: #{phase_init_network.1} parent=11 // pred_check_branch
          %287 = sbr.rel (%p285) target = $region24
        $region23: #{phase_init_network.1} parent=11 // pred_region
          %s289 = ssub.s32 10240, 10240
          %290 = vsyncadd [#allocation6], %s289
          %s291 = sshll.u32 [#allocation5], 4
          %s292 = int_to_ptr.vmem [resolvable:$true] %s291
          %297 = dma.hbm_to_vmem [thread:$0]  %s4, 10240, %s292, [#allocation6], 128, 128, 8
        $region24: #{phase_init_network.1} parent=11 // pred_fallthru
          _
        // Predicated region
        $region25: #{phase_init_network.1} parent=11 // pred_check
          %p298 = pneg %p154
        $region26: #{phase_init_network.1} parent=11 // pred_check_branch
          %300 = sbr.rel (%p298) target = $region28
        $region27: #{phase_init_network.1} parent=11 // pred_region
          _
        $region28: #{phase_init_network.1} parent=11 // pred_fallthru
          _
        // Predicated region
        $region29: #{phase_init_network.1} parent=11 // pred_check
          %p301 = pneg %p175
        $region30: #{phase_init_network.1} parent=11 // pred_check_branch
          %303 = sbr.rel (%p301) target = $region32
        $region31: #{phase_init_network.1} parent=11 // pred_region
          _
        $region32: #{phase_init_network.1} parent=11 // pred_fallthru
          _
        // Predicated region
        $region33: #{phase_init_network.1} parent=11 // pred_check
          %p304 = pneg %p196
        $region34: #{phase_init_network.1} parent=11 // pred_check_branch
          %306 = sbr.rel (%p304) target = $region36
        $region35: #{phase_init_network.1} parent=11 // pred_region
          _
        $region36: #{phase_init_network.1} parent=11 // pred_fallthru
          _
        // Predicated region
        $region37: #{phase_init_network.1} parent=11 // pred_check
          %p307 = pneg %p217
        $region38: #{phase_init_network.1} parent=11 // pred_check_branch
          %309 = sbr.rel (%p307) target = $region40
        $region39: #{phase_init_network.1} parent=11 // pred_region
          %s311 = ssub.s32 18432, 18432
          %312 = vsyncadd [#allocation8], %s311
          %s313 = sshll.u32 [#allocation7], 4
          %s314 = int_to_ptr.vmem [resolvable:$true] %s313
          %319 = dma.hbm_to_vmem [thread:$0]  %s8, 18432, %s314, [#allocation8], 128, 128, 8
        $region40: #{phase_init_network.1} parent=11 // pred_fallthru
          _
        // Predicated region
        $region41: #{phase_init_network.1} parent=11 // pred_check
          %p320 = pneg %p238
        $region42: #{phase_init_network.1} parent=11 // pred_check_branch
          %322 = sbr.rel (%p320) target = $region44
        $region43: #{phase_init_network.1} parent=11 // pred_region
          _
        $region44: #{phase_init_network.1} parent=11 // pred_fallthru
          _
      $region12: #{phase_init_network.1} parent=5 // pred_fallthru
        _
      %p323 = scmp.lt.s32.totalorder %s18, 2
      // Predicated region
      $region45: #{phase_init_network.1} parent=5 // pred_check
        %p324 = pneg %p323
      $region46: #{phase_init_network.1} parent=5 // pred_check_branch
        %326 = sbr.rel (%p324) target = $region48
      $region47: #{phase_init_network.1} parent=5 // pred_region
        // Predicated region
        $region49: #{phase_init_network.1} parent=47 // pred_check
          %p327 = pneg %p38
        $region50: #{phase_init_network.1} parent=47 // pred_check_branch
          %329 = sbr.rel (%p327) target = $region52
        $region51: #{phase_init_network.1} parent=47 // pred_region
          %p330 = scmp.lt.s32.totalorder %s18, 1
          %s331 = scalar_select %p330, %s18, 1
          %s332 = smul.addr %s331, 2
          %s333 = smul.addr %s332, 8
          %s334 = scalar_lea.vmem %s0, %s333
        $region52: #{phase_init_network.1} parent=47 // pred_fallthru
          _
        // Predicated region
        $region53: #{phase_init_network.1} parent=47 // pred_check
          %p335 = pneg %p64
        $region54: #{phase_init_network.1} parent=47 // pred_check_branch
          %337 = sbr.rel (%p335) target = $region56
        $region55: #{phase_init_network.1} parent=47 // pred_region
          %p338 = scmp.lt.s32.totalorder %s18, 1
          %s339 = scalar_select %p338, %s18, 1
          %s340 = smul.addr %s339, 4
          %s341 = scalar_lea.vmem %s1, %s340
        $region56: #{phase_init_network.1} parent=47 // pred_fallthru
          _
      $region48: #{phase_init_network.1} parent=5 // pred_fallthru
        _
      %p342 = scmp.le.s32.totalorder 1, %s18
      %p343 = scmp.lt.s32.totalorder %s18, 3
      %p344 = pnand %p342, %p343
      %p345 = pneg %p344
      // Predicated region
      $region57: #{phase_init_network.1} parent=5 // pred_check
        _
      $region58: #{phase_init_network.1} parent=5 // pred_check_branch
        %347 = sbr.rel (%p344) target = $region60
      $region59: #{phase_init_network.1} parent=5 // pred_region
        %s348 = ssub.s32 %s18, 1
        // Predicated region
        $region61: #{phase_init_network.1} parent=59 // pred_check
          %p349 = pneg %p133
        $region62: #{phase_init_network.1} parent=59 // pred_check_branch
          %351 = sbr.rel (%p349) target = $region64
        $region63: #{phase_init_network.1} parent=59 // pred_region
          %352 = dma.done [#allocation6], 10240
        $region64: #{phase_init_network.1} parent=59 // pred_fallthru
          _
        // Predicated region
        $region65: #{phase_init_network.1} parent=59 // pred_check
          %p353 = pneg %p217
        $region66: #{phase_init_network.1} parent=59 // pred_check_branch
          %355 = sbr.rel (%p353) target = $region68
        $region67: #{phase_init_network.1} parent=59 // pred_region
          %356 = dma.done [#allocation8], 18432
        $region68: #{phase_init_network.1} parent=59 // pred_fallthru
          _
        %p357 = scmp.lt.s32.totalorder %s23, 1
        %s358 = scalar_select %p357, %s23, 1
        %s359 = smul.addr %s358, 2
        %s360 = smul.addr %s359, 8
        %s361 = scalar_lea.vmem %s0, %s360
        %p362 = pneg %p44
        %p363 = pneg %p41
        %p364 = scmp.lt.s32.totalorder %s23, 1
        %s365 = scalar_select %p364, %s23, 1
        %s366 = smul.addr %s365, 4
        %s367 = scalar_lea.vmem %s1, %s366
        %p368 = pneg %p70
        %p369 = pneg %p67
        %p370 = pneg %p91
        %p371 = pneg %p88
        %p372 = pneg %p112
        %p373 = pneg %p109
        %p374 = pneg %p133
        %p375 = pneg %p130
        %p376 = pneg %p154
        %p377 = pneg %p151
        %p378 = pneg %p175
        %p379 = pneg %p172
        %p380 = pneg %p196
        %p381 = pneg %p193
        %p382 = pneg %p217
        %p383 = pneg %p214
        %p384 = pneg %p238
        %p385 = pneg %p235
        %p386 = pneg %p264
        %p387 = pneg %p261
        %p388 = scmp.lt.s32.totalorder %s23, 1
        %s389 = scalar_select %p388, %s23, 1
        %s390 = smul.addr %s389, 4
        %s391 = scalar_lea.vmem %s10, %s390
        %p392 = scmp.lt.s32.totalorder %s23, 1
        %s393 = scalar_select %p392, %s23, 1
        %s394 = smul.addr %s393, 2
        %s395 = smul.addr %s394, 8
        %s396 = scalar_lea.vmem %s0, %s395
        %p397 = scmp.lt.s32.totalorder %s23, 1
        %s398 = scalar_select %p397, %s23, 1
        %s399 = smul.addr %s398, 4
        %s400 = scalar_lea.vmem %s1, %s399
        %p401 = scmp.lt.s32.totalorder %s23, 1
        %s402 = scalar_select %p401, %s23, 1
        %s403 = smul.addr %s402, 4
        %s404 = scalar_lea.vmem %s10, %s403
        %405 = vst [vmem:[#allocation2] sm:$0x1f] 0.0
        %406 = vst [vmem:[#allocation2 + $0x8] sm:$0x1f] 0.0
        %vm407 = vcmask 520192
        %408 = vst.msk [vmem:[#allocation2 + $0x10] sm:$0x1f] %vm407, 0.0
        %409 = vst [vmem:[#allocation3] sm:$0x3f] 0.0
        %vm410 = vcmask 521216
        %411 = vst.msk [vmem:[#allocation3 + $0x8] sm:$0x3f] %vm410, 0.0
        %412 = vst [vmem:[#allocation4] sm:$0x3f] 0.0
        %413 = vst [vmem:[#allocation4 + $0x8] sm:$0x3f] 0.0
        %414 = vst [vmem:[#allocation4 + $0x10] sm:$0x3f] 0.0
        %v415 = vld [vmem:[%s396] sm:$0xf]
        %v416 = vld [vmem:[%s396 + $0x8] sm:$0xf]
        %v417 = vld [vmem:[%s2] sm:$0xff]
        %v418 = vld [vmem:[%s2 + $0x8] sm:$0xff]
        %v419 = vld [vmem:[%s2 + $0x10] sm:$0xff]
        %v420 = vld [vmem:[%s2 + $0x18] sm:$0xff]
        %v421 = vld [vmem:[%s2 + $0x20] sm:$0xff]
        %v422 = vld [vmem:[%s2 + $0x28] sm:$0xff]
        %v423 = vld [vmem:[%s2 + $0x30] sm:$0xff]
        %v424 = vld [vmem:[%s2 + $0x38] sm:$0xff]
        %v425 = vld [vmem:[%s2 + $0x40] sm:$0xff]
        %v426 = vld [vmem:[%s2 + $0x48] sm:$0xff]
        %v427 = vld [vmem:[%s2 + $0x50] sm:$0xff]
        %v428 = vld [vmem:[%s2 + $0x58] sm:$0xff]
        %v429 = vld [vmem:[%s2 + $0x60] sm:$0xff]
        %v430 = vld [vmem:[%s2 + $0x68] sm:$0xff]
        %v431 = vld [vmem:[%s2 + $0x70] sm:$0xff]
        %v432 = vld [vmem:[%s2 + $0x78] sm:$0xff]
        %v433 = vld [vmem:[%s2 + $0x80] sm:$0xff]
        %v434 = vld [vmem:[%s2 + $0x88] sm:$0xff]
        %v435 = vld [vmem:[%s2 + $0x90] sm:$0xff]
        %v436 = vld [vmem:[%s2 + $0x98] sm:$0xff]
        %v437 = vld [vmem:[%s2 + $0xa0] sm:$0xff]
        %v438 = vld [vmem:[%s2 + $0xa8] sm:$0xff]
        %v439 = vld [vmem:[%s2 + $0xb0] sm:$0xff]
        %v440 = vld [vmem:[%s2 + $0xb8] sm:$0xff]
        %v441 = vld [vmem:[%s2 + $0xc0] sm:$0xff]
        %v442 = vld [vmem:[%s2 + $0xc8] sm:$0xff]
        %v443 = vld [vmem:[%s2 + $0xd0] sm:$0xff]
        %v444 = vld [vmem:[%s2 + $0xd8] sm:$0xff]
        %v445 = vld [vmem:[%s2 + $0xe0] sm:$0xff]
        %v446 = vld [vmem:[%s2 + $0xe8] sm:$0xff]
        %v447 = vld [vmem:[%s2 + $0xf0] sm:$0xff]
        %v448 = vld [vmem:[%s2 + $0xf8] sm:$0xff]
        %v449 = vld [vmem:[%s2 + $0x100] sm:$0xff]
        %v450 = vld [vmem:[%s2 + $0x108] sm:$0xff]
        %v451 = vld [vmem:[%s2 + $0x110] sm:$0xff]
        %v452 = vld [vmem:[%s2 + $0x118] sm:$0xff]
        %v453 = vld [vmem:[%s2 + $0x120] sm:$0xff]
        %v454 = vld [vmem:[%s2 + $0x128] sm:$0xff]
        %v455 = vld [vmem:[%s2 + $0x130] sm:$0xff]
        %v456 = vld [vmem:[%s2 + $0x138] sm:$0xff]
        %v457 = vld [vmem:[%s396] sm:$0x1e]
        %v458 = vld [vmem:[%s396 + $0x8] sm:$0x1e]
        %s459 = scalar_lea.vmem %s2, 320
        %v460 = vld [vmem:[%s459] sm:$0xff]
        %v461 = vld [vmem:[%s459 + $0x8] sm:$0xff]
        %v462 = vld [vmem:[%s459 + $0x10] sm:$0xff]
        %v463 = vld [vmem:[%s459 + $0x18] sm:$0xff]
        %v464 = vld [vmem:[%s459 + $0x20] sm:$0xff]
        %v465 = vld [vmem:[%s459 + $0x28] sm:$0xff]
        %v466 = vld [vmem:[%s459 + $0x30] sm:$0xff]
        %v467 = vld [vmem:[%s459 + $0x38] sm:$0xff]
        %v468 = vld [vmem:[%s459 + $0x40] sm:$0xff]
        %v469 = vld [vmem:[%s459 + $0x48] sm:$0xff]
        %v470 = vld [vmem:[%s459 + $0x50] sm:$0xff]
        %v471 = vld [vmem:[%s459 + $0x58] sm:$0xff]
        %v472 = vld [vmem:[%s459 + $0x60] sm:$0xff]
        %v473 = vld [vmem:[%s459 + $0x68] sm:$0xff]
        %v474 = vld [vmem:[%s459 + $0x70] sm:$0xff]
        %v475 = vld [vmem:[%s459 + $0x78] sm:$0xff]
        %v476 = vld [vmem:[%s459 + $0x80] sm:$0xff]
        %v477 = vld [vmem:[%s459 + $0x88] sm:$0xff]
        %v478 = vld [vmem:[%s459 + $0x90] sm:$0xff]
        %v479 = vld [vmem:[%s459 + $0x98] sm:$0xff]
        %v480 = vld [vmem:[%s459 + $0xa0] sm:$0xff]
        %v481 = vld [vmem:[%s459 + $0xa8] sm:$0xff]
        %v482 = vld [vmem:[%s459 + $0xb0] sm:$0xff]
        %v483 = vld [vmem:[%s459 + $0xb8] sm:$0xff]
        %v484 = vld [vmem:[%s459 + $0xc0] sm:$0xff]
        %v485 = vld [vmem:[%s459 + $0xc8] sm:$0xff]
        %v486 = vld [vmem:[%s459 + $0xd0] sm:$0xff]
        %v487 = vld [vmem:[%s459 + $0xd8] sm:$0xff]
        %v488 = vld [vmem:[%s459 + $0xe0] sm:$0xff]
        %v489 = vld [vmem:[%s459 + $0xe8] sm:$0xff]
        %v490 = vld [vmem:[%s459 + $0xf0] sm:$0xff]
        %v491 = vld [vmem:[%s459 + $0xf8] sm:$0xff]
        %v492 = vld [vmem:[%s459 + $0x100] sm:$0xff]
        %v493 = vld [vmem:[%s459 + $0x108] sm:$0xff]
        %v494 = vld [vmem:[%s459 + $0x110] sm:$0xff]
        %v495 = vld [vmem:[%s459 + $0x118] sm:$0xff]
        %v496 = vld [vmem:[%s459 + $0x120] sm:$0xff]
        %v497 = vld [vmem:[%s459 + $0x128] sm:$0xff]
        %v498 = vld [vmem:[%s459 + $0x130] sm:$0xff]
        %v499 = vld [vmem:[%s459 + $0x138] sm:$0xff]
        %v502 = vrot.slane %v457, 1
        %v503 = vrot.slane %v458, 1
        %vm505 = vcmask 261120
        %v506 = vsel %vm505, %v503, 0
        %508 = vmatprep.subr.mxu0 %v491
        %509 = vmatpush1.msra.mxu0 %v490
        %510 = vmatprep.subr.mxu0 %v489
        %511 = vmatpush1.msra.mxu0 %v488
        %512 = vmatprep.subr.mxu0 %v487
        %513 = vmatpush1.msra.mxu0 %v486
        %514 = vmatprep.subr.mxu0 %v485
        %515 = vmatpush1.msra.mxu0 %v484
        %516 = vmatprep.subr.mxu0 %v483
        %517 = vmatpush1.msra.mxu0 %v482
        %518 = vmatprep.subr.mxu0 %v481
        %519 = vmatpush1.msra.mxu0 %v480
        %520 = vmatprep.subr.mxu0 %v479
        %521 = vmatpush1.msra.mxu0 %v478
        %522 = vmatprep.subr.mxu0 %v477
        %523 = vmatpush1.msra.mxu0 %v476
        %524 = vmatprep.subr.mxu0 %v475
        %525 = vmatpush1.msra.mxu0 %v474
        %526 = vmatprep.subr.mxu0 %v473
        %527 = vmatpush1.msra.mxu0 %v472
        %528 = vmatprep.subr.mxu0 %v471
        %529 = vmatpush1.msra.mxu0 %v470
        %530 = vmatprep.subr.mxu0 %v469
        %531 = vmatpush1.msra.mxu0 %v468
        %532 = vmatprep.subr.mxu0 %v467
        %533 = vmatpush1.msra.mxu0 %v466
        %534 = vmatprep.subr.mxu0 %v465
        %535 = vmatpush1.msra.mxu0 %v464
        %536 = vmatprep.subr.mxu0 %v463
        %537 = vmatpush1.msra.mxu0 %v462
        %538 = vmatprep.subr.mxu0 %v461
        %539 = vmatpush1.msra.mxu0 %v460
        %540 = vmatprep.subr.mxu0 0.0
        %541 = vmatpush2.msra.mxu0 0.0
        %542 = vmatprep.subr.mxu0 0.0
        %543 = vmatpush2.msra.mxu0 0.0
        %544 = vmatprep.subr.mxu0 0.0
        %545 = vmatpush2.msra.mxu0 0.0
        %546 = vmatprep.subr.mxu0 0.0
        %547 = vmatpush2.msra.mxu0 0.0
        %548 = vmatprep.subr.mxu0 0.0
        %549 = vmatpush2.msra.mxu0 0.0
        %550 = vmatprep.subr.mxu0 0.0
        %551 = vmatpush2.msra.mxu0 0.0
        %552 = vmatprep.subr.mxu0 0.0
        %553 = vmatpush2.msra.mxu0 0.0
        %554 = vmatprep.subr.mxu0 0.0
        %555 = vmatpush2.msra.mxu0 0.0
        %556 = vmatprep.subr.mxu0 0.0
        %557 = vmatpush2.msra.mxu0 0.0
        %558 = vmatprep.subr.mxu0 0.0
        %559 = vmatpush2.msra.mxu0 0.0
        %560 = vmatprep.subr.mxu0 0.0
        %561 = vmatpush2.msra.mxu0 0.0
        %562 = vmatprep.subr.mxu0 0.0
        %563 = vmatpush2.msra.mxu0 0.0
        %564 = vmatprep.subr.mxu0 %v499
        %565 = vmatpush2.msra.mxu0 %v498
        %566 = vmatprep.subr.mxu0 %v497
        %567 = vmatpush2.msra.mxu0 %v496
        %568 = vmatprep.subr.mxu0 %v495
        %569 = vmatpush2.msra.mxu0 %v494
        %570 = vmatprep.subr.mxu0 %v493
        %571 = vmatpush2.msra.mxu0 %v492
        %572 = vmatprep.mubr.f32.mxu0 %v506
        %573 = vmatmul.mubr.f32.gmra.mxu0 %v502
        %v574 = vpop.f32.mrf.mxu0
        %v575 = vadd.f32 0.0, %v574
        %v576 = vpop.f32.mrf.mxu0
        %v577 = vadd.f32 0.0, %v576
        %578 = vdwg.mxu0
        %v580 = vsel %vm505, %v416, 0
        %582 = vmatprep.subr.mxu0 %v448
        %583 = vmatpush1.msra.mxu0 %v447
        %584 = vmatprep.subr.mxu0 %v446
        %585 = vmatpush1.msra.mxu0 %v445
        %586 = vmatprep.subr.mxu0 %v444
        %587 = vmatpush1.msra.mxu0 %v443
        %588 = vmatprep.subr.mxu0 %v442
        %589 = vmatpush1.msra.mxu0 %v441
        %590 = vmatprep.subr.mxu0 %v440
        %591 = vmatpush1.msra.mxu0 %v439
        %592 = vmatprep.subr.mxu0 %v438
        %593 = vmatpush1.msra.mxu0 %v437
        %594 = vmatprep.subr.mxu0 %v436
        %595 = vmatpush1.msra.mxu0 %v435
        %596 = vmatprep.subr.mxu0 %v434
        %597 = vmatpush1.msra.mxu0 %v433
        %598 = vmatprep.subr.mxu0 %v432
        %599 = vmatpush1.msra.mxu0 %v431
        %600 = vmatprep.subr.mxu0 %v430
        %601 = vmatpush1.msra.mxu0 %v429
        %602 = vmatprep.subr.mxu0 %v428
        %603 = vmatpush1.msra.mxu0 %v427
        %604 = vmatprep.subr.mxu0 %v426
        %605 = vmatpush1.msra.mxu0 %v425
        %606 = vmatprep.subr.mxu0 %v424
        %607 = vmatpush1.msra.mxu0 %v423
        %608 = vmatprep.subr.mxu0 %v422
        %609 = vmatpush1.msra.mxu0 %v421
        %610 = vmatprep.subr.mxu0 %v420
        %611 = vmatpush1.msra.mxu0 %v419
        %612 = vmatprep.subr.mxu0 %v418
        %613 = vmatpush1.msra.mxu0 %v417
        %614 = vmatprep.subr.mxu0 0.0
        %615 = vmatpush2.msra.mxu0 0.0
        %616 = vmatprep.subr.mxu0 0.0
        %617 = vmatpush2.msra.mxu0 0.0
        %618 = vmatprep.subr.mxu0 0.0
        %619 = vmatpush2.msra.mxu0 0.0
        %620 = vmatprep.subr.mxu0 0.0
        %621 = vmatpush2.msra.mxu0 0.0
        %622 = vmatprep.subr.mxu0 0.0
        %623 = vmatpush2.msra.mxu0 0.0
        %624 = vmatprep.subr.mxu0 0.0
        %625 = vmatpush2.msra.mxu0 0.0
        %626 = vmatprep.subr.mxu0 0.0
        %627 = vmatpush2.msra.mxu0 0.0
        %628 = vmatprep.subr.mxu0 0.0
        %629 = vmatpush2.msra.mxu0 0.0
        %630 = vmatprep.subr.mxu0 0.0
        %631 = vmatpush2.msra.mxu0 0.0
        %632 = vmatprep.subr.mxu0 0.0
        %633 = vmatpush2.msra.mxu0 0.0
        %634 = vmatprep.subr.mxu0 0.0
        %635 = vmatpush2.msra.mxu0 0.0
        %636 = vmatprep.subr.mxu0 0.0
        %637 = vmatpush2.msra.mxu0 0.0
        %638 = vmatprep.subr.mxu0 %v456
        %639 = vmatpush2.msra.mxu0 %v455
        %640 = vmatprep.subr.mxu0 %v454
        %641 = vmatpush2.msra.mxu0 %v453
        %642 = vmatprep.subr.mxu0 %v452
        %643 = vmatpush2.msra.mxu0 %v451
        %644 = vmatprep.subr.mxu0 %v450
        %645 = vmatpush2.msra.mxu0 %v449
        %646 = vmatprep.mubr.f32.mxu0 %v580
        %647 = vmatmul.mubr.f32.gmra.mxu0 %v415
        %v648 = vpop.f32.mrf.mxu0
        %v649 = vadd.f32 %v575, %v648
        %v650 = vpop.f32.mrf.mxu0
        %v651 = vadd.f32 %v577, %v650
        %652 = vdwg.mxu0
        %v653 = vld [vmem:[%s3] sm:$0x3]
        %v655 = vlaneseq
        %v656 = vshrl.u32 %v655, 7
        %v657 = vsub.s32 0, %v656
        %v658 = vrot.slane %v653, %v657
        %v659 = vlaneseq
        %v660 = vshrl.u32 %v659, 7
        %v661 = vsub.s32 1, %v660
        %v662 = vrot.slane %v653, %v661
        %v665 = vadd.f32 %v649, %v658
        %v666 = vadd.f32 %v651, %v662
        %v667 = vmax.f32 %v665, 0.0
        %v668 = vmax.f32 %v666, 0.0
        %v671 = vrot.slane %v667, 7
        %v672 = vrot.slane %v668, 7
        %673 = vrot.lane.b32.xlu0 %v671, 64
        %v674 = vpop.permute.xlu0 %673
        %675 = vrot.lane.b32.xlu0 %v672, 64
        %v676 = vpop.permute.xlu0 %675
        %vm677 = vcmask 523264
        %v678 = vsel %vm677, %v674, %v676
        %vm682 = vcmask 1044993
        %683 = vst.msk [vmem:[#allocation2] sm:$0x1e] %vm682, %v674
        %684 = vst [vmem:[#allocation2 + $0x8] sm:$0x1e] %v678
        %vm685 = vcmask 520193
        %686 = vst.msk [vmem:[#allocation2 + $0x10] sm:$0x1e] %vm685, %v676
        %v687 = vld [vmem:[#allocation2] sm:$0xf]
        %v688 = vld [vmem:[#allocation2 + $0x8] sm:$0xf]
        %v689 = vld [vmem:[#allocation2 + $0x10] sm:$0xf]
        %v690 = vld [vmem:[#allocation5] sm:$0xff]
        %v691 = vld [vmem:[#allocation5 + $0x8] sm:$0xff]
        %v692 = vld [vmem:[#allocation5 + $0x10] sm:$0xff]
        %v693 = vld [vmem:[#allocation5 + $0x18] sm:$0xff]
        %v694 = vld [vmem:[#allocation5 + $0x20] sm:$0xff]
        %v695 = vld [vmem:[#allocation5 + $0x28] sm:$0xff]
        %v696 = vld [vmem:[#allocation5 + $0x30] sm:$0xff]
        %v697 = vld [vmem:[#allocation5 + $0x38] sm:$0xff]
        %v698 = vld [vmem:[#allocation5 + $0x40] sm:$0xff]
        %v699 = vld [vmem:[#allocation5 + $0x48] sm:$0xff]
        %v700 = vld [vmem:[#allocation5 + $0x50] sm:$0xff]
        %v701 = vld [vmem:[#allocation5 + $0x58] sm:$0xff]
        %v702 = vld [vmem:[#allocation5 + $0x60] sm:$0xff]
        %v703 = vld [vmem:[#allocation5 + $0x68] sm:$0xff]
        %v704 = vld [vmem:[#allocation5 + $0x70] sm:$0xff]
        %v705 = vld [vmem:[#allocation5 + $0x78] sm:$0xff]
        %v706 = vld [vmem:[#allocation5 + $0x80] sm:$0xff]
        %v707 = vld [vmem:[#allocation5 + $0x88] sm:$0xff]
        %v708 = vld [vmem:[#allocation5 + $0x90] sm:$0xff]
        %v709 = vld [vmem:[#allocation5 + $0x98] sm:$0xff]
        %v710 = vld [vmem:[#allocation5 + $0xa0] sm:$0xff]
        %v711 = vld [vmem:[#allocation5 + $0xa8] sm:$0xff]
        %v712 = vld [vmem:[#allocation5 + $0xb0] sm:$0xff]
        %v713 = vld [vmem:[#allocation5 + $0xb8] sm:$0xff]
        %v714 = vld [vmem:[#allocation5 + $0xc0] sm:$0xff]
        %v715 = vld [vmem:[#allocation5 + $0xc8] sm:$0xff]
        %v716 = vld [vmem:[#allocation5 + $0xd0] sm:$0xff]
        %v717 = vld [vmem:[#allocation5 + $0xd8] sm:$0xff]
        %v718 = vld [vmem:[#allocation5 + $0xe0] sm:$0xff]
        %v719 = vld [vmem:[#allocation5 + $0xe8] sm:$0xff]
        %v720 = vld [vmem:[#allocation5 + $0xf0] sm:$0xff]
        %v721 = vld [vmem:[#allocation5 + $0xf8] sm:$0xff]
        %v722 = vld [vmem:[#allocation5 + $0x100] sm:$0xff]
        %v723 = vld [vmem:[#allocation5 + $0x108] sm:$0xff]
        %v724 = vld [vmem:[#allocation5 + $0x110] sm:$0xff]
        %v725 = vld [vmem:[#allocation5 + $0x118] sm:$0xff]
        %v726 = vld [vmem:[#allocation5 + $0x120] sm:$0xff]
        %v727 = vld [vmem:[#allocation5 + $0x128] sm:$0xff]
        %v728 = vld [vmem:[#allocation5 + $0x130] sm:$0xff]
        %v729 = vld [vmem:[#allocation5 + $0x138] sm:$0xff]
        %v730 = vld [vmem:[#allocation2] sm:$0x1e]
        %v731 = vld [vmem:[#allocation2 + $0x8] sm:$0x1e]
        %v732 = vld [vmem:[#allocation2 + $0x10] sm:$0x1e]
        %s733 = scalar_lea.vmem [#allocation5], 320
        %v734 = vld [vmem:[%s733] sm:$0xff]
        %v735 = vld [vmem:[%s733 + $0x8] sm:$0xff]
        %v736 = vld [vmem:[%s733 + $0x10] sm:$0xff]
        %v737 = vld [vmem:[%s733 + $0x18] sm:$0xff]
        %v738 = vld [vmem:[%s733 + $0x20] sm:$0xff]
        %v739 = vld [vmem:[%s733 + $0x28] sm:$0xff]
        %v740 = vld [vmem:[%s733 + $0x30] sm:$0xff]
        %v741 = vld [vmem:[%s733 + $0x38] sm:$0xff]
        %v742 = vld [vmem:[%s733 + $0x40] sm:$0xff]
        %v743 = vld [vmem:[%s733 + $0x48] sm:$0xff]
        %v744 = vld [vmem:[%s733 + $0x50] sm:$0xff]
        %v745 = vld [vmem:[%s733 + $0x58] sm:$0xff]
        %v746 = vld [vmem:[%s733 + $0x60] sm:$0xff]
        %v747 = vld [vmem:[%s733 + $0x68] sm:$0xff]
        %v748 = vld [vmem:[%s733 + $0x70] sm:$0xff]
        %v749 = vld [vmem:[%s733 + $0x78] sm:$0xff]
        %v750 = vld [vmem:[%s733 + $0x80] sm:$0xff]
        %v751 = vld [vmem:[%s733 + $0x88] sm:$0xff]
        %v752 = vld [vmem:[%s733 + $0x90] sm:$0xff]
        %v753 = vld [vmem:[%s733 + $0x98] sm:$0xff]
        %v754 = vld [vmem:[%s733 + $0xa0] sm:$0xff]
        %v755 = vld [vmem:[%s733 + $0xa8] sm:$0xff]
        %v756 = vld [vmem:[%s733 + $0xb0] sm:$0xff]
        %v757 = vld [vmem:[%s733 + $0xb8] sm:$0xff]
        %v758 = vld [vmem:[%s733 + $0xc0] sm:$0xff]
        %v759 = vld [vmem:[%s733 + $0xc8] sm:$0xff]
        %v760 = vld [vmem:[%s733 + $0xd0] sm:$0xff]
        %v761 = vld [vmem:[%s733 + $0xd8] sm:$0xff]
        %v762 = vld [vmem:[%s733 + $0xe0] sm:$0xff]
        %v763 = vld [vmem:[%s733 + $0xe8] sm:$0xff]
        %v764 = vld [vmem:[%s733 + $0xf0] sm:$0xff]
        %v765 = vld [vmem:[%s733 + $0xf8] sm:$0xff]
        %v766 = vld [vmem:[%s733 + $0x100] sm:$0xff]
        %v767 = vld [vmem:[%s733 + $0x108] sm:$0xff]
        %v768 = vld [vmem:[%s733 + $0x110] sm:$0xff]
        %v769 = vld [vmem:[%s733 + $0x118] sm:$0xff]
        %v770 = vld [vmem:[%s733 + $0x120] sm:$0xff]
        %v771 = vld [vmem:[%s733 + $0x128] sm:$0xff]
        %v772 = vld [vmem:[%s733 + $0x130] sm:$0xff]
        %v773 = vld [vmem:[%s733 + $0x138] sm:$0xff]
        %v777 = vrot.slane %v730, 1
        %v778 = vrot.slane %v731, 1
        %v779 = vrot.slane %v732, 1
        %v782 = vsel %vm677, %v779, 0
        %784 = vmatprep.subr.mxu0 0.0
        %785 = vmatpush1.msra.mxu0 %v749
        %786 = vmatprep.subr.mxu0 0.0
        %787 = vmatpush1.msra.mxu0 %v748
        %788 = vmatprep.subr.mxu0 0.0
        %789 = vmatpush1.msra.mxu0 %v747
        %790 = vmatprep.subr.mxu0 0.0
        %791 = vmatpush1.msra.mxu0 %v746
        %792 = vmatprep.subr.mxu0 0.0
        %793 = vmatpush1.msra.mxu0 %v745
        %794 = vmatprep.subr.mxu0 0.0
        %795 = vmatpush1.msra.mxu0 %v744
        %796 = vmatprep.subr.mxu0 0.0
        %797 = vmatpush1.msra.mxu0 %v743
        %798 = vmatprep.subr.mxu0 0.0
        %799 = vmatpush1.msra.mxu0 %v742
        %800 = vmatprep.subr.mxu0 0.0
        %801 = vmatpush1.msra.mxu0 %v741
        %802 = vmatprep.subr.mxu0 0.0
        %803 = vmatpush1.msra.mxu0 %v740
        %804 = vmatprep.subr.mxu0 0.0
        %805 = vmatpush1.msra.mxu0 %v739
        %806 = vmatprep.subr.mxu0 0.0
        %807 = vmatpush1.msra.mxu0 %v738
        %808 = vmatprep.subr.mxu0 0.0
        %809 = vmatpush1.msra.mxu0 %v737
        %810 = vmatprep.subr.mxu0 0.0
        %811 = vmatpush1.msra.mxu0 %v736
        %812 = vmatprep.subr.mxu0 0.0
        %813 = vmatpush1.msra.mxu0 %v735
        %814 = vmatprep.subr.mxu0 0.0
        %815 = vmatpush1.msra.mxu0 %v734
        %816 = vmatprep.subr.mxu0 0.0
        %817 = vmatpush2.msra.mxu0 %v765
        %818 = vmatprep.subr.mxu0 0.0
        %819 = vmatpush2.msra.mxu0 %v764
        %820 = vmatprep.subr.mxu0 0.0
        %821 = vmatpush2.msra.mxu0 %v763
        %822 = vmatprep.subr.mxu0 0.0
        %823 = vmatpush2.msra.mxu0 %v762
        %824 = vmatprep.subr.mxu0 0.0
        %825 = vmatpush2.msra.mxu0 %v761
        %826 = vmatprep.subr.mxu0 0.0
        %827 = vmatpush2.msra.mxu0 %v760
        %828 = vmatprep.subr.mxu0 0.0
        %829 = vmatpush2.msra.mxu0 %v759
        %830 = vmatprep.subr.mxu0 0.0
        %831 = vmatpush2.msra.mxu0 %v758
        %832 = vmatprep.subr.mxu0 0.0
        %833 = vmatpush2.msra.mxu0 %v757
        %834 = vmatprep.subr.mxu0 0.0
        %835 = vmatpush2.msra.mxu0 %v756
        %836 = vmatprep.subr.mxu0 0.0
        %837 = vmatpush2.msra.mxu0 %v755
        %838 = vmatprep.subr.mxu0 0.0
        %839 = vmatpush2.msra.mxu0 %v754
        %840 = vmatprep.subr.mxu0 0.0
        %841 = vmatpush2.msra.mxu0 %v753
        %842 = vmatprep.subr.mxu0 0.0
        %843 = vmatpush2.msra.mxu0 %v752
        %844 = vmatprep.subr.mxu0 0.0
        %845 = vmatpush2.msra.mxu0 %v751
        %846 = vmatprep.subr.mxu0 0.0
        %847 = vmatpush2.msra.mxu0 %v750
        %848 = vmatprep.mubr.f32.mxu0 %v778
        %849 = vmatmul.mubr.f32.gmra.mxu0 %v777
        %v850 = vpop.f32.mrf.mxu0
        %v851 = vadd.f32 0.0, %v850
        %v852 = vpop.f32.mrf.mxu0
        %853 = vdwg.mxu0
        %854 = vmatprep.subr.mxu0 0.0
        %855 = vmatpush1.msra.mxu0 0.0
        %856 = vmatprep.subr.mxu0 0.0
        %857 = vmatpush1.msra.mxu0 0.0
        %858 = vmatprep.subr.mxu0 0.0
        %859 = vmatpush1.msra.mxu0 0.0
        %860 = vmatprep.subr.mxu0 0.0
        %861 = vmatpush1.msra.mxu0 0.0
        %862 = vmatprep.subr.mxu0 0.0
        %863 = vmatpush1.msra.mxu0 0.0
        %864 = vmatprep.subr.mxu0 0.0
        %865 = vmatpush1.msra.mxu0 0.0
        %866 = vmatprep.subr.mxu0 0.0
        %867 = vmatpush1.msra.mxu0 0.0
        %868 = vmatprep.subr.mxu0 0.0
        %869 = vmatpush1.msra.mxu0 0.0
        %870 = vmatprep.subr.mxu0 0.0
        %871 = vmatpush1.msra.mxu0 %v773
        %872 = vmatprep.subr.mxu0 0.0
        %873 = vmatpush1.msra.mxu0 %v772
        %874 = vmatprep.subr.mxu0 0.0
        %875 = vmatpush1.msra.mxu0 %v771
        %876 = vmatprep.subr.mxu0 0.0
        %877 = vmatpush1.msra.mxu0 %v770
        %878 = vmatprep.subr.mxu0 0.0
        %879 = vmatpush1.msra.mxu0 %v769
        %880 = vmatprep.subr.mxu0 0.0
        %881 = vmatpush1.msra.mxu0 %v768
        %882 = vmatprep.subr.mxu0 0.0
        %883 = vmatpush1.msra.mxu0 %v767
        %884 = vmatprep.subr.mxu0 0.0
        %885 = vmatpush1.msra.mxu0 %v766
        %886 = vmatprep.subr.mxu0 0.0
        %887 = vmatpush2.msra.mxu0 0.0
        %888 = vmatprep.subr.mxu0 0.0
        %889 = vmatpush2.msra.mxu0 0.0
        %890 = vmatprep.subr.mxu0 0.0
        %891 = vmatpush2.msra.mxu0 0.0
        %892 = vmatprep.subr.mxu0 0.0
        %893 = vmatpush2.msra.mxu0 0.0
        %894 = vmatprep.subr.mxu0 0.0
        %895 = vmatpush2.msra.mxu0 0.0
        %896 = vmatprep.subr.mxu0 0.0
        %897 = vmatpush2.msra.mxu0 0.0
        %898 = vmatprep.subr.mxu0 0.0
        %899 = vmatpush2.msra.mxu0 0.0
        %900 = vmatprep.subr.mxu0 0.0
        %901 = vmatpush2.msra.mxu0 0.0
        %902 = vmatprep.subr.mxu0 0.0
        %903 = vmatpush2.msra.mxu0 0.0
        %904 = vmatprep.subr.mxu0 0.0
        %905 = vmatpush2.msra.mxu0 0.0
        %906 = vmatprep.subr.mxu0 0.0
        %907 = vmatpush2.msra.mxu0 0.0
        %908 = vmatprep.subr.mxu0 0.0
        %909 = vmatpush2.msra.mxu0 0.0
        %910 = vmatprep.subr.mxu0 0.0
        %911 = vmatpush2.msra.mxu0 0.0
        %912 = vmatprep.subr.mxu0 0.0
        %913 = vmatpush2.msra.mxu0 0.0
        %914 = vmatprep.subr.mxu0 0.0
        %915 = vmatpush2.msra.mxu0 0.0
        %916 = vmatprep.subr.mxu0 0.0
        %917 = vmatpush2.msra.mxu0 0.0
        %918 = vmatprep.mubr.f32.mxu0 0.0
        %919 = vmatmul.mubr.f32.gmra.mxu0 %v782
        %v920 = vpop.f32.mrf.mxu0
        %v921 = vadd.f32 %v851, %v920
        %v922 = vpop.f32.mrf.mxu0
        %923 = vdwg.mxu0
        %v925 = vsel %vm677, %v689, 0
        %927 = vmatprep.subr.mxu0 0.0
        %928 = vmatpush1.msra.mxu0 %v705
        %929 = vmatprep.subr.mxu0 0.0
        %930 = vmatpush1.msra.mxu0 %v704
        %931 = vmatprep.subr.mxu0 0.0
        %932 = vmatpush1.msra.mxu0 %v703
        %933 = vmatprep.subr.mxu0 0.0
        %934 = vmatpush1.msra.mxu0 %v702
        %935 = vmatprep.subr.mxu0 0.0
        %936 = vmatpush1.msra.mxu0 %v701
        %937 = vmatprep.subr.mxu0 0.0
        %938 = vmatpush1.msra.mxu0 %v700
        %939 = vmatprep.subr.mxu0 0.0
        %940 = vmatpush1.msra.mxu0 %v699
        %941 = vmatprep.subr.mxu0 0.0
        %942 = vmatpush1.msra.mxu0 %v698
        %943 = vmatprep.subr.mxu0 0.0
        %944 = vmatpush1.msra.mxu0 %v697
        %945 = vmatprep.subr.mxu0 0.0
        %946 = vmatpush1.msra.mxu0 %v696
        %947 = vmatprep.subr.mxu0 0.0
        %948 = vmatpush1.msra.mxu0 %v695
        %949 = vmatprep.subr.mxu0 0.0
        %950 = vmatpush1.msra.mxu0 %v694
        %951 = vmatprep.subr.mxu0 0.0
        %952 = vmatpush1.msra.mxu0 %v693
        %953 = vmatprep.subr.mxu0 0.0
        %954 = vmatpush1.msra.mxu0 %v692
        %955 = vmatprep.subr.mxu0 0.0
        %956 = vmatpush1.msra.mxu0 %v691
        %957 = vmatprep.subr.mxu0 0.0
        %958 = vmatpush1.msra.mxu0 %v690
        %959 = vmatprep.subr.mxu0 0.0
        %960 = vmatpush2.msra.mxu0 %v721
        %961 = vmatprep.subr.mxu0 0.0
        %962 = vmatpush2.msra.mxu0 %v720
        %963 = vmatprep.subr.mxu0 0.0
        %964 = vmatpush2.msra.mxu0 %v719
        %965 = vmatprep.subr.mxu0 0.0
        %966 = vmatpush2.msra.mxu0 %v718
        %967 = vmatprep.subr.mxu0 0.0
        %968 = vmatpush2.msra.mxu0 %v717
        %969 = vmatprep.subr.mxu0 0.0
        %970 = vmatpush2.msra.mxu0 %v716
        %971 = vmatprep.subr.mxu0 0.0
        %972 = vmatpush2.msra.mxu0 %v715
        %973 = vmatprep.subr.mxu0 0.0
        %974 = vmatpush2.msra.mxu0 %v714
        %975 = vmatprep.subr.mxu0 0.0
        %976 = vmatpush2.msra.mxu0 %v713
        %977 = vmatprep.subr.mxu0 0.0
        %978 = vmatpush2.msra.mxu0 %v712
        %979 = vmatprep.subr.mxu0 0.0
        %980 = vmatpush2.msra.mxu0 %v711
        %981 = vmatprep.subr.mxu0 0.0
        %982 = vmatpush2.msra.mxu0 %v710
        %983 = vmatprep.subr.mxu0 0.0
        %984 = vmatpush2.msra.mxu0 %v709
        %985 = vmatprep.subr.mxu0 0.0
        %986 = vmatpush2.msra.mxu0 %v708
        %987 = vmatprep.subr.mxu0 0.0
        %988 = vmatpush2.msra.mxu0 %v707
        %989 = vmatprep.subr.mxu0 0.0
        %990 = vmatpush2.msra.mxu0 %v706
        %991 = vmatprep.mubr.f32.mxu0 %v688
        %992 = vmatmul.mubr.f32.gmra.mxu0 %v687
        %v993 = vpop.f32.mrf.mxu0
        %v994 = vadd.f32 %v921, %v993
        %v995 = vpop.f32.mrf.mxu0
        %996 = vdwg.mxu0
        %997 = vmatprep.subr.mxu0 0.0
        %998 = vmatpush1.msra.mxu0 0.0
        %999 = vmatprep.subr.mxu0 0.0
        %1000 = vmatpush1.msra.mxu0 0.0
        %1001 = vmatprep.subr.mxu0 0.0
        %1002 = vmatpush1.msra.mxu0 0.0
        %1003 = vmatprep.subr.mxu0 0.0
        %1004 = vmatpush1.msra.mxu0 0.0
        %1005 = vmatprep.subr.mxu0 0.0
        %1006 = vmatpush1.msra.mxu0 0.0
        %1007 = vmatprep.subr.mxu0 0.0
        %1008 = vmatpush1.msra.mxu0 0.0
        %1009 = vmatprep.subr.mxu0 0.0
        %1010 = vmatpush1.msra.mxu0 0.0
        %1011 = vmatprep.subr.mxu0 0.0
        %1012 = vmatpush1.msra.mxu0 0.0
        %1013 = vmatprep.subr.mxu0 0.0
        %1014 = vmatpush1.msra.mxu0 %v729
        %1015 = vmatprep.subr.mxu0 0.0
        %1016 = vmatpush1.msra.mxu0 %v728
        %1017 = vmatprep.subr.mxu0 0.0
        %1018 = vmatpush1.msra.mxu0 %v727
        %1019 = vmatprep.subr.mxu0 0.0
        %1020 = vmatpush1.msra.mxu0 %v726
        %1021 = vmatprep.subr.mxu0 0.0
        %1022 = vmatpush1.msra.mxu0 %v725
        %1023 = vmatprep.subr.mxu0 0.0
        %1024 = vmatpush1.msra.mxu0 %v724
        %1025 = vmatprep.subr.mxu0 0.0
        %1026 = vmatpush1.msra.mxu0 %v723
        %1027 = vmatprep.subr.mxu0 0.0
        %1028 = vmatpush1.msra.mxu0 %v722
        %1029 = vmatprep.subr.mxu0 0.0
        %1030 = vmatpush2.msra.mxu0 0.0
        %1031 = vmatprep.subr.mxu0 0.0
        %1032 = vmatpush2.msra.mxu0 0.0
        %1033 = vmatprep.subr.mxu0 0.0
        %1034 = vmatpush2.msra.mxu0 0.0
        %1035 = vmatprep.subr.mxu0 0.0
        %1036 = vmatpush2.msra.mxu0 0.0
        %1037 = vmatprep.subr.mxu0 0.0
        %1038 = vmatpush2.msra.mxu0 0.0
        %1039 = vmatprep.subr.mxu0 0.0
        %1040 = vmatpush2.msra.mxu0 0.0
        %1041 = vmatprep.subr.mxu0 0.0
        %1042 = vmatpush2.msra.mxu0 0.0
        %1043 = vmatprep.subr.mxu0 0.0
        %1044 = vmatpush2.msra.mxu0 0.0
        %1045 = vmatprep.subr.mxu0 0.0
        %1046 = vmatpush2.msra.mxu0 0.0
        %1047 = vmatprep.subr.mxu0 0.0
        %1048 = vmatpush2.msra.mxu0 0.0
        %1049 = vmatprep.subr.mxu0 0.0
        %1050 = vmatpush2.msra.mxu0 0.0
        %1051 = vmatprep.subr.mxu0 0.0
        %1052 = vmatpush2.msra.mxu0 0.0
        %1053 = vmatprep.subr.mxu0 0.0
        %1054 = vmatpush2.msra.mxu0 0.0
        %1055 = vmatprep.subr.mxu0 0.0
        %1056 = vmatpush2.msra.mxu0 0.0
        %1057 = vmatprep.subr.mxu0 0.0
        %1058 = vmatpush2.msra.mxu0 0.0
        %1059 = vmatprep.subr.mxu0 0.0
        %1060 = vmatpush2.msra.mxu0 0.0
        %1061 = vmatprep.mubr.f32.mxu0 0.0
        %1062 = vmatmul.mubr.f32.gmra.mxu0 %v925
        %v1063 = vpop.f32.mrf.mxu0
        %v1064 = vadd.f32 %v994, %v1063
        %v1065 = vpop.f32.mrf.mxu0
        %1066 = vdwg.mxu0
        %v1067 = vld [vmem:[%s5] sm:$0x1]
        %v1069 = vlaneseq
        %v1070 = vshrl.u32 %v1069, 7
        %v1071 = vsub.s32 0, %v1070
        %v1072 = vrot.slane %v1067, %v1071
        %v1074 = vadd.f32 %v1064, %v1072
        %v1075 = vmax.f32 %v1074, 0.0
        %v1077 = vrot.slane %v1075, 7
        %1078 = vrot.lane.b32.xlu0 %v1077, 32
        %v1079 = vpop.permute.xlu0 %1078
        %vm1081 = vcmask 1044737
        %1082 = vst.msk [vmem:[#allocation3] sm:$0x1e] %vm1081, %v1079
        %vm1083 = vcmask 258049
        %1084 = vst.msk [vmem:[#allocation3 + $0x8] sm:$0x1e] %vm1083, %v1079
        %v1085 = vld [vmem:[#allocation3] sm:$0xf]
        %v1086 = vld [vmem:[#allocation3 + $0x8] sm:$0xf]
        %v1087 = vld [vmem:[%s6] sm:$0xff]
        %v1088 = vld [vmem:[%s6 + $0x8] sm:$0xff]
        %v1089 = vld [vmem:[%s6 + $0x10] sm:$0xff]
        %v1090 = vld [vmem:[%s6 + $0x18] sm:$0xff]
        %v1091 = vld [vmem:[%s6 + $0x20] sm:$0xff]
        %v1092 = vld [vmem:[%s6 + $0x28] sm:$0xff]
        %v1093 = vld [vmem:[%s6 + $0x30] sm:$0xff]
        %v1094 = vld [vmem:[%s6 + $0x38] sm:$0xff]
        %v1095 = vld [vmem:[%s6 + $0x40] sm:$0xff]
        %v1096 = vld [vmem:[%s6 + $0x48] sm:$0xff]
        %v1097 = vld [vmem:[%s6 + $0x50] sm:$0xff]
        %v1098 = vld [vmem:[%s6 + $0x58] sm:$0xff]
        %v1099 = vld [vmem:[%s6 + $0x60] sm:$0xff]
        %v1100 = vld [vmem:[%s6 + $0x68] sm:$0xff]
        %v1101 = vld [vmem:[%s6 + $0x70] sm:$0xff]
        %v1102 = vld [vmem:[%s6 + $0x78] sm:$0xff]
        %v1103 = vld [vmem:[%s6 + $0x80] sm:$0xff]
        %v1104 = vld [vmem:[%s6 + $0x88] sm:$0xff]
        %v1105 = vld [vmem:[%s6 + $0x90] sm:$0xff]
        %v1106 = vld [vmem:[%s6 + $0x98] sm:$0xff]
        %v1107 = vld [vmem:[%s6 + $0xa0] sm:$0xff]
        %v1108 = vld [vmem:[%s6 + $0xa8] sm:$0xff]
        %v1109 = vld [vmem:[%s6 + $0xb0] sm:$0xff]
        %v1110 = vld [vmem:[%s6 + $0xb8] sm:$0xff]
        %v1111 = vld [vmem:[%s6 + $0xc0] sm:$0xff]
        %v1112 = vld [vmem:[%s6 + $0xc8] sm:$0xff]
        %v1113 = vld [vmem:[%s6 + $0xd0] sm:$0xff]
        %v1114 = vld [vmem:[%s6 + $0xd8] sm:$0xff]
        %v1115 = vld [vmem:[%s6 + $0xe0] sm:$0xff]
        %v1116 = vld [vmem:[%s6 + $0xe8] sm:$0xff]
        %v1117 = vld [vmem:[%s6 + $0xf0] sm:$0xff]
        %v1118 = vld [vmem:[%s6 + $0xf8] sm:$0xff]
        %v1119 = vld [vmem:[%s6 + $0x100] sm:$0xff]
        %v1120 = vld [vmem:[%s6 + $0x108] sm:$0xff]
        %v1121 = vld [vmem:[%s6 + $0x110] sm:$0xff]
        %v1122 = vld [vmem:[%s6 + $0x118] sm:$0xff]
        %v1123 = vld [vmem:[%s6 + $0x120] sm:$0xff]
        %v1124 = vld [vmem:[%s6 + $0x128] sm:$0xff]
        %v1125 = vld [vmem:[%s6 + $0x130] sm:$0xff]
        %v1126 = vld [vmem:[%s6 + $0x138] sm:$0xff]
        %v1127 = vld [vmem:[%s6 + $0x140] sm:$0xff]
        %v1128 = vld [vmem:[%s6 + $0x148] sm:$0xff]
        %v1129 = vld [vmem:[%s6 + $0x150] sm:$0xff]
        %v1130 = vld [vmem:[%s6 + $0x158] sm:$0xff]
        %v1131 = vld [vmem:[%s6 + $0x160] sm:$0xff]
        %v1132 = vld [vmem:[%s6 + $0x168] sm:$0xff]
        %v1133 = vld [vmem:[%s6 + $0x170] sm:$0xff]
        %v1134 = vld [vmem:[%s6 + $0x178] sm:$0xff]
        %v1135 = vld [vmem:[#allocation3] sm:$0x1e]
        %v1136 = vld [vmem:[#allocation3 + $0x8] sm:$0x1e]
        %s1137 = scalar_lea.vmem %s6, 384
        %v1138 = vld [vmem:[%s1137] sm:$0xff]
        %v1139 = vld [vmem:[%s1137 + $0x8] sm:$0xff]
        %v1140 = vld [vmem:[%s1137 + $0x10] sm:$0xff]
        %v1141 = vld [vmem:[%s1137 + $0x18] sm:$0xff]
        %v1142 = vld [vmem:[%s1137 + $0x20] sm:$0xff]
        %v1143 = vld [vmem:[%s1137 + $0x28] sm:$0xff]
        %v1144 = vld [vmem:[%s1137 + $0x30] sm:$0xff]
        %v1145 = vld [vmem:[%s1137 + $0x38] sm:$0xff]
        %v1146 = vld [vmem:[%s1137 + $0x40] sm:$0xff]
        %v1147 = vld [vmem:[%s1137 + $0x48] sm:$0xff]
        %v1148 = vld [vmem:[%s1137 + $0x50] sm:$0xff]
        %v1149 = vld [vmem:[%s1137 + $0x58] sm:$0xff]
        %v1150 = vld [vmem:[%s1137 + $0x60] sm:$0xff]
        %v1151 = vld [vmem:[%s1137 + $0x68] sm:$0xff]
        %v1152 = vld [vmem:[%s1137 + $0x70] sm:$0xff]
        %v1153 = vld [vmem:[%s1137 + $0x78] sm:$0xff]
        %v1154 = vld [vmem:[%s1137 + $0x80] sm:$0xff]
        %v1155 = vld [vmem:[%s1137 + $0x88] sm:$0xff]
        %v1156 = vld [vmem:[%s1137 + $0x90] sm:$0xff]
        %v1157 = vld [vmem:[%s1137 + $0x98] sm:$0xff]
        %v1158 = vld [vmem:[%s1137 + $0xa0] sm:$0xff]
        %v1159 = vld [vmem:[%s1137 + $0xa8] sm:$0xff]
        %v1160 = vld [vmem:[%s1137 + $0xb0] sm:$0xff]
        %v1161 = vld [vmem:[%s1137 + $0xb8] sm:$0xff]
        %v1162 = vld [vmem:[%s1137 + $0xc0] sm:$0xff]
        %v1163 = vld [vmem:[%s1137 + $0xc8] sm:$0xff]
        %v1164 = vld [vmem:[%s1137 + $0xd0] sm:$0xff]
        %v1165 = vld [vmem:[%s1137 + $0xd8] sm:$0xff]
        %v1166 = vld [vmem:[%s1137 + $0xe0] sm:$0xff]
        %v1167 = vld [vmem:[%s1137 + $0xe8] sm:$0xff]
        %v1168 = vld [vmem:[%s1137 + $0xf0] sm:$0xff]
        %v1169 = vld [vmem:[%s1137 + $0xf8] sm:$0xff]
        %v1170 = vld [vmem:[%s1137 + $0x100] sm:$0xff]
        %v1171 = vld [vmem:[%s1137 + $0x108] sm:$0xff]
        %v1172 = vld [vmem:[%s1137 + $0x110] sm:$0xff]
        %v1173 = vld [vmem:[%s1137 + $0x118] sm:$0xff]
        %v1174 = vld [vmem:[%s1137 + $0x120] sm:$0xff]
        %v1175 = vld [vmem:[%s1137 + $0x128] sm:$0xff]
        %v1176 = vld [vmem:[%s1137 + $0x130] sm:$0xff]
        %v1177 = vld [vmem:[%s1137 + $0x138] sm:$0xff]
        %v1178 = vld [vmem:[%s1137 + $0x140] sm:$0xff]
        %v1179 = vld [vmem:[%s1137 + $0x148] sm:$0xff]
        %v1180 = vld [vmem:[%s1137 + $0x150] sm:$0xff]
        %v1181 = vld [vmem:[%s1137 + $0x158] sm:$0xff]
        %v1182 = vld [vmem:[%s1137 + $0x160] sm:$0xff]
        %v1183 = vld [vmem:[%s1137 + $0x168] sm:$0xff]
        %v1184 = vld [vmem:[%s1137 + $0x170] sm:$0xff]
        %v1185 = vld [vmem:[%s1137 + $0x178] sm:$0xff]
        %v1188 = vrot.slane %v1135, 1
        %v1189 = vrot.slane %v1136, 1
        %v1191 = vsel %vm677, %v1189, 0
        %1193 = vmatprep.subr.mxu0 %v1169
        %1194 = vmatpush1.msra.mxu0 %v1168
        %1195 = vmatprep.subr.mxu0 %v1167
        %1196 = vmatpush1.msra.mxu0 %v1166
        %1197 = vmatprep.subr.mxu0 %v1165
        %1198 = vmatpush1.msra.mxu0 %v1164
        %1199 = vmatprep.subr.mxu0 %v1163
        %1200 = vmatpush1.msra.mxu0 %v1162
        %1201 = vmatprep.subr.mxu0 %v1161
        %1202 = vmatpush1.msra.mxu0 %v1160
        %1203 = vmatprep.subr.mxu0 %v1159
        %1204 = vmatpush1.msra.mxu0 %v1158
        %1205 = vmatprep.subr.mxu0 %v1157
        %1206 = vmatpush1.msra.mxu0 %v1156
        %1207 = vmatprep.subr.mxu0 %v1155
        %1208 = vmatpush1.msra.mxu0 %v1154
        %1209 = vmatprep.subr.mxu0 %v1153
        %1210 = vmatpush1.msra.mxu0 %v1152
        %1211 = vmatprep.subr.mxu0 %v1151
        %1212 = vmatpush1.msra.mxu0 %v1150
        %1213 = vmatprep.subr.mxu0 %v1149
        %1214 = vmatpush1.msra.mxu0 %v1148
        %1215 = vmatprep.subr.mxu0 %v1147
        %1216 = vmatpush1.msra.mxu0 %v1146
        %1217 = vmatprep.subr.mxu0 %v1145
        %1218 = vmatpush1.msra.mxu0 %v1144
        %1219 = vmatprep.subr.mxu0 %v1143
        %1220 = vmatpush1.msra.mxu0 %v1142
        %1221 = vmatprep.subr.mxu0 %v1141
        %1222 = vmatpush1.msra.mxu0 %v1140
        %1223 = vmatprep.subr.mxu0 %v1139
        %1224 = vmatpush1.msra.mxu0 %v1138
        %1225 = vmatprep.subr.mxu0 0.0
        %1226 = vmatpush2.msra.mxu0 0.0
        %1227 = vmatprep.subr.mxu0 0.0
        %1228 = vmatpush2.msra.mxu0 0.0
        %1229 = vmatprep.subr.mxu0 0.0
        %1230 = vmatpush2.msra.mxu0 0.0
        %1231 = vmatprep.subr.mxu0 0.0
        %1232 = vmatpush2.msra.mxu0 0.0
        %1233 = vmatprep.subr.mxu0 0.0
        %1234 = vmatpush2.msra.mxu0 0.0
        %1235 = vmatprep.subr.mxu0 0.0
        %1236 = vmatpush2.msra.mxu0 0.0
        %1237 = vmatprep.subr.mxu0 0.0
        %1238 = vmatpush2.msra.mxu0 0.0
        %1239 = vmatprep.subr.mxu0 0.0
        %1240 = vmatpush2.msra.mxu0 0.0
        %1241 = vmatprep.subr.mxu0 %v1185
        %1242 = vmatpush2.msra.mxu0 %v1184
        %1243 = vmatprep.subr.mxu0 %v1183
        %1244 = vmatpush2.msra.mxu0 %v1182
        %1245 = vmatprep.subr.mxu0 %v1181
        %1246 = vmatpush2.msra.mxu0 %v1180
        %1247 = vmatprep.subr.mxu0 %v1179
        %1248 = vmatpush2.msra.mxu0 %v1178
        %1249 = vmatprep.subr.mxu0 %v1177
        %1250 = vmatpush2.msra.mxu0 %v1176
        %1251 = vmatprep.subr.mxu0 %v1175
        %1252 = vmatpush2.msra.mxu0 %v1174
        %1253 = vmatprep.subr.mxu0 %v1173
        %1254 = vmatpush2.msra.mxu0 %v1172
        %1255 = vmatprep.subr.mxu0 %v1171
        %1256 = vmatpush2.msra.mxu0 %v1170
        %1257 = vmatprep.mubr.f32.mxu0 %v1191
        %1258 = vmatmul.mubr.f32.gmra.mxu0 %v1188
        %v1259 = vpop.f32.mrf.mxu0
        %v1260 = vadd.f32 0.0, %v1259
        %v1261 = vpop.f32.mrf.mxu0
        %v1262 = vadd.f32 0.0, %v1261
        %1263 = vdwg.mxu0
        %v1265 = vsel %vm677, %v1086, 0
        %1267 = vmatprep.subr.mxu0 %v1118
        %1268 = vmatpush1.msra.mxu0 %v1117
        %1269 = vmatprep.subr.mxu0 %v1116
        %1270 = vmatpush1.msra.mxu0 %v1115
        %1271 = vmatprep.subr.mxu0 %v1114
        %1272 = vmatpush1.msra.mxu0 %v1113
        %1273 = vmatprep.subr.mxu0 %v1112
        %1274 = vmatpush1.msra.mxu0 %v1111
        %1275 = vmatprep.subr.mxu0 %v1110
        %1276 = vmatpush1.msra.mxu0 %v1109
        %1277 = vmatprep.subr.mxu0 %v1108
        %1278 = vmatpush1.msra.mxu0 %v1107
        %1279 = vmatprep.subr.mxu0 %v1106
        %1280 = vmatpush1.msra.mxu0 %v1105
        %1281 = vmatprep.subr.mxu0 %v1104
        %1282 = vmatpush1.msra.mxu0 %v1103
        %1283 = vmatprep.subr.mxu0 %v1102
        %1284 = vmatpush1.msra.mxu0 %v1101
        %1285 = vmatprep.subr.mxu0 %v1100
        %1286 = vmatpush1.msra.mxu0 %v1099
        %1287 = vmatprep.subr.mxu0 %v1098
        %1288 = vmatpush1.msra.mxu0 %v1097
        %1289 = vmatprep.subr.mxu0 %v1096
        %1290 = vmatpush1.msra.mxu0 %v1095
        %1291 = vmatprep.subr.mxu0 %v1094
        %1292 = vmatpush1.msra.mxu0 %v1093
        %1293 = vmatprep.subr.mxu0 %v1092
        %1294 = vmatpush1.msra.mxu0 %v1091
        %1295 = vmatprep.subr.mxu0 %v1090
        %1296 = vmatpush1.msra.mxu0 %v1089
        %1297 = vmatprep.subr.mxu0 %v1088
        %1298 = vmatpush1.msra.mxu0 %v1087
        %1299 = vmatprep.subr.mxu0 0.0
        %1300 = vmatpush2.msra.mxu0 0.0
        %1301 = vmatprep.subr.mxu0 0.0
        %1302 = vmatpush2.msra.mxu0 0.0
        %1303 = vmatprep.subr.mxu0 0.0
        %1304 = vmatpush2.msra.mxu0 0.0
        %1305 = vmatprep.subr.mxu0 0.0
        %1306 = vmatpush2.msra.mxu0 0.0
        %1307 = vmatprep.subr.mxu0 0.0
        %1308 = vmatpush2.msra.mxu0 0.0
        %1309 = vmatprep.subr.mxu0 0.0
        %1310 = vmatpush2.msra.mxu0 0.0
        %1311 = vmatprep.subr.mxu0 0.0
        %1312 = vmatpush2.msra.mxu0 0.0
        %1313 = vmatprep.subr.mxu0 0.0
        %1314 = vmatpush2.msra.mxu0 0.0
        %1315 = vmatprep.subr.mxu0 %v1134
        %1316 = vmatpush2.msra.mxu0 %v1133
        %1317 = vmatprep.subr.mxu0 %v1132
        %1318 = vmatpush2.msra.mxu0 %v1131
        %1319 = vmatprep.subr.mxu0 %v1130
        %1320 = vmatpush2.msra.mxu0 %v1129
        %1321 = vmatprep.subr.mxu0 %v1128
        %1322 = vmatpush2.msra.mxu0 %v1127
        %1323 = vmatprep.subr.mxu0 %v1126
        %1324 = vmatpush2.msra.mxu0 %v1125
        %1325 = vmatprep.subr.mxu0 %v1124
        %1326 = vmatpush2.msra.mxu0 %v1123
        %1327 = vmatprep.subr.mxu0 %v1122
        %1328 = vmatpush2.msra.mxu0 %v1121
        %1329 = vmatprep.subr.mxu0 %v1120
        %1330 = vmatpush2.msra.mxu0 %v1119
        %1331 = vmatprep.mubr.f32.mxu0 %v1265
        %1332 = vmatmul.mubr.f32.gmra.mxu0 %v1085
        %v1333 = vpop.f32.mrf.mxu0
        %v1334 = vadd.f32 %v1260, %v1333
        %v1335 = vpop.f32.mrf.mxu0
        %v1336 = vadd.f32 %v1262, %v1335
        %1337 = vdwg.mxu0
        %v1338 = vld [vmem:[#allocation3] sm:$0x3c]
        %v1339 = vld [vmem:[#allocation3 + $0x8] sm:$0x3c]
        %s1340 = scalar_lea.vmem %s6, 768
        %v1341 = vld [vmem:[%s1340] sm:$0xff]
        %v1342 = vld [vmem:[%s1340 + $0x8] sm:$0xff]
        %v1343 = vld [vmem:[%s1340 + $0x10] sm:$0xff]
        %v1344 = vld [vmem:[%s1340 + $0x18] sm:$0xff]
        %v1345 = vld [vmem:[%s1340 + $0x20] sm:$0xff]
        %v1346 = vld [vmem:[%s1340 + $0x28] sm:$0xff]
        %v1347 = vld [vmem:[%s1340 + $0x30] sm:$0xff]
        %v1348 = vld [vmem:[%s1340 + $0x38] sm:$0xff]
        %v1349 = vld [vmem:[%s1340 + $0x40] sm:$0xff]
        %v1350 = vld [vmem:[%s1340 + $0x48] sm:$0xff]
        %v1351 = vld [vmem:[%s1340 + $0x50] sm:$0xff]
        %v1352 = vld [vmem:[%s1340 + $0x58] sm:$0xff]
        %v1353 = vld [vmem:[%s1340 + $0x60] sm:$0xff]
        %v1354 = vld [vmem:[%s1340 + $0x68] sm:$0xff]
        %v1355 = vld [vmem:[%s1340 + $0x70] sm:$0xff]
        %v1356 = vld [vmem:[%s1340 + $0x78] sm:$0xff]
        %v1357 = vld [vmem:[%s1340 + $0x80] sm:$0xff]
        %v1358 = vld [vmem:[%s1340 + $0x88] sm:$0xff]
        %v1359 = vld [vmem:[%s1340 + $0x90] sm:$0xff]
        %v1360 = vld [vmem:[%s1340 + $0x98] sm:$0xff]
        %v1361 = vld [vmem:[%s1340 + $0xa0] sm:$0xff]
        %v1362 = vld [vmem:[%s1340 + $0xa8] sm:$0xff]
        %v1363 = vld [vmem:[%s1340 + $0xb0] sm:$0xff]
        %v1364 = vld [vmem:[%s1340 + $0xb8] sm:$0xff]
        %v1365 = vld [vmem:[%s1340 + $0xc0] sm:$0xff]
        %v1366 = vld [vmem:[%s1340 + $0xc8] sm:$0xff]
        %v1367 = vld [vmem:[%s1340 + $0xd0] sm:$0xff]
        %v1368 = vld [vmem:[%s1340 + $0xd8] sm:$0xff]
        %v1369 = vld [vmem:[%s1340 + $0xe0] sm:$0xff]
        %v1370 = vld [vmem:[%s1340 + $0xe8] sm:$0xff]
        %v1371 = vld [vmem:[%s1340 + $0xf0] sm:$0xff]
        %v1372 = vld [vmem:[%s1340 + $0xf8] sm:$0xff]
        %v1373 = vld [vmem:[%s1340 + $0x100] sm:$0xff]
        %v1374 = vld [vmem:[%s1340 + $0x108] sm:$0xff]
        %v1375 = vld [vmem:[%s1340 + $0x110] sm:$0xff]
        %v1376 = vld [vmem:[%s1340 + $0x118] sm:$0xff]
        %v1377 = vld [vmem:[%s1340 + $0x120] sm:$0xff]
        %v1378 = vld [vmem:[%s1340 + $0x128] sm:$0xff]
        %v1379 = vld [vmem:[%s1340 + $0x130] sm:$0xff]
        %v1380 = vld [vmem:[%s1340 + $0x138] sm:$0xff]
        %v1381 = vld [vmem:[%s1340 + $0x140] sm:$0xff]
        %v1382 = vld [vmem:[%s1340 + $0x148] sm:$0xff]
        %v1383 = vld [vmem:[%s1340 + $0x150] sm:$0xff]
        %v1384 = vld [vmem:[%s1340 + $0x158] sm:$0xff]
        %v1385 = vld [vmem:[%s1340 + $0x160] sm:$0xff]
        %v1386 = vld [vmem:[%s1340 + $0x168] sm:$0xff]
        %v1387 = vld [vmem:[%s1340 + $0x170] sm:$0xff]
        %v1388 = vld [vmem:[%s1340 + $0x178] sm:$0xff]
        %v1391 = vrot.slane %v1338, 2
        %v1392 = vrot.slane %v1339, 2
        %v1394 = vsel %vm677, %v1392, 0
        %1396 = vmatprep.subr.mxu0 %v1372
        %1397 = vmatpush1.msra.mxu0 %v1371
        %1398 = vmatprep.subr.mxu0 %v1370
        %1399 = vmatpush1.msra.mxu0 %v1369
        %1400 = vmatprep.subr.mxu0 %v1368
        %1401 = vmatpush1.msra.mxu0 %v1367
        %1402 = vmatprep.subr.mxu0 %v1366
        %1403 = vmatpush1.msra.mxu0 %v1365
        %1404 = vmatprep.subr.mxu0 %v1364
        %1405 = vmatpush1.msra.mxu0 %v1363
        %1406 = vmatprep.subr.mxu0 %v1362
        %1407 = vmatpush1.msra.mxu0 %v1361
        %1408 = vmatprep.subr.mxu0 %v1360
        %1409 = vmatpush1.msra.mxu0 %v1359
        %1410 = vmatprep.subr.mxu0 %v1358
        %1411 = vmatpush1.msra.mxu0 %v1357
        %1412 = vmatprep.subr.mxu0 %v1356
        %1413 = vmatpush1.msra.mxu0 %v1355
        %1414 = vmatprep.subr.mxu0 %v1354
        %1415 = vmatpush1.msra.mxu0 %v1353
        %1416 = vmatprep.subr.mxu0 %v1352
        %1417 = vmatpush1.msra.mxu0 %v1351
        %1418 = vmatprep.subr.mxu0 %v1350
        %1419 = vmatpush1.msra.mxu0 %v1349
        %1420 = vmatprep.subr.mxu0 %v1348
        %1421 = vmatpush1.msra.mxu0 %v1347
        %1422 = vmatprep.subr.mxu0 %v1346
        %1423 = vmatpush1.msra.mxu0 %v1345
        %1424 = vmatprep.subr.mxu0 %v1344
        %1425 = vmatpush1.msra.mxu0 %v1343
        %1426 = vmatprep.subr.mxu0 %v1342
        %1427 = vmatpush1.msra.mxu0 %v1341
        %1428 = vmatprep.subr.mxu0 0.0
        %1429 = vmatpush2.msra.mxu0 0.0
        %1430 = vmatprep.subr.mxu0 0.0
        %1431 = vmatpush2.msra.mxu0 0.0
        %1432 = vmatprep.subr.mxu0 0.0
        %1433 = vmatpush2.msra.mxu0 0.0
        %1434 = vmatprep.subr.mxu0 0.0
        %1435 = vmatpush2.msra.mxu0 0.0
        %1436 = vmatprep.subr.mxu0 0.0
        %1437 = vmatpush2.msra.mxu0 0.0
        %1438 = vmatprep.subr.mxu0 0.0
        %1439 = vmatpush2.msra.mxu0 0.0
        %1440 = vmatprep.subr.mxu0 0.0
        %1441 = vmatpush2.msra.mxu0 0.0
        %1442 = vmatprep.subr.mxu0 0.0
        %1443 = vmatpush2.msra.mxu0 0.0
        %1444 = vmatprep.subr.mxu0 %v1388
        %1445 = vmatpush2.msra.mxu0 %v1387
        %1446 = vmatprep.subr.mxu0 %v1386
        %1447 = vmatpush2.msra.mxu0 %v1385
        %1448 = vmatprep.subr.mxu0 %v1384
        %1449 = vmatpush2.msra.mxu0 %v1383
        %1450 = vmatprep.subr.mxu0 %v1382
        %1451 = vmatpush2.msra.mxu0 %v1381
        %1452 = vmatprep.subr.mxu0 %v1380
        %1453 = vmatpush2.msra.mxu0 %v1379
        %1454 = vmatprep.subr.mxu0 %v1378
        %1455 = vmatpush2.msra.mxu0 %v1377
        %1456 = vmatprep.subr.mxu0 %v1376
        %1457 = vmatpush2.msra.mxu0 %v1375
        %1458 = vmatprep.subr.mxu0 %v1374
        %1459 = vmatpush2.msra.mxu0 %v1373
        %1460 = vmatprep.mubr.f32.mxu0 %v1394
        %1461 = vmatmul.mubr.f32.gmra.mxu0 %v1391
        %v1462 = vpop.f32.mrf.mxu0
        %v1463 = vadd.f32 0.0, %v1462
        %v1464 = vpop.f32.mrf.mxu0
        %v1465 = vadd.f32 0.0, %v1464
        %1466 = vdwg.mxu0
        %v1467 = vadd.f32 %v1334, %v1463
        %v1468 = vadd.f32 %v1336, %v1465
        %v1469 = vld [vmem:[%s7] sm:$0x3]
        %v1471 = vlaneseq
        %v1472 = vshrl.u32 %v1471, 7
        %v1473 = vsub.s32 0, %v1472
        %v1474 = vrot.slane %v1469, %v1473
        %v1475 = vlaneseq
        %v1476 = vshrl.u32 %v1475, 7
        %v1477 = vsub.s32 1, %v1476
        %v1478 = vrot.slane %v1469, %v1477
        %v1481 = vadd.f32 %v1467, %v1474
        %v1482 = vadd.f32 %v1468, %v1478
        %v1483 = vmax.f32 %v1481, 0.0
        %v1484 = vmax.f32 %v1482, 0.0
        %v1485 = vld [vmem:[#allocation2] sm:$0x1e]
        %v1486 = vld [vmem:[#allocation2 + $0x8] sm:$0x1e]
        %v1487 = vld [vmem:[#allocation2 + $0x10] sm:$0x1e]
        %v1491 = vrot.slane %v1485, 1
        %v1492 = vrot.slane %v1486, 1
        %v1493 = vrot.slane %v1487, 1
        %1494 = vrot.lane.b32.xlu0 %v1491, 64
        %v1495 = vpop.permute.xlu0 %1494
        %1496 = vrot.lane.b32.xlu0 %v1492, 64
        %v1497 = vpop.permute.xlu0 %1496
        %1498 = vrot.lane.b32.xlu0 %v1493, 64
        %v1499 = vpop.permute.xlu0 %1498
        %v1500 = vsel %vm677, %v1495, %v1497
        %v1501 = vsel %vm677, %v1497, %v1499
        %v1504 = vadd.f32 %v1483, %v1500
        %v1505 = vadd.f32 %v1484, %v1501
        %v1508 = vrot.slane %v1504, 7
        %v1509 = vrot.slane %v1505, 7
        %1510 = vrot.lane.b32.xlu0 %v1508, 64
        %v1511 = vpop.permute.xlu0 %1510
        %1512 = vrot.lane.b32.xlu0 %v1509, 64
        %v1513 = vpop.permute.xlu0 %1512
        %v1514 = vsel %vm677, %v1511, %v1513
        %1518 = vst.msk [vmem:[#allocation4] sm:$0x1e] %vm682, %v1511
        %1519 = vst [vmem:[#allocation4 + $0x8] sm:$0x1e] %v1514
        %1520 = vst.msk [vmem:[#allocation4 + $0x10] sm:$0x1e] %vm685, %v1513
        %v1521 = vld [vmem:[#allocation4] sm:$0xf]
        %v1522 = vld [vmem:[#allocation4 + $0x8] sm:$0xf]
        %v1523 = vld [vmem:[#allocation4 + $0x10] sm:$0xf]
        %v1524 = vld [vmem:[#allocation7] sm:$0xff]
        %v1525 = vld [vmem:[#allocation7 + $0x8] sm:$0xff]
        %v1526 = vld [vmem:[#allocation7 + $0x10] sm:$0xff]
        %v1527 = vld [vmem:[#allocation7 + $0x18] sm:$0xff]
        %v1528 = vld [vmem:[#allocation7 + $0x20] sm:$0xff]
        %v1529 = vld [vmem:[#allocation7 + $0x28] sm:$0xff]
        %v1530 = vld [vmem:[#allocation7 + $0x30] sm:$0xff]
        %v1531 = vld [vmem:[#allocation7 + $0x38] sm:$0xff]
        %v1532 = vld [vmem:[#allocation7 + $0x40] sm:$0xff]
        %v1533 = vld [vmem:[#allocation7 + $0x48] sm:$0xff]
        %v1534 = vld [vmem:[#allocation7 + $0x50] sm:$0xff]
        %v1535 = vld [vmem:[#allocation7 + $0x58] sm:$0xff]
        %v1536 = vld [vmem:[#allocation7 + $0x60] sm:$0xff]
        %v1537 = vld [vmem:[#allocation7 + $0x68] sm:$0xff]
        %v1538 = vld [vmem:[#allocation7 + $0x70] sm:$0xff]
        %v1539 = vld [vmem:[#allocation7 + $0x78] sm:$0xff]
        %v1540 = vld [vmem:[#allocation7 + $0x80] sm:$0xff]
        %v1541 = vld [vmem:[#allocation7 + $0x88] sm:$0xff]
        %v1542 = vld [vmem:[#allocation7 + $0x90] sm:$0xff]
        %v1543 = vld [vmem:[#allocation7 + $0x98] sm:$0xff]
        %v1544 = vld [vmem:[#allocation7 + $0xa0] sm:$0xff]
        %v1545 = vld [vmem:[#allocation7 + $0xa8] sm:$0xff]
        %v1546 = vld [vmem:[#allocation7 + $0xb0] sm:$0xff]
        %v1547 = vld [vmem:[#allocation7 + $0xb8] sm:$0xff]
        %v1548 = vld [vmem:[#allocation7 + $0xc0] sm:$0xff]
        %v1549 = vld [vmem:[#allocation7 + $0xc8] sm:$0xff]
        %v1550 = vld [vmem:[#allocation7 + $0xd0] sm:$0xff]
        %v1551 = vld [vmem:[#allocation7 + $0xd8] sm:$0xff]
        %v1552 = vld [vmem:[#allocation7 + $0xe0] sm:$0xff]
        %v1553 = vld [vmem:[#allocation7 + $0xe8] sm:$0xff]
        %v1554 = vld [vmem:[#allocation7 + $0xf0] sm:$0xff]
        %v1555 = vld [vmem:[#allocation7 + $0xf8] sm:$0xff]
        %v1556 = vld [vmem:[#allocation7 + $0x100] sm:$0xff]
        %v1557 = vld [vmem:[#allocation7 + $0x108] sm:$0xff]
        %v1558 = vld [vmem:[#allocation7 + $0x110] sm:$0xff]
        %v1559 = vld [vmem:[#allocation7 + $0x118] sm:$0xff]
        %v1560 = vld [vmem:[#allocation7 + $0x120] sm:$0xff]
        %v1561 = vld [vmem:[#allocation7 + $0x128] sm:$0xff]
        %v1562 = vld [vmem:[#allocation7 + $0x130] sm:$0xff]
        %v1563 = vld [vmem:[#allocation7 + $0x138] sm:$0xff]
        %v1564 = vld [vmem:[#allocation7 + $0x140] sm:$0xff]
        %v1565 = vld [vmem:[#allocation7 + $0x148] sm:$0xff]
        %v1566 = vld [vmem:[#allocation7 + $0x150] sm:$0xff]
        %v1567 = vld [vmem:[#allocation7 + $0x158] sm:$0xff]
        %v1568 = vld [vmem:[#allocation7 + $0x160] sm:$0xff]
        %v1569 = vld [vmem:[#allocation7 + $0x168] sm:$0xff]
        %v1570 = vld [vmem:[#allocation7 + $0x170] sm:$0xff]
        %v1571 = vld [vmem:[#allocation7 + $0x178] sm:$0xff]
        %v1572 = vld [vmem:[#allocation4] sm:$0x1e]
        %v1573 = vld [vmem:[#allocation4 + $0x8] sm:$0x1e]
        %v1574 = vld [vmem:[#allocation4 + $0x10] sm:$0x1e]
        %s1575 = scalar_lea.vmem [#allocation7], 384
        %v1576 = vld [vmem:[%s1575] sm:$0xff]
        %v1577 = vld [vmem:[%s1575 + $0x8] sm:$0xff]
        %v1578 = vld [vmem:[%s1575 + $0x10] sm:$0xff]
        %v1579 = vld [vmem:[%s1575 + $0x18] sm:$0xff]
        %v1580 = vld [vmem:[%s1575 + $0x20] sm:$0xff]
        %v1581 = vld [vmem:[%s1575 + $0x28] sm:$0xff]
        %v1582 = vld [vmem:[%s1575 + $0x30] sm:$0xff]
        %v1583 = vld [vmem:[%s1575 + $0x38] sm:$0xff]
        %v1584 = vld [vmem:[%s1575 + $0x40] sm:$0xff]
        %v1585 = vld [vmem:[%s1575 + $0x48] sm:$0xff]
        %v1586 = vld [vmem:[%s1575 + $0x50] sm:$0xff]
        %v1587 = vld [vmem:[%s1575 + $0x58] sm:$0xff]
        %v1588 = vld [vmem:[%s1575 + $0x60] sm:$0xff]
        %v1589 = vld [vmem:[%s1575 + $0x68] sm:$0xff]
        %v1590 = vld [vmem:[%s1575 + $0x70] sm:$0xff]
        %v1591 = vld [vmem:[%s1575 + $0x78] sm:$0xff]
        %v1592 = vld [vmem:[%s1575 + $0x80] sm:$0xff]
        %v1593 = vld [vmem:[%s1575 + $0x88] sm:$0xff]
        %v1594 = vld [vmem:[%s1575 + $0x90] sm:$0xff]
        %v1595 = vld [vmem:[%s1575 + $0x98] sm:$0xff]
        %v1596 = vld [vmem:[%s1575 + $0xa0] sm:$0xff]
        %v1597 = vld [vmem:[%s1575 + $0xa8] sm:$0xff]
        %v1598 = vld [vmem:[%s1575 + $0xb0] sm:$0xff]
        %v1599 = vld [vmem:[%s1575 + $0xb8] sm:$0xff]
        %v1600 = vld [vmem:[%s1575 + $0xc0] sm:$0xff]
        %v1601 = vld [vmem:[%s1575 + $0xc8] sm:$0xff]
        %v1602 = vld [vmem:[%s1575 + $0xd0] sm:$0xff]
        %v1603 = vld [vmem:[%s1575 + $0xd8] sm:$0xff]
        %v1604 = vld [vmem:[%s1575 + $0xe0] sm:$0xff]
        %v1605 = vld [vmem:[%s1575 + $0xe8] sm:$0xff]
        %v1606 = vld [vmem:[%s1575 + $0xf0] sm:$0xff]
        %v1607 = vld [vmem:[%s1575 + $0xf8] sm:$0xff]
        %v1608 = vld [vmem:[%s1575 + $0x100] sm:$0xff]
        %v1609 = vld [vmem:[%s1575 + $0x108] sm:$0xff]
        %v1610 = vld [vmem:[%s1575 + $0x110] sm:$0xff]
        %v1611 = vld [vmem:[%s1575 + $0x118] sm:$0xff]
        %v1612 = vld [vmem:[%s1575 + $0x120] sm:$0xff]
        %v1613 = vld [vmem:[%s1575 + $0x128] sm:$0xff]
        %v1614 = vld [vmem:[%s1575 + $0x130] sm:$0xff]
        %v1615 = vld [vmem:[%s1575 + $0x138] sm:$0xff]
        %v1616 = vld [vmem:[%s1575 + $0x140] sm:$0xff]
        %v1617 = vld [vmem:[%s1575 + $0x148] sm:$0xff]
        %v1618 = vld [vmem:[%s1575 + $0x150] sm:$0xff]
        %v1619 = vld [vmem:[%s1575 + $0x158] sm:$0xff]
        %v1620 = vld [vmem:[%s1575 + $0x160] sm:$0xff]
        %v1621 = vld [vmem:[%s1575 + $0x168] sm:$0xff]
        %v1622 = vld [vmem:[%s1575 + $0x170] sm:$0xff]
        %v1623 = vld [vmem:[%s1575 + $0x178] sm:$0xff]
        %v1627 = vrot.slane %v1572, 1
        %v1628 = vrot.slane %v1573, 1
        %v1629 = vrot.slane %v1574, 1
        %1633 = vmatprep.subr.mxu0 0.0
        %1634 = vmatpush1.msra.mxu0 %v1591
        %1635 = vmatprep.subr.mxu0 0.0
        %1636 = vmatpush1.msra.mxu0 %v1590
        %1637 = vmatprep.subr.mxu0 0.0
        %1638 = vmatpush1.msra.mxu0 %v1589
        %1639 = vmatprep.subr.mxu0 0.0
        %1640 = vmatpush1.msra.mxu0 %v1588
        %1641 = vmatprep.subr.mxu0 0.0
        %1642 = vmatpush1.msra.mxu0 %v1587
        %1643 = vmatprep.subr.mxu0 0.0
        %1644 = vmatpush1.msra.mxu0 %v1586
        %1645 = vmatprep.subr.mxu0 0.0
        %1646 = vmatpush1.msra.mxu0 %v1585
        %1647 = vmatprep.subr.mxu0 0.0
        %1648 = vmatpush1.msra.mxu0 %v1584
        %1649 = vmatprep.subr.mxu0 0.0
        %1650 = vmatpush1.msra.mxu0 %v1583
        %1651 = vmatprep.subr.mxu0 0.0
        %1652 = vmatpush1.msra.mxu0 %v1582
        %1653 = vmatprep.subr.mxu0 0.0
        %1654 = vmatpush1.msra.mxu0 %v1581
        %1655 = vmatprep.subr.mxu0 0.0
        %1656 = vmatpush1.msra.mxu0 %v1580
        %1657 = vmatprep.subr.mxu0 0.0
        %1658 = vmatpush1.msra.mxu0 %v1579
        %1659 = vmatprep.subr.mxu0 0.0
        %1660 = vmatpush1.msra.mxu0 %v1578
        %1661 = vmatprep.subr.mxu0 0.0
        %1662 = vmatpush1.msra.mxu0 %v1577
        %1663 = vmatprep.subr.mxu0 0.0
        %1664 = vmatpush1.msra.mxu0 %v1576
        %1665 = vmatprep.subr.mxu0 0.0
        %1666 = vmatpush2.msra.mxu0 %v1607
        %1667 = vmatprep.subr.mxu0 0.0
        %1668 = vmatpush2.msra.mxu0 %v1606
        %1669 = vmatprep.subr.mxu0 0.0
        %1670 = vmatpush2.msra.mxu0 %v1605
        %1671 = vmatprep.subr.mxu0 0.0
        %1672 = vmatpush2.msra.mxu0 %v1604
        %1673 = vmatprep.subr.mxu0 0.0
        %1674 = vmatpush2.msra.mxu0 %v1603
        %1675 = vmatprep.subr.mxu0 0.0
        %1676 = vmatpush2.msra.mxu0 %v1602
        %1677 = vmatprep.subr.mxu0 0.0
        %1678 = vmatpush2.msra.mxu0 %v1601
        %1679 = vmatprep.subr.mxu0 0.0
        %1680 = vmatpush2.msra.mxu0 %v1600
        %1681 = vmatprep.subr.mxu0 0.0
        %1682 = vmatpush2.msra.mxu0 %v1599
        %1683 = vmatprep.subr.mxu0 0.0
        %1684 = vmatpush2.msra.mxu0 %v1598
        %1685 = vmatprep.subr.mxu0 0.0
        %1686 = vmatpush2.msra.mxu0 %v1597
        %1687 = vmatprep.subr.mxu0 0.0
        %1688 = vmatpush2.msra.mxu0 %v1596
        %1689 = vmatprep.subr.mxu0 0.0
        %1690 = vmatpush2.msra.mxu0 %v1595
        %1691 = vmatprep.subr.mxu0 0.0
        %1692 = vmatpush2.msra.mxu0 %v1594
        %1693 = vmatprep.subr.mxu0 0.0
        %1694 = vmatpush2.msra.mxu0 %v1593
        %1695 = vmatprep.subr.mxu0 0.0
        %1696 = vmatpush2.msra.mxu0 %v1592
        %1697 = vmatprep.mubr.f32.mxu0 %v1628
        %1698 = vmatmul.mubr.f32.gmra.mxu0 %v1627
        %v1699 = vpop.f32.mrf.mxu0
        %v1700 = vadd.f32 0.0, %v1699
        %v1701 = vpop.f32.mrf.mxu0
        %1702 = vdwg.mxu0
        %1703 = vmatprep.subr.mxu0 0.0
        %1704 = vmatpush1.msra.mxu0 %v1623
        %1705 = vmatprep.subr.mxu0 0.0
        %1706 = vmatpush1.msra.mxu0 %v1622
        %1707 = vmatprep.subr.mxu0 0.0
        %1708 = vmatpush1.msra.mxu0 %v1621
        %1709 = vmatprep.subr.mxu0 0.0
        %1710 = vmatpush1.msra.mxu0 %v1620
        %1711 = vmatprep.subr.mxu0 0.0
        %1712 = vmatpush1.msra.mxu0 %v1619
        %1713 = vmatprep.subr.mxu0 0.0
        %1714 = vmatpush1.msra.mxu0 %v1618
        %1715 = vmatprep.subr.mxu0 0.0
        %1716 = vmatpush1.msra.mxu0 %v1617
        %1717 = vmatprep.subr.mxu0 0.0
        %1718 = vmatpush1.msra.mxu0 %v1616
        %1719 = vmatprep.subr.mxu0 0.0
        %1720 = vmatpush1.msra.mxu0 %v1615
        %1721 = vmatprep.subr.mxu0 0.0
        %1722 = vmatpush1.msra.mxu0 %v1614
        %1723 = vmatprep.subr.mxu0 0.0
        %1724 = vmatpush1.msra.mxu0 %v1613
        %1725 = vmatprep.subr.mxu0 0.0
        %1726 = vmatpush1.msra.mxu0 %v1612
        %1727 = vmatprep.subr.mxu0 0.0
        %1728 = vmatpush1.msra.mxu0 %v1611
        %1729 = vmatprep.subr.mxu0 0.0
        %1730 = vmatpush1.msra.mxu0 %v1610
        %1731 = vmatprep.subr.mxu0 0.0
        %1732 = vmatpush1.msra.mxu0 %v1609
        %1733 = vmatprep.subr.mxu0 0.0
        %1734 = vmatpush1.msra.mxu0 %v1608
        %1735 = vmatprep.subr.mxu0 0.0
        %1736 = vmatpush2.msra.mxu0 0.0
        %1737 = vmatprep.subr.mxu0 0.0
        %1738 = vmatpush2.msra.mxu0 0.0
        %1739 = vmatprep.subr.mxu0 0.0
        %1740 = vmatpush2.msra.mxu0 0.0
        %1741 = vmatprep.subr.mxu0 0.0
        %1742 = vmatpush2.msra.mxu0 0.0
        %1743 = vmatprep.subr.mxu0 0.0
        %1744 = vmatpush2.msra.mxu0 0.0
        %1745 = vmatprep.subr.mxu0 0.0
        %1746 = vmatpush2.msra.mxu0 0.0
        %1747 = vmatprep.subr.mxu0 0.0
        %1748 = vmatpush2.msra.mxu0 0.0
        %1749 = vmatprep.subr.mxu0 0.0
        %1750 = vmatpush2.msra.mxu0 0.0
        %1751 = vmatprep.subr.mxu0 0.0
        %1752 = vmatpush2.msra.mxu0 0.0
        %1753 = vmatprep.subr.mxu0 0.0
        %1754 = vmatpush2.msra.mxu0 0.0
        %1755 = vmatprep.subr.mxu0 0.0
        %1756 = vmatpush2.msra.mxu0 0.0
        %1757 = vmatprep.subr.mxu0 0.0
        %1758 = vmatpush2.msra.mxu0 0.0
        %1759 = vmatprep.subr.mxu0 0.0
        %1760 = vmatpush2.msra.mxu0 0.0
        %1761 = vmatprep.subr.mxu0 0.0
        %1762 = vmatpush2.msra.mxu0 0.0
        %1763 = vmatprep.subr.mxu0 0.0
        %1764 = vmatpush2.msra.mxu0 0.0
        %1765 = vmatprep.subr.mxu0 0.0
        %1766 = vmatpush2.msra.mxu0 0.0
        %1767 = vmatprep.mubr.f32.mxu0 0.0
        %1768 = vmatmul.mubr.f32.gmra.mxu0 %v1629
        %v1769 = vpop.f32.mrf.mxu0
        %v1770 = vadd.f32 %v1700, %v1769
        %v1771 = vpop.f32.mrf.mxu0
        %1772 = vdwg.mxu0
        %1773 = vmatprep.subr.mxu0 0.0
        %1774 = vmatpush1.msra.mxu0 %v1539
        %1775 = vmatprep.subr.mxu0 0.0
        %1776 = vmatpush1.msra.mxu0 %v1538
        %1777 = vmatprep.subr.mxu0 0.0
        %1778 = vmatpush1.msra.mxu0 %v1537
        %1779 = vmatprep.subr.mxu0 0.0
        %1780 = vmatpush1.msra.mxu0 %v1536
        %1781 = vmatprep.subr.mxu0 0.0
        %1782 = vmatpush1.msra.mxu0 %v1535
        %1783 = vmatprep.subr.mxu0 0.0
        %1784 = vmatpush1.msra.mxu0 %v1534
        %1785 = vmatprep.subr.mxu0 0.0
        %1786 = vmatpush1.msra.mxu0 %v1533
        %1787 = vmatprep.subr.mxu0 0.0
        %1788 = vmatpush1.msra.mxu0 %v1532
        %1789 = vmatprep.subr.mxu0 0.0
        %1790 = vmatpush1.msra.mxu0 %v1531
        %1791 = vmatprep.subr.mxu0 0.0
        %1792 = vmatpush1.msra.mxu0 %v1530
        %1793 = vmatprep.subr.mxu0 0.0
        %1794 = vmatpush1.msra.mxu0 %v1529
        %1795 = vmatprep.subr.mxu0 0.0
        %1796 = vmatpush1.msra.mxu0 %v1528
        %1797 = vmatprep.subr.mxu0 0.0
        %1798 = vmatpush1.msra.mxu0 %v1527
        %1799 = vmatprep.subr.mxu0 0.0
        %1800 = vmatpush1.msra.mxu0 %v1526
        %1801 = vmatprep.subr.mxu0 0.0
        %1802 = vmatpush1.msra.mxu0 %v1525
        %1803 = vmatprep.subr.mxu0 0.0
        %1804 = vmatpush1.msra.mxu0 %v1524
        %1805 = vmatprep.subr.mxu0 0.0
        %1806 = vmatpush2.msra.mxu0 %v1555
        %1807 = vmatprep.subr.mxu0 0.0
        %1808 = vmatpush2.msra.mxu0 %v1554
        %1809 = vmatprep.subr.mxu0 0.0
        %1810 = vmatpush2.msra.mxu0 %v1553
        %1811 = vmatprep.subr.mxu0 0.0
        %1812 = vmatpush2.msra.mxu0 %v1552
        %1813 = vmatprep.subr.mxu0 0.0
        %1814 = vmatpush2.msra.mxu0 %v1551
        %1815 = vmatprep.subr.mxu0 0.0
        %1816 = vmatpush2.msra.mxu0 %v1550
        %1817 = vmatprep.subr.mxu0 0.0
        %1818 = vmatpush2.msra.mxu0 %v1549
        %1819 = vmatprep.subr.mxu0 0.0
        %1820 = vmatpush2.msra.mxu0 %v1548
        %1821 = vmatprep.subr.mxu0 0.0
        %1822 = vmatpush2.msra.mxu0 %v1547
        %1823 = vmatprep.subr.mxu0 0.0
        %1824 = vmatpush2.msra.mxu0 %v1546
        %1825 = vmatprep.subr.mxu0 0.0
        %1826 = vmatpush2.msra.mxu0 %v1545
        %1827 = vmatprep.subr.mxu0 0.0
        %1828 = vmatpush2.msra.mxu0 %v1544
        %1829 = vmatprep.subr.mxu0 0.0
        %1830 = vmatpush2.msra.mxu0 %v1543
        %1831 = vmatprep.subr.mxu0 0.0
        %1832 = vmatpush2.msra.mxu0 %v1542
        %1833 = vmatprep.subr.mxu0 0.0
        %1834 = vmatpush2.msra.mxu0 %v1541
        %1835 = vmatprep.subr.mxu0 0.0
        %1836 = vmatpush2.msra.mxu0 %v1540
        %1837 = vmatprep.mubr.f32.mxu0 %v1522
        %1838 = vmatmul.mubr.f32.gmra.mxu0 %v1521
        %v1839 = vpop.f32.mrf.mxu0
        %v1840 = vadd.f32 %v1770, %v1839
        %v1841 = vpop.f32.mrf.mxu0
        %1842 = vdwg.mxu0
        %1843 = vmatprep.subr.mxu0 0.0
        %1844 = vmatpush1.msra.mxu0 %v1571
        %1845 = vmatprep.subr.mxu0 0.0
        %1846 = vmatpush1.msra.mxu0 %v1570
        %1847 = vmatprep.subr.mxu0 0.0
        %1848 = vmatpush1.msra.mxu0 %v1569
        %1849 = vmatprep.subr.mxu0 0.0
        %1850 = vmatpush1.msra.mxu0 %v1568
        %1851 = vmatprep.subr.mxu0 0.0
        %1852 = vmatpush1.msra.mxu0 %v1567
        %1853 = vmatprep.subr.mxu0 0.0
        %1854 = vmatpush1.msra.mxu0 %v1566
        %1855 = vmatprep.subr.mxu0 0.0
        %1856 = vmatpush1.msra.mxu0 %v1565
        %1857 = vmatprep.subr.mxu0 0.0
        %1858 = vmatpush1.msra.mxu0 %v1564
        %1859 = vmatprep.subr.mxu0 0.0
        %1860 = vmatpush1.msra.mxu0 %v1563
        %1861 = vmatprep.subr.mxu0 0.0
        %1862 = vmatpush1.msra.mxu0 %v1562
        %1863 = vmatprep.subr.mxu0 0.0
        %1864 = vmatpush1.msra.mxu0 %v1561
        %1865 = vmatprep.subr.mxu0 0.0
        %1866 = vmatpush1.msra.mxu0 %v1560
        %1867 = vmatprep.subr.mxu0 0.0
        %1868 = vmatpush1.msra.mxu0 %v1559
        %1869 = vmatprep.subr.mxu0 0.0
        %1870 = vmatpush1.msra.mxu0 %v1558
        %1871 = vmatprep.subr.mxu0 0.0
        %1872 = vmatpush1.msra.mxu0 %v1557
        %1873 = vmatprep.subr.mxu0 0.0
        %1874 = vmatpush1.msra.mxu0 %v1556
        %1875 = vmatprep.subr.mxu0 0.0
        %1876 = vmatpush2.msra.mxu0 0.0
        %1877 = vmatprep.subr.mxu0 0.0
        %1878 = vmatpush2.msra.mxu0 0.0
        %1879 = vmatprep.subr.mxu0 0.0
        %1880 = vmatpush2.msra.mxu0 0.0
        %1881 = vmatprep.subr.mxu0 0.0
        %1882 = vmatpush2.msra.mxu0 0.0
        %1883 = vmatprep.subr.mxu0 0.0
        %1884 = vmatpush2.msra.mxu0 0.0
        %1885 = vmatprep.subr.mxu0 0.0
        %1886 = vmatpush2.msra.mxu0 0.0
        %1887 = vmatprep.subr.mxu0 0.0
        %1888 = vmatpush2.msra.mxu0 0.0
        %1889 = vmatprep.subr.mxu0 0.0
        %1890 = vmatpush2.msra.mxu0 0.0
        %1891 = vmatprep.subr.mxu0 0.0
        %1892 = vmatpush2.msra.mxu0 0.0
        %1893 = vmatprep.subr.mxu0 0.0
        %1894 = vmatpush2.msra.mxu0 0.0
        %1895 = vmatprep.subr.mxu0 0.0
        %1896 = vmatpush2.msra.mxu0 0.0
        %1897 = vmatprep.subr.mxu0 0.0
        %1898 = vmatpush2.msra.mxu0 0.0
        %1899 = vmatprep.subr.mxu0 0.0
        %1900 = vmatpush2.msra.mxu0 0.0
        %1901 = vmatprep.subr.mxu0 0.0
        %1902 = vmatpush2.msra.mxu0 0.0
        %1903 = vmatprep.subr.mxu0 0.0
        %1904 = vmatpush2.msra.mxu0 0.0
        %1905 = vmatprep.subr.mxu0 0.0
        %1906 = vmatpush2.msra.mxu0 0.0
        %1907 = vmatprep.mubr.f32.mxu0 0.0
        %1908 = vmatmul.mubr.f32.gmra.mxu0 %v1523
        %v1909 = vpop.f32.mrf.mxu0
        %v1910 = vadd.f32 %v1840, %v1909
        %v1911 = vpop.f32.mrf.mxu0
        %1912 = vdwg.mxu0
        %v1913 = vld [vmem:[#allocation4] sm:$0x3c]
        %v1914 = vld [vmem:[#allocation4 + $0x8] sm:$0x3c]
        %v1915 = vld [vmem:[#allocation4 + $0x10] sm:$0x3c]
        %s1916 = scalar_lea.vmem [#allocation7], 768
        %v1917 = vld [vmem:[%s1916] sm:$0xff]
        %v1918 = vld [vmem:[%s1916 + $0x8] sm:$0xff]
        %v1919 = vld [vmem:[%s1916 + $0x10] sm:$0xff]
        %v1920 = vld [vmem:[%s1916 + $0x18] sm:$0xff]
        %v1921 = vld [vmem:[%s1916 + $0x20] sm:$0xff]
        %v1922 = vld [vmem:[%s1916 + $0x28] sm:$0xff]
        %v1923 = vld [vmem:[%s1916 + $0x30] sm:$0xff]
        %v1924 = vld [vmem:[%s1916 + $0x38] sm:$0xff]
        %v1925 = vld [vmem:[%s1916 + $0x40] sm:$0xff]
        %v1926 = vld [vmem:[%s1916 + $0x48] sm:$0xff]
        %v1927 = vld [vmem:[%s1916 + $0x50] sm:$0xff]
        %v1928 = vld [vmem:[%s1916 + $0x58] sm:$0xff]
        %v1929 = vld [vmem:[%s1916 + $0x60] sm:$0xff]
        %v1930 = vld [vmem:[%s1916 + $0x68] sm:$0xff]
        %v1931 = vld [vmem:[%s1916 + $0x70] sm:$0xff]
        %v1932 = vld [vmem:[%s1916 + $0x78] sm:$0xff]
        %v1933 = vld [vmem:[%s1916 + $0x80] sm:$0xff]
        %v1934 = vld [vmem:[%s1916 + $0x88] sm:$0xff]
        %v1935 = vld [vmem:[%s1916 + $0x90] sm:$0xff]
        %v1936 = vld [vmem:[%s1916 + $0x98] sm:$0xff]
        %v1937 = vld [vmem:[%s1916 + $0xa0] sm:$0xff]
        %v1938 = vld [vmem:[%s1916 + $0xa8] sm:$0xff]
        %v1939 = vld [vmem:[%s1916 + $0xb0] sm:$0xff]
        %v1940 = vld [vmem:[%s1916 + $0xb8] sm:$0xff]
        %v1941 = vld [vmem:[%s1916 + $0xc0] sm:$0xff]
        %v1942 = vld [vmem:[%s1916 + $0xc8] sm:$0xff]
        %v1943 = vld [vmem:[%s1916 + $0xd0] sm:$0xff]
        %v1944 = vld [vmem:[%s1916 + $0xd8] sm:$0xff]
        %v1945 = vld [vmem:[%s1916 + $0xe0] sm:$0xff]
        %v1946 = vld [vmem:[%s1916 + $0xe8] sm:$0xff]
        %v1947 = vld [vmem:[%s1916 + $0xf0] sm:$0xff]
        %v1948 = vld [vmem:[%s1916 + $0xf8] sm:$0xff]
        %v1949 = vld [vmem:[%s1916 + $0x100] sm:$0xff]
        %v1950 = vld [vmem:[%s1916 + $0x108] sm:$0xff]
        %v1951 = vld [vmem:[%s1916 + $0x110] sm:$0xff]
        %v1952 = vld [vmem:[%s1916 + $0x118] sm:$0xff]
        %v1953 = vld [vmem:[%s1916 + $0x120] sm:$0xff]
        %v1954 = vld [vmem:[%s1916 + $0x128] sm:$0xff]
        %v1955 = vld [vmem:[%s1916 + $0x130] sm:$0xff]
        %v1956 = vld [vmem:[%s1916 + $0x138] sm:$0xff]
        %v1957 = vld [vmem:[%s1916 + $0x140] sm:$0xff]
        %v1958 = vld [vmem:[%s1916 + $0x148] sm:$0xff]
        %v1959 = vld [vmem:[%s1916 + $0x150] sm:$0xff]
        %v1960 = vld [vmem:[%s1916 + $0x158] sm:$0xff]
        %v1961 = vld [vmem:[%s1916 + $0x160] sm:$0xff]
        %v1962 = vld [vmem:[%s1916 + $0x168] sm:$0xff]
        %v1963 = vld [vmem:[%s1916 + $0x170] sm:$0xff]
        %v1964 = vld [vmem:[%s1916 + $0x178] sm:$0xff]
        %v1968 = vrot.slane %v1913, 2
        %v1969 = vrot.slane %v1914, 2
        %v1970 = vrot.slane %v1915, 2
        %1974 = vmatprep.subr.mxu0 0.0
        %1975 = vmatpush1.msra.mxu0 %v1932
        %1976 = vmatprep.subr.mxu0 0.0
        %1977 = vmatpush1.msra.mxu0 %v1931
        %1978 = vmatprep.subr.mxu0 0.0
        %1979 = vmatpush1.msra.mxu0 %v1930
        %1980 = vmatprep.subr.mxu0 0.0
        %1981 = vmatpush1.msra.mxu0 %v1929
        %1982 = vmatprep.subr.mxu0 0.0
        %1983 = vmatpush1.msra.mxu0 %v1928
        %1984 = vmatprep.subr.mxu0 0.0
        %1985 = vmatpush1.msra.mxu0 %v1927
        %1986 = vmatprep.subr.mxu0 0.0
        %1987 = vmatpush1.msra.mxu0 %v1926
        %1988 = vmatprep.subr.mxu0 0.0
        %1989 = vmatpush1.msra.mxu0 %v1925
        %1990 = vmatprep.subr.mxu0 0.0
        %1991 = vmatpush1.msra.mxu0 %v1924
        %1992 = vmatprep.subr.mxu0 0.0
        %1993 = vmatpush1.msra.mxu0 %v1923
        %1994 = vmatprep.subr.mxu0 0.0
        %1995 = vmatpush1.msra.mxu0 %v1922
        %1996 = vmatprep.subr.mxu0 0.0
        %1997 = vmatpush1.msra.mxu0 %v1921
        %1998 = vmatprep.subr.mxu0 0.0
        %1999 = vmatpush1.msra.mxu0 %v1920
        %2000 = vmatprep.subr.mxu0 0.0
        %2001 = vmatpush1.msra.mxu0 %v1919
        %2002 = vmatprep.subr.mxu0 0.0
        %2003 = vmatpush1.msra.mxu0 %v1918
        %2004 = vmatprep.subr.mxu0 0.0
        %2005 = vmatpush1.msra.mxu0 %v1917
        %2006 = vmatprep.subr.mxu0 0.0
        %2007 = vmatpush2.msra.mxu0 %v1948
        %2008 = vmatprep.subr.mxu0 0.0
        %2009 = vmatpush2.msra.mxu0 %v1947
        %2010 = vmatprep.subr.mxu0 0.0
        %2011 = vmatpush2.msra.mxu0 %v1946
        %2012 = vmatprep.subr.mxu0 0.0
        %2013 = vmatpush2.msra.mxu0 %v1945
        %2014 = vmatprep.subr.mxu0 0.0
        %2015 = vmatpush2.msra.mxu0 %v1944
        %2016 = vmatprep.subr.mxu0 0.0
        %2017 = vmatpush2.msra.mxu0 %v1943
        %2018 = vmatprep.subr.mxu0 0.0
        %2019 = vmatpush2.msra.mxu0 %v1942
        %2020 = vmatprep.subr.mxu0 0.0
        %2021 = vmatpush2.msra.mxu0 %v1941
        %2022 = vmatprep.subr.mxu0 0.0
        %2023 = vmatpush2.msra.mxu0 %v1940
        %2024 = vmatprep.subr.mxu0 0.0
        %2025 = vmatpush2.msra.mxu0 %v1939
        %2026 = vmatprep.subr.mxu0 0.0
        %2027 = vmatpush2.msra.mxu0 %v1938
        %2028 = vmatprep.subr.mxu0 0.0
        %2029 = vmatpush2.msra.mxu0 %v1937
        %2030 = vmatprep.subr.mxu0 0.0
        %2031 = vmatpush2.msra.mxu0 %v1936
        %2032 = vmatprep.subr.mxu0 0.0
        %2033 = vmatpush2.msra.mxu0 %v1935
        %2034 = vmatprep.subr.mxu0 0.0
        %2035 = vmatpush2.msra.mxu0 %v1934
        %2036 = vmatprep.subr.mxu0 0.0
        %2037 = vmatpush2.msra.mxu0 %v1933
        %2038 = vmatprep.mubr.f32.mxu0 %v1969
        %2039 = vmatmul.mubr.f32.gmra.mxu0 %v1968
        %v2040 = vpop.f32.mrf.mxu0
        %v2041 = vadd.f32 0.0, %v2040
        %v2042 = vpop.f32.mrf.mxu0
        %2043 = vdwg.mxu0
        %2044 = vmatprep.subr.mxu0 0.0
        %2045 = vmatpush1.msra.mxu0 %v1964
        %2046 = vmatprep.subr.mxu0 0.0
        %2047 = vmatpush1.msra.mxu0 %v1963
        %2048 = vmatprep.subr.mxu0 0.0
        %2049 = vmatpush1.msra.mxu0 %v1962
        %2050 = vmatprep.subr.mxu0 0.0
        %2051 = vmatpush1.msra.mxu0 %v1961
        %2052 = vmatprep.subr.mxu0 0.0
        %2053 = vmatpush1.msra.mxu0 %v1960
        %2054 = vmatprep.subr.mxu0 0.0
        %2055 = vmatpush1.msra.mxu0 %v1959
        %2056 = vmatprep.subr.mxu0 0.0
        %2057 = vmatpush1.msra.mxu0 %v1958
        %2058 = vmatprep.subr.mxu0 0.0
        %2059 = vmatpush1.msra.mxu0 %v1957
        %2060 = vmatprep.subr.mxu0 0.0
        %2061 = vmatpush1.msra.mxu0 %v1956
        %2062 = vmatprep.subr.mxu0 0.0
        %2063 = vmatpush1.msra.mxu0 %v1955
        %2064 = vmatprep.subr.mxu0 0.0
        %2065 = vmatpush1.msra.mxu0 %v1954
        %2066 = vmatprep.subr.mxu0 0.0
        %2067 = vmatpush1.msra.mxu0 %v1953
        %2068 = vmatprep.subr.mxu0 0.0
        %2069 = vmatpush1.msra.mxu0 %v1952
        %2070 = vmatprep.subr.mxu0 0.0
        %2071 = vmatpush1.msra.mxu0 %v1951
        %2072 = vmatprep.subr.mxu0 0.0
        %2073 = vmatpush1.msra.mxu0 %v1950
        %2074 = vmatprep.subr.mxu0 0.0
        %2075 = vmatpush1.msra.mxu0 %v1949
        %2076 = vmatprep.subr.mxu0 0.0
        %2077 = vmatpush2.msra.mxu0 0.0
        %2078 = vmatprep.subr.mxu0 0.0
        %2079 = vmatpush2.msra.mxu0 0.0
        %2080 = vmatprep.subr.mxu0 0.0
        %2081 = vmatpush2.msra.mxu0 0.0
        %2082 = vmatprep.subr.mxu0 0.0
        %2083 = vmatpush2.msra.mxu0 0.0
        %2084 = vmatprep.subr.mxu0 0.0
        %2085 = vmatpush2.msra.mxu0 0.0
        %2086 = vmatprep.subr.mxu0 0.0
        %2087 = vmatpush2.msra.mxu0 0.0
        %2088 = vmatprep.subr.mxu0 0.0
        %2089 = vmatpush2.msra.mxu0 0.0
        %2090 = vmatprep.subr.mxu0 0.0
        %2091 = vmatpush2.msra.mxu0 0.0
        %2092 = vmatprep.subr.mxu0 0.0
        %2093 = vmatpush2.msra.mxu0 0.0
        %2094 = vmatprep.subr.mxu0 0.0
        %2095 = vmatpush2.msra.mxu0 0.0
        %2096 = vmatprep.subr.mxu0 0.0
        %2097 = vmatpush2.msra.mxu0 0.0
        %2098 = vmatprep.subr.mxu0 0.0
        %2099 = vmatpush2.msra.mxu0 0.0
        %2100 = vmatprep.subr.mxu0 0.0
        %2101 = vmatpush2.msra.mxu0 0.0
        %2102 = vmatprep.subr.mxu0 0.0
        %2103 = vmatpush2.msra.mxu0 0.0
        %2104 = vmatprep.subr.mxu0 0.0
        %2105 = vmatpush2.msra.mxu0 0.0
        %2106 = vmatprep.subr.mxu0 0.0
        %2107 = vmatpush2.msra.mxu0 0.0
        %2108 = vmatprep.mubr.f32.mxu0 0.0
        %2109 = vmatmul.mubr.f32.gmra.mxu0 %v1970
        %v2110 = vpop.f32.mrf.mxu0
        %v2111 = vadd.f32 %v2041, %v2110
        %v2112 = vpop.f32.mrf.mxu0
        %2113 = vdwg.mxu0
        %v2114 = vadd.f32 %v1910, %v2111
        %v2115 = vld [vmem:[%s9] sm:$0x1]
        %v2117 = vlaneseq
        %v2118 = vshrl.u32 %v2117, 7
        %v2119 = vsub.s32 0, %v2118
        %v2120 = vrot.slane %v2115, %v2119
        %v2122 = vadd.f32 %v2114, %v2120
        %vm2123 = vcmp.gt.f32.partialorder %v2122, 0.0
        %v2124 = vmul.f32 %v2122, 1.442695
        %v2125 = vpow.pop %v2124
        %v2126 = vsub.f32 %v2125, 1.0
        %v2127 = vsel %vm2123, %v2122, %v2126
        %v2128 = vmul.f32 %v2127, %v2127
        %2130 = vrot.lane.b32.xlu0 %v2128, 64
        %v2131 = vpop.permute.xlu0 %2130
        %v2133 = vadd.f32 %v2128, %v2131
        %v2134 = vrsqrt.pop %v2133
        %vm2135 = vcmp.gt.f32.partialorder %v2133, 0.0
        %2137 = vrot.lane.b32.xlu0 %v2134, 64
        %v2138 = vpop.permute.xlu0 %2137
        %v2140 = vmul.f32 %v2127, %v2138
        %2142 = vrot.lane.b32.xlu0 %v2140, 64
        %v2143 = vpop.permute.xlu0 %2142
        %v2145 = vsel %vm2135, %v2143, 1.0
        %v2146 = vmul.f32 %v2127, %v2134
        %v2147 = vsel %vm2135, %v2146, 0.0
        %v2148 = vld [vmem:[%s400] sm:$0xf]
        %v2149 = vmul.f32 %v2148, %v2145
        %vm2150 = vcmask 519168
        %2151 = vst.msk [vmem:[%s404] sm:$0xf] %vm2150, %v2149
        %v2152 = vmul.f32 %v2148, %v2147
        %2154 = vrot.lane.b32.xlu0 %v2152, 64
        %v2155 = vpop.permute.xlu0 %2154
        %vm2157 = vcmask 1043968
        %2158 = vst.msk [vmem:[%s404] sm:$0xf] %vm2157, %v2155
        %p2159 = scmp.lt.s32.totalorder %s23, 1
        %s2160 = scalar_select %p2159, %s23, 1
        %s2161 = smul.addr %s2160, 4
        %s2162 = scalar_lea.vmem %s10, %s2161
        // Predicated region
        $region69: #{phase_init_network.1} parent=59 // pred_check
          %p2163 = pneg %p261
        $region70: #{phase_init_network.1} parent=59 // pred_check_branch
          %2165 = sbr.rel (%p2163) target = $region72
        $region71: #{phase_init_network.1} parent=59 // pred_region
          _
        $region72: #{phase_init_network.1} parent=59 // pred_fallthru
          _
      $region60: #{phase_init_network.1} parent=5 // pred_fallthru
        _
      %p2166 = scmp.le.s32.totalorder 2, %s18
      // Predicated region
      $region73: #{phase_init_network.1} parent=5 // pred_check
        %p2167 = pneg %p2166
      $region74: #{phase_init_network.1} parent=5 // pred_check_branch
        %2169 = sbr.rel (%p2167) target = $region76
      $region75: #{phase_init_network.1} parent=5 // pred_region
        %s2170 = ssub.s32 %s18, 2
        // Predicated region
        $region77: #{phase_init_network.1} parent=75 // pred_check
          %p2171 = pneg %p267
        $region78: #{phase_init_network.1} parent=75 // pred_check_branch
          %2173 = sbr.rel (%p2171) target = $region80
        $region79: #{phase_init_network.1} parent=75 // pred_region
          %p2174 = scmp.lt.s32.totalorder %s24, 1
          %s2175 = scalar_select %p2174, %s24, 1
          %s2176 = smul.addr %s2175, 4
          %s2177 = scalar_lea.vmem %s10, %s2176
        $region80: #{phase_init_network.1} parent=75 // pred_fallthru
          _
      $region76: #{phase_init_network.1} parent=5 // pred_fallthru
        _
    $region6: #{phase_init_network.1} parent=1 // loop_footer
      %s22 = sadd.s32 1, %s18
    $region7: #{phase_init_network.1} parent=1 // loop_footer_branch
      %17 = sbr.rel target = $region3
    $region8: #{phase_init_network.1} parent=1 // loop_exit
      _
    %2178 = vsyncpa [#allocation6], 1
    %s2179 = scalar_lea.sflag [#allocation6], 1
    %2180 = vsyncpa %s2179, 1
    %2181 = vsyncpa [#allocation8], 1

</llo_original>
